<compile_context>
chip_gen: v5e
topology: v5e:2x2
jax: 0.10.0
libtpu: 0.0.40
codegen_flags: <defaults>
</compile_context>

<pallas_src>
import numpy as np

import jax
import jax.numpy as jnp
from jax import lax
from jax.experimental import pallas as pl
from jax.experimental.pallas import tpu as pltpu


# ----------------------------------------------------------------------------
# Fused Pallas kernel: whole LeNet forward for one batch block.
# ----------------------------------------------------------------------------
def _lenet_kernel(x_ref, band1_ref, band3_ref, w5_ref, w6_ref, wo_ref,
                  bias_ref, o_ref):
    """
    x_ref    : (BB, 28, 28)  input images (single channel squeezed)
    band1_ref: (5, 28, 144)  conv1 band; out lane = wp*72 + c*12 + owh
    band3_ref: (5, 72, 128)  conv3 band; in lane = cin*12 + iw,
                             out lane = wp*64 + cout*4 + owh
    w5_ref   : (256, 128)    fc5 weight, rows ordered h*64 + c*4 + w, cols padded
    w6_ref   : (128, 128)    fc6 weight, zero-padded
    wo_ref   : (128, 128)    out weight, zero-padded (cols >= 10 are zero)
    bias_ref : (5, 128)      packed biases [conv1, conv3, fc5, fc6, out];
                             row 4 holds -1e9 beyond col 10 (softmax mask)
    o_ref    : (BB, 128)     lane-dense softmax output (cols >= 10 are zero)
    """
    bb = x_ref.shape[0]
    x = x_ref[...]                                            # (BB, 28, 28)

    # ---- conv1 (5x5, 1->6): 5 banded MXU matmuls over the kernel-row index.
    # The W-tap contraction and the pool W-parity both live in the band lanes.
    c1 = jnp.zeros((bb * 24, 144), jnp.float32)
    for ki in range(5):
        xk = x[:, ki:ki + 24, :].reshape(bb * 24, 28)
        c1 = c1 + jnp.dot(xk, band1_ref[ki],
                          preferred_element_type=jnp.float32)
    # 2x2 max-pool: H via row-pair max, W via the two 72-lane parity halves.
    c1 = c1.reshape(bb * 12, 2, 144)
    c1 = jnp.maximum(c1[:, 0, :], c1[:, 1, :])                # (BB*12, 144)
    c1 = jnp.maximum(c1[:, 0:72], c1[:, 72:144])              # (BB*12, 72)
    a1 = jnp.maximum(c1 + bias_ref[0:1, 0:72], 0.0)           # lane = c*12 + ow
    a1 = a1.reshape(bb, 12, 72)

    # ---- conv3 (5x5, 6->16): same banded-matmul trick.
    c3 = jnp.zeros((bb * 8, 128), jnp.float32)
    for ki in range(5):
        ak = a1[:, ki:ki + 8, :].reshape(bb * 8, 72)
        c3 = c3 + jnp.dot(ak, band3_ref[ki],
                          preferred_element_type=jnp.float32)
    c3 = c3.reshape(bb * 4, 2, 128)
    c3 = jnp.maximum(c3[:, 0, :], c3[:, 1, :])                # (BB*4, 128)
    c3 = jnp.maximum(c3[:, 0:64], c3[:, 64:128])              # (BB*4, 64)
    a2 = jnp.maximum(c3 + bias_ref[1:2, 0:64], 0.0)           # lane = c*4 + ow

    # ---- flatten + fc5: contract the (oh4, 64-lane) features with 4 row-block
    # matmuls (w5 rows were pre-permuted to this order; avoids lane-merge).
    a2r = a2.reshape(bb, 4, 64)
    h = jnp.zeros((bb, 128), jnp.float32)
    for j in range(4):
        h = h + jnp.dot(a2r[:, j, :], w5_ref[j * 64:(j + 1) * 64, :],
                        preferred_element_type=jnp.float32)
    h = jnp.maximum(h + bias_ref[2:3, :], 0.0)

    # ---- fc6 -> relu -> out -> softmax (padded lanes carry -1e9 -> prob 0).
    h = jnp.maximum(
        jnp.dot(h, w6_ref[...], preferred_element_type=jnp.float32)
        + bias_ref[3:4, :], 0.0)
    logits = (jnp.dot(h, wo_ref[...], preferred_element_type=jnp.float32)
              + bias_ref[4:5, :])
    z = logits - jnp.max(logits, axis=1, keepdims=True)
    e = jnp.exp(z)
    o_ref[...] = e * pl.reciprocal(jnp.sum(e, axis=1, keepdims=True),
                                   approx=True)


# ----------------------------------------------------------------------------
# One-time weight preparation (banded matrices, permutations, padding).
# ----------------------------------------------------------------------------
def prepare_lenet_params(params):
    (w1, b1, w3, b3, w5, b5, w6, b6, wo, bo) = params
    f32 = jnp.float32

    # conv1 band: band1[ki, iw, wp*72 + c*12 + owh] = w1[c, 0, ki, iw-(2*owh+wp)]
    ki_i, iw_i, lane_i, c_i, kj_i = [], [], [], [], []
    for ki in range(5):
        for c in range(6):
            for owh in range(12):
                for wp in range(2):
                    for kj in range(5):
                        ki_i.append(ki)
                        iw_i.append(2 * owh + wp + kj)
                        lane_i.append(wp * 72 + c * 12 + owh)
                        c_i.append(c)
                        kj_i.append(kj)
    vals1 = w1[np.asarray(c_i), 0, np.asarray(ki_i), np.asarray(kj_i)].astype(f32)
    band1 = jnp.zeros((5, 28, 144), f32).at[
        np.asarray(ki_i), np.asarray(iw_i), np.asarray(lane_i)].set(vals1)

    # conv3 band: band3[ki, ci*12+iw, wp*64 + co*4 + owh] = w3[co, ci, ki, iw-(2*owh+wp)]
    ki3, row3, lane3, co3, ci3, kj3 = [], [], [], [], [], []
    for ki in range(5):
        for co in range(16):
            for ci in range(6):
                for owh in range(4):
                    for wp in range(2):
                        for kj in range(5):
                            ki3.append(ki)
                            row3.append(ci * 12 + 2 * owh + wp + kj)
                            lane3.append(wp * 64 + co * 4 + owh)
                            co3.append(co)
                            ci3.append(ci)
                            kj3.append(kj)
    vals3 = w3[np.asarray(co3), np.asarray(ci3), np.asarray(ki3),
               np.asarray(kj3)].astype(f32)
    band3 = jnp.zeros((5, 72, 128), f32).at[
        np.asarray(ki3), np.asarray(row3), np.asarray(lane3)].set(vals3)

    # FC weights: fold the NCHW flatten permutation into w5 (kernel feature
    # order is h*64 + c*4 + w); zero-pad every feature dim to 128 lanes.
    w5m = jnp.transpose(w5.reshape(120, 16, 4, 4), (2, 1, 3, 0)).reshape(256, 120)
    w5m = jnp.pad(w5m, ((0, 0), (0, 8))).astype(f32)          # (256, 128)
    w6m = jnp.pad(w6.T, ((0, 8), (0, 44))).astype(f32)        # (128, 128)
    wom = jnp.pad(wo.T, ((0, 44), (0, 118))).astype(f32)      # (128, 128)

    # Packed biases (single operand).
    bias = jnp.zeros((5, 128), f32)
    bias = bias.at[0, 0:72].set(jnp.repeat(b1, 12))           # lane = c*12 + ow
    bias = bias.at[1, 0:64].set(jnp.repeat(b3, 4))            # lane = c*4 + ow
    bias = bias.at[2, 0:120].set(b5)
    bias = bias.at[3, 0:84].set(b6)
    bias = bias.at[4, :].set(jnp.full((128,), -1e9, f32).at[0:10].set(bo))
    return (band1, band3, w5m, w6m, wom, bias)


# ----------------------------------------------------------------------------
# Wrapper
# ----------------------------------------------------------------------------
def lenet_apply(x, prep):
    """x: (B, 1, 28, 28) float32 -> (B, 10) softmax probabilities."""
    band1, band3, w5m, w6m, wom, bias = prep
    B = x.shape[0]
    x2 = x[:, 0].astype(jnp.float32)                          # (B, 28, 28)

    # Pad the batch to a sublane-friendly multiple of 8, then pick the largest
    # batch block in {32, 16, 8} that divides it (amortizes per-step overhead,
    # stays far under the VMEM limit: bb=32 uses ~0.7 MiB of activations).
    Bp = ((B + 7) // 8) * 8
    if Bp != B:
        x2 = jnp.pad(x2, ((0, Bp - B), (0, 0), (0, 0)))
    bb = next(b for b in (32, 16, 8) if Bp % b == 0)

    out = pl.pallas_call(
        _lenet_kernel,
        out_shape=jax.ShapeDtypeStruct((Bp, 128), jnp.float32),
        grid=(Bp // bb,),
        in_specs=[
            pl.BlockSpec((bb, 28, 28), lambda i: (i, 0, 0)),   # x (per block)
            pl.BlockSpec((5, 28, 144), lambda i: (0, 0, 0)),   # conv1 band
            pl.BlockSpec((5, 72, 128), lambda i: (0, 0, 0)),   # conv3 band
            pl.BlockSpec((256, 128), lambda i: (0, 0)),        # fc5
            pl.BlockSpec((128, 128), lambda i: (0, 0)),        # fc6
            pl.BlockSpec((128, 128), lambda i: (0, 0)),        # out
            pl.BlockSpec((5, 128), lambda i: (0, 0)),          # packed biases
        ],
        out_specs=pl.BlockSpec((bb, 128), lambda i: (i, 0)),
        compiler_params=pltpu.CompilerParams(
            dimension_semantics=("parallel",),
            vmem_limit_bytes=32 * 1024 * 1024,
        ),
    )(x2, band1, band3, w5m, w6m, wom, bias)
    return out[:B, :10]


def lenet_forward(x, params):
    return lenet_apply(x, prepare_lenet_params(params))


# ----------------------------------------------------------------------------
# Pure-JAX reference (correctness check)
# ----------------------------------------------------------------------------
def lenet_reference(x, params):
    (w1, b1, w3, b3, w5, b5, w6, b6, wo, bo) = params
    dn = ("NCHW", "OIHW", "NCHW")
    hp = lax.Precision.HIGHEST

    c1 = lax.conv_general_dilated(x, w1, (1, 1), "VALID", dimension_numbers=dn,
                                  precision=hp) + b1[None, :, None, None]
    p1 = lax.reduce_window(c1, -jnp.inf, lax.max, (1, 1, 2, 2), (1, 1, 2, 2), "VALID")
    a1 = jnp.maximum(p1, 0.0)

    c3 = lax.conv_general_dilated(a1, w3, (1, 1), "VALID", dimension_numbers=dn,
                                  precision=hp) + b3[None, :, None, None]
    p3 = lax.reduce_window(c3, -jnp.inf, lax.max, (1, 1, 2, 2), (1, 1, 2, 2), "VALID")
    a3 = jnp.maximum(p3, 0.0)

    flat = a3.reshape(x.shape[0], -1)                    # torch .view order
    h = jnp.maximum(jnp.dot(flat, w5.T, precision=hp) + b5, 0.0)
    h = jnp.maximum(jnp.dot(h, w6.T, precision=hp) + b6, 0.0)
    logits = jnp.dot(h, wo.T, precision=hp) + bo
    return jax.nn.softmax(logits, axis=1)


# ----------------------------------------------------------------------------
# Deterministic parameter init (PyTorch-style U(-1/sqrt(fan_in), 1/sqrt(fan_in)))
# ----------------------------------------------------------------------------
def init_params(key):
    ks = jax.random.split(key, 10)

    def u(k, shape, fan_in):
        bound = 1.0 / (fan_in ** 0.5)
        return jax.random.uniform(k, shape, jnp.float32, -bound, bound)

    w1 = u(ks[0], (6, 1, 5, 5), 25);    b1 = u(ks[1], (6,), 25)
    w3 = u(ks[2], (16, 6, 5, 5), 150);  b3 = u(ks[3], (16,), 150)
    w5 = u(ks[4], (120, 256), 256);     b5 = u(ks[5], (120,), 256)
    w6 = u(ks[6], (84, 120), 120);      b6 = u(ks[7], (84,), 120)
    wo = u(ks[8], (10, 84), 84);        bo = u(ks[9], (10,), 84)
    return (w1, b1, w3, b3, w5, b5, w6, b6, wo, bo)


if __name__ == "__main__":
    key = jax.random.PRNGKey(0)
    kx, kp = jax.random.split(key)

    B = 2  # spatial 28x28 fixed by fc5 in_features (4*4*16)
    x = jax.random.normal(kx, (B, 1, 28, 28), dtype=jnp.float32)
    params = init_params(kp)

    prep = prepare_lenet_params(params)          # one-time weight prep
    fwd = jax.jit(lenet_apply)
    out = jax.block_until_ready(fwd(x, prep))

    ref = jax.block_until_ready(lenet_reference(x, params))
    max_err = float(jnp.max(jnp.abs(out - ref)))
    row_sum_err = float(jnp.max(jnp.abs(jnp.sum(out, axis=1) - 1.0)))
    if out.shape != (B, 10) or not bool(jnp.all(jnp.isfinite(out))):
        raise RuntimeError("bad output shape/values")
    # tolerance accounts for MXU default precision + approx EUP reciprocal
    if max_err > 5e-3 or row_sum_err > 5e-3:
        raise RuntimeError(
            f"mismatch vs reference: max_err={max_err}, row_sum_err={row_sum_err}")

    print("KERNEL_OK")
</pallas_src>

<mosaic_0001>
module attributes {stable_mosaic.version = 11 : i64} {
  func.func @_lenet_kernel(%arg0: i32, %arg1: memref<8x28x28xf32, #tpu.memory_space<vmem>>, %arg2: memref<5x28x144xf32, #tpu.memory_space<vmem>>, %arg3: memref<5x72x128xf32, #tpu.memory_space<vmem>>, %arg4: memref<256x128xf32, #tpu.memory_space<vmem>>, %arg5: memref<128x128xf32, #tpu.memory_space<vmem>>, %arg6: memref<128x128xf32, #tpu.memory_space<vmem>>, %arg7: memref<5x128xf32, #tpu.memory_space<vmem>>, %arg8: memref<8x128xf32, #tpu.memory_space<vmem>>) attributes {dimension_semantics = [#tpu.dimension_semantics<parallel>], iteration_bounds = array<i64: 1>, scalar_prefetch = 0 : i64, scratch_operands = 0 : i64, tpu.core_type = #tpu.core_type<tc>, window_params = [{transform_indices = @transform_0, window_bounds = array<i64: 8, 28, 28>}, {pipeline_mode = #tpu.pipeline_mode<synchronous>, transform_indices = @transform_1, window_bounds = array<i64: 5, 28, 144>}, {pipeline_mode = #tpu.pipeline_mode<synchronous>, transform_indices = @transform_2, window_bounds = array<i64: 5, 72, 128>}, {pipeline_mode = #tpu.pipeline_mode<synchronous>, transform_indices = @transform_3, window_bounds = array<i64: 256, 128>}, {pipeline_mode = #tpu.pipeline_mode<synchronous>, transform_indices = @transform_4, window_bounds = array<i64: 128, 128>}, {pipeline_mode = #tpu.pipeline_mode<synchronous>, transform_indices = @transform_5, window_bounds = array<i64: 128, 128>}, {pipeline_mode = #tpu.pipeline_mode<synchronous>, transform_indices = @transform_6, window_bounds = array<i64: 5, 128>}, {transform_indices = @transform_7, window_bounds = array<i64: 8, 128>}]} {
    %c0 = arith.constant 0 : index
    %c0_0 = arith.constant 0 : index
    %c0_1 = arith.constant 0 : index
    %0 = vector.load %arg1[%c0, %c0_0, %c0_1] : memref<8x28x28xf32, #tpu.memory_space<vmem>>, vector<8x28x28xf32>
    %cst = arith.constant 0.000000e+00 : f32
    %1 = vector.broadcast %cst : f32 to vector<192x144xf32>
    %2 = vector.extract_strided_slice %0 {offsets = [0, 0, 0], sizes = [8, 24, 28], strides = [1, 1, 1]} : vector<8x28x28xf32> to vector<8x24x28xf32>
    %3 = vector.shape_cast %2 : vector<8x24x28xf32> to vector<192x28xf32>
    %c0_2 = arith.constant 0 : index
    %c0_3 = arith.constant 0 : index
    %c0_4 = arith.constant 0 : index
    %4 = vector.load %arg2[%c0_2, %c0_3, %c0_4] : memref<5x28x144xf32, #tpu.memory_space<vmem>>, vector<1x28x144xf32>
    %5 = vector.shape_cast %4 : vector<1x28x144xf32> to vector<28x144xf32>
    %cst_5 = arith.constant dense<0.000000e+00> : vector<192x144xf32>
    %6 = tpu.matmul %3, %5, %cst_5 {dimension_numbers = #tpu.dot_dimension_numbers<[1], [0], [0], [1], [0, 0, 1, 1], [], []>} : vector<192x28xf32>, vector<28x144xf32>, vector<192x144xf32> -> vector<192x144xf32>
    %7 = arith.addf %1, %6 : vector<192x144xf32>
    %8 = vector.extract_strided_slice %0 {offsets = [0, 1, 0], sizes = [8, 24, 28], strides = [1, 1, 1]} : vector<8x28x28xf32> to vector<8x24x28xf32>
    %9 = vector.shape_cast %8 : vector<8x24x28xf32> to vector<192x28xf32>
    %c1 = arith.constant 1 : index
    %c0_6 = arith.constant 0 : index
    %c0_7 = arith.constant 0 : index
    %10 = vector.load %arg2[%c1, %c0_6, %c0_7] : memref<5x28x144xf32, #tpu.memory_space<vmem>>, vector<1x28x144xf32>
    %11 = vector.shape_cast %10 : vector<1x28x144xf32> to vector<28x144xf32>
    %cst_8 = arith.constant dense<0.000000e+00> : vector<192x144xf32>
    %12 = tpu.matmul %9, %11, %cst_8 {dimension_numbers = #tpu.dot_dimension_numbers<[1], [0], [0], [1], [0, 0, 1, 1], [], []>} : vector<192x28xf32>, vector<28x144xf32>, vector<192x144xf32> -> vector<192x144xf32>
    %13 = arith.addf %7, %12 : vector<192x144xf32>
    %14 = vector.extract_strided_slice %0 {offsets = [0, 2, 0], sizes = [8, 24, 28], strides = [1, 1, 1]} : vector<8x28x28xf32> to vector<8x24x28xf32>
    %15 = vector.shape_cast %14 : vector<8x24x28xf32> to vector<192x28xf32>
    %c2 = arith.constant 2 : index
    %c0_9 = arith.constant 0 : index
    %c0_10 = arith.constant 0 : index
    %16 = vector.load %arg2[%c2, %c0_9, %c0_10] : memref<5x28x144xf32, #tpu.memory_space<vmem>>, vector<1x28x144xf32>
    %17 = vector.shape_cast %16 : vector<1x28x144xf32> to vector<28x144xf32>
    %cst_11 = arith.constant dense<0.000000e+00> : vector<192x144xf32>
    %18 = tpu.matmul %15, %17, %cst_11 {dimension_numbers = #tpu.dot_dimension_numbers<[1], [0], [0], [1], [0, 0, 1, 1], [], []>} : vector<192x28xf32>, vector<28x144xf32>, vector<192x144xf32> -> vector<192x144xf32>
    %19 = arith.addf %13, %18 : vector<192x144xf32>
    %20 = vector.extract_strided_slice %0 {offsets = [0, 3, 0], sizes = [8, 24, 28], strides = [1, 1, 1]} : vector<8x28x28xf32> to vector<8x24x28xf32>
    %21 = vector.shape_cast %20 : vector<8x24x28xf32> to vector<192x28xf32>
    %c3 = arith.constant 3 : index
    %c0_12 = arith.constant 0 : index
    %c0_13 = arith.constant 0 : index
    %22 = vector.load %arg2[%c3, %c0_12, %c0_13] : memref<5x28x144xf32, #tpu.memory_space<vmem>>, vector<1x28x144xf32>
    %23 = vector.shape_cast %22 : vector<1x28x144xf32> to vector<28x144xf32>
    %cst_14 = arith.constant dense<0.000000e+00> : vector<192x144xf32>
    %24 = tpu.matmul %21, %23, %cst_14 {dimension_numbers = #tpu.dot_dimension_numbers<[1], [0], [0], [1], [0, 0, 1, 1], [], []>} : vector<192x28xf32>, vector<28x144xf32>, vector<192x144xf32> -> vector<192x144xf32>
    %25 = arith.addf %19, %24 : vector<192x144xf32>
    %26 = vector.extract_strided_slice %0 {offsets = [0, 4, 0], sizes = [8, 24, 28], strides = [1, 1, 1]} : vector<8x28x28xf32> to vector<8x24x28xf32>
    %27 = vector.shape_cast %26 : vector<8x24x28xf32> to vector<192x28xf32>
    %c4 = arith.constant 4 : index
    %c0_15 = arith.constant 0 : index
    %c0_16 = arith.constant 0 : index
    %28 = vector.load %arg2[%c4, %c0_15, %c0_16] : memref<5x28x144xf32, #tpu.memory_space<vmem>>, vector<1x28x144xf32>
    %29 = vector.shape_cast %28 : vector<1x28x144xf32> to vector<28x144xf32>
    %cst_17 = arith.constant dense<0.000000e+00> : vector<192x144xf32>
    %30 = tpu.matmul %27, %29, %cst_17 {dimension_numbers = #tpu.dot_dimension_numbers<[1], [0], [0], [1], [0, 0, 1, 1], [], []>} : vector<192x28xf32>, vector<28x144xf32>, vector<192x144xf32> -> vector<192x144xf32>
    %31 = arith.addf %25, %30 : vector<192x144xf32>
    %32 = vector.shape_cast %31 : vector<192x144xf32> to vector<96x2x144xf32>
    %33 = vector.extract_strided_slice %32 {offsets = [0, 0, 0], sizes = [96, 1, 144], strides = [1, 1, 1]} : vector<96x2x144xf32> to vector<96x1x144xf32>
    %34 = vector.shape_cast %33 : vector<96x1x144xf32> to vector<96x144xf32>
    %35 = vector.extract_strided_slice %32 {offsets = [0, 1, 0], sizes = [96, 1, 144], strides = [1, 1, 1]} : vector<96x2x144xf32> to vector<96x1x144xf32>
    %36 = vector.shape_cast %35 : vector<96x1x144xf32> to vector<96x144xf32>
    %37 = arith.maximumf %34, %36 : vector<96x144xf32>
    %38 = vector.extract_strided_slice %37 {offsets = [0, 0], sizes = [96, 72], strides = [1, 1]} : vector<96x144xf32> to vector<96x72xf32>
    %39 = vector.extract_strided_slice %37 {offsets = [0, 72], sizes = [96, 72], strides = [1, 1]} : vector<96x144xf32> to vector<96x72xf32>
    %40 = arith.maximumf %38, %39 : vector<96x72xf32>
    %c0_18 = arith.constant 0 : index
    %c0_19 = arith.constant 0 : index
    %41 = vector.load %arg7[%c0_18, %c0_19] : memref<5x128xf32, #tpu.memory_space<vmem>>, vector<1x72xf32>
    %42 = vector.broadcast %41 : vector<1x72xf32> to vector<96x72xf32>
    %43 = arith.addf %40, %42 : vector<96x72xf32>
    %cst_20 = arith.constant 0.000000e+00 : f32
    %44 = vector.broadcast %cst_20 : f32 to vector<96x72xf32>
    %45 = arith.maximumf %43, %44 : vector<96x72xf32>
    %46 = vector.shape_cast %45 : vector<96x72xf32> to vector<8x12x72xf32>
    %cst_21 = arith.constant 0.000000e+00 : f32
    %47 = vector.broadcast %cst_21 : f32 to vector<64x128xf32>
    %48 = vector.extract_strided_slice %46 {offsets = [0, 0, 0], sizes = [8, 8, 72], strides = [1, 1, 1]} : vector<8x12x72xf32> to vector<8x8x72xf32>
    %49 = vector.shape_cast %48 : vector<8x8x72xf32> to vector<64x72xf32>
    %c0_22 = arith.constant 0 : index
    %c0_23 = arith.constant 0 : index
    %c0_24 = arith.constant 0 : index
    %50 = vector.load %arg3[%c0_22, %c0_23, %c0_24] : memref<5x72x128xf32, #tpu.memory_space<vmem>>, vector<1x72x128xf32>
    %51 = vector.shape_cast %50 : vector<1x72x128xf32> to vector<72x128xf32>
    %cst_25 = arith.constant dense<0.000000e+00> : vector<64x128xf32>
    %52 = tpu.matmul %49, %51, %cst_25 {dimension_numbers = #tpu.dot_dimension_numbers<[1], [0], [0], [1], [0, 0, 1, 1], [], []>} : vector<64x72xf32>, vector<72x128xf32>, vector<64x128xf32> -> vector<64x128xf32>
    %53 = arith.addf %47, %52 : vector<64x128xf32>
    %54 = vector.extract_strided_slice %46 {offsets = [0, 1, 0], sizes = [8, 8, 72], strides = [1, 1, 1]} : vector<8x12x72xf32> to vector<8x8x72xf32>
    %55 = vector.shape_cast %54 : vector<8x8x72xf32> to vector<64x72xf32>
    %c1_26 = arith.constant 1 : index
    %c0_27 = arith.constant 0 : index
    %c0_28 = arith.constant 0 : index
    %56 = vector.load %arg3[%c1_26, %c0_27, %c0_28] : memref<5x72x128xf32, #tpu.memory_space<vmem>>, vector<1x72x128xf32>
    %57 = vector.shape_cast %56 : vector<1x72x128xf32> to vector<72x128xf32>
    %cst_29 = arith.constant dense<0.000000e+00> : vector<64x128xf32>
    %58 = tpu.matmul %55, %57, %cst_29 {dimension_numbers = #tpu.dot_dimension_numbers<[1], [0], [0], [1], [0, 0, 1, 1], [], []>} : vector<64x72xf32>, vector<72x128xf32>, vector<64x128xf32> -> vector<64x128xf32>
    %59 = arith.addf %53, %58 : vector<64x128xf32>
    %60 = vector.extract_strided_slice %46 {offsets = [0, 2, 0], sizes = [8, 8, 72], strides = [1, 1, 1]} : vector<8x12x72xf32> to vector<8x8x72xf32>
    %61 = vector.shape_cast %60 : vector<8x8x72xf32> to vector<64x72xf32>
    %c2_30 = arith.constant 2 : index
    %c0_31 = arith.constant 0 : index
    %c0_32 = arith.constant 0 : index
    %62 = vector.load %arg3[%c2_30, %c0_31, %c0_32] : memref<5x72x128xf32, #tpu.memory_space<vmem>>, vector<1x72x128xf32>
    %63 = vector.shape_cast %62 : vector<1x72x128xf32> to vector<72x128xf32>
    %cst_33 = arith.constant dense<0.000000e+00> : vector<64x128xf32>
    %64 = tpu.matmul %61, %63, %cst_33 {dimension_numbers = #tpu.dot_dimension_numbers<[1], [0], [0], [1], [0, 0, 1, 1], [], []>} : vector<64x72xf32>, vector<72x128xf32>, vector<64x128xf32> -> vector<64x128xf32>
    %65 = arith.addf %59, %64 : vector<64x128xf32>
    %66 = vector.extract_strided_slice %46 {offsets = [0, 3, 0], sizes = [8, 8, 72], strides = [1, 1, 1]} : vector<8x12x72xf32> to vector<8x8x72xf32>
    %67 = vector.shape_cast %66 : vector<8x8x72xf32> to vector<64x72xf32>
    %c3_34 = arith.constant 3 : index
    %c0_35 = arith.constant 0 : index
    %c0_36 = arith.constant 0 : index
    %68 = vector.load %arg3[%c3_34, %c0_35, %c0_36] : memref<5x72x128xf32, #tpu.memory_space<vmem>>, vector<1x72x128xf32>
    %69 = vector.shape_cast %68 : vector<1x72x128xf32> to vector<72x128xf32>
    %cst_37 = arith.constant dense<0.000000e+00> : vector<64x128xf32>
    %70 = tpu.matmul %67, %69, %cst_37 {dimension_numbers = #tpu.dot_dimension_numbers<[1], [0], [0], [1], [0, 0, 1, 1], [], []>} : vector<64x72xf32>, vector<72x128xf32>, vector<64x128xf32> -> vector<64x128xf32>
    %71 = arith.addf %65, %70 : vector<64x128xf32>
    %72 = vector.extract_strided_slice %46 {offsets = [0, 4, 0], sizes = [8, 8, 72], strides = [1, 1, 1]} : vector<8x12x72xf32> to vector<8x8x72xf32>
    %73 = vector.shape_cast %72 : vector<8x8x72xf32> to vector<64x72xf32>
    %c4_38 = arith.constant 4 : index
    %c0_39 = arith.constant 0 : index
    %c0_40 = arith.constant 0 : index
    %74 = vector.load %arg3[%c4_38, %c0_39, %c0_40] : memref<5x72x128xf32, #tpu.memory_space<vmem>>, vector<1x72x128xf32>
    %75 = vector.shape_cast %74 : vector<1x72x128xf32> to vector<72x128xf32>
    %cst_41 = arith.constant dense<0.000000e+00> : vector<64x128xf32>
    %76 = tpu.matmul %73, %75, %cst_41 {dimension_numbers = #tpu.dot_dimension_numbers<[1], [0], [0], [1], [0, 0, 1, 1], [], []>} : vector<64x72xf32>, vector<72x128xf32>, vector<64x128xf32> -> vector<64x128xf32>
    %77 = arith.addf %71, %76 : vector<64x128xf32>
    %78 = vector.shape_cast %77 : vector<64x128xf32> to vector<32x2x128xf32>
    %79 = vector.extract_strided_slice %78 {offsets = [0, 0, 0], sizes = [32, 1, 128], strides = [1, 1, 1]} : vector<32x2x128xf32> to vector<32x1x128xf32>
    %80 = vector.shape_cast %79 : vector<32x1x128xf32> to vector<32x128xf32>
    %81 = vector.extract_strided_slice %78 {offsets = [0, 1, 0], sizes = [32, 1, 128], strides = [1, 1, 1]} : vector<32x2x128xf32> to vector<32x1x128xf32>
    %82 = vector.shape_cast %81 : vector<32x1x128xf32> to vector<32x128xf32>
    %83 = arith.maximumf %80, %82 : vector<32x128xf32>
    %84 = vector.extract_strided_slice %83 {offsets = [0, 0], sizes = [32, 64], strides = [1, 1]} : vector<32x128xf32> to vector<32x64xf32>
    %85 = vector.extract_strided_slice %83 {offsets = [0, 64], sizes = [32, 64], strides = [1, 1]} : vector<32x128xf32> to vector<32x64xf32>
    %86 = arith.maximumf %84, %85 : vector<32x64xf32>
    %c1_42 = arith.constant 1 : index
    %c0_43 = arith.constant 0 : index
    %87 = vector.load %arg7[%c1_42, %c0_43] : memref<5x128xf32, #tpu.memory_space<vmem>>, vector<1x64xf32>
    %88 = vector.broadcast %87 : vector<1x64xf32> to vector<32x64xf32>
    %89 = arith.addf %86, %88 : vector<32x64xf32>
    %cst_44 = arith.constant 0.000000e+00 : f32
    %90 = vector.broadcast %cst_44 : f32 to vector<32x64xf32>
    %91 = arith.maximumf %89, %90 : vector<32x64xf32>
    %92 = vector.shape_cast %91 : vector<32x64xf32> to vector<8x4x64xf32>
    %cst_45 = arith.constant 0.000000e+00 : f32
    %93 = vector.broadcast %cst_45 : f32 to vector<8x128xf32>
    %94 = vector.extract_strided_slice %92 {offsets = [0, 0, 0], sizes = [8, 1, 64], strides = [1, 1, 1]} : vector<8x4x64xf32> to vector<8x1x64xf32>
    %95 = vector.shape_cast %94 : vector<8x1x64xf32> to vector<8x64xf32>
    %c0_46 = arith.constant 0 : index
    %c0_47 = arith.constant 0 : index
    %96 = vector.load %arg4[%c0_46, %c0_47] : memref<256x128xf32, #tpu.memory_space<vmem>>, vector<64x128xf32>
    %cst_48 = arith.constant dense<0.000000e+00> : vector<8x128xf32>
    %97 = tpu.matmul %95, %96, %cst_48 {dimension_numbers = #tpu.dot_dimension_numbers<[1], [0], [0], [1], [0, 0, 1, 1], [], []>} : vector<8x64xf32>, vector<64x128xf32>, vector<8x128xf32> -> vector<8x128xf32>
    %98 = arith.addf %93, %97 : vector<8x128xf32>
    %99 = vector.extract_strided_slice %92 {offsets = [0, 1, 0], sizes = [8, 1, 64], strides = [1, 1, 1]} : vector<8x4x64xf32> to vector<8x1x64xf32>
    %100 = vector.shape_cast %99 : vector<8x1x64xf32> to vector<8x64xf32>
    %c64 = arith.constant 64 : index
    %c0_49 = arith.constant 0 : index
    %101 = vector.load %arg4[%c64, %c0_49] : memref<256x128xf32, #tpu.memory_space<vmem>>, vector<64x128xf32>
    %cst_50 = arith.constant dense<0.000000e+00> : vector<8x128xf32>
    %102 = tpu.matmul %100, %101, %cst_50 {dimension_numbers = #tpu.dot_dimension_numbers<[1], [0], [0], [1], [0, 0, 1, 1], [], []>} : vector<8x64xf32>, vector<64x128xf32>, vector<8x128xf32> -> vector<8x128xf32>
    %103 = arith.addf %98, %102 : vector<8x128xf32>
    %104 = vector.extract_strided_slice %92 {offsets = [0, 2, 0], sizes = [8, 1, 64], strides = [1, 1, 1]} : vector<8x4x64xf32> to vector<8x1x64xf32>
    %105 = vector.shape_cast %104 : vector<8x1x64xf32> to vector<8x64xf32>
    %c128 = arith.constant 128 : index
    %c0_51 = arith.constant 0 : index
    %106 = vector.load %arg4[%c128, %c0_51] : memref<256x128xf32, #tpu.memory_space<vmem>>, vector<64x128xf32>
    %cst_52 = arith.constant dense<0.000000e+00> : vector<8x128xf32>
    %107 = tpu.matmul %105, %106, %cst_52 {dimension_numbers = #tpu.dot_dimension_numbers<[1], [0], [0], [1], [0, 0, 1, 1], [], []>} : vector<8x64xf32>, vector<64x128xf32>, vector<8x128xf32> -> vector<8x128xf32>
    %108 = arith.addf %103, %107 : vector<8x128xf32>
    %109 = vector.extract_strided_slice %92 {offsets = [0, 3, 0], sizes = [8, 1, 64], strides = [1, 1, 1]} : vector<8x4x64xf32> to vector<8x1x64xf32>
    %110 = vector.shape_cast %109 : vector<8x1x64xf32> to vector<8x64xf32>
    %c192 = arith.constant 192 : index
    %c0_53 = arith.constant 0 : index
    %111 = vector.load %arg4[%c192, %c0_53] : memref<256x128xf32, #tpu.memory_space<vmem>>, vector<64x128xf32>
    %cst_54 = arith.constant dense<0.000000e+00> : vector<8x128xf32>
    %112 = tpu.matmul %110, %111, %cst_54 {dimension_numbers = #tpu.dot_dimension_numbers<[1], [0], [0], [1], [0, 0, 1, 1], [], []>} : vector<8x64xf32>, vector<64x128xf32>, vector<8x128xf32> -> vector<8x128xf32>
    %113 = arith.addf %108, %112 : vector<8x128xf32>
    %c2_55 = arith.constant 2 : index
    %c0_56 = arith.constant 0 : index
    %114 = vector.load %arg7[%c2_55, %c0_56] : memref<5x128xf32, #tpu.memory_space<vmem>>, vector<1x128xf32>
    %115 = vector.broadcast %114 : vector<1x128xf32> to vector<8x128xf32>
    %116 = arith.addf %113, %115 : vector<8x128xf32>
    %cst_57 = arith.constant 0.000000e+00 : f32
    %117 = vector.broadcast %cst_57 : f32 to vector<8x128xf32>
    %118 = arith.maximumf %116, %117 : vector<8x128xf32>
    %c0_58 = arith.constant 0 : index
    %c0_59 = arith.constant 0 : index
    %119 = vector.load %arg5[%c0_58, %c0_59] : memref<128x128xf32, #tpu.memory_space<vmem>>, vector<128x128xf32>
    %cst_60 = arith.constant dense<0.000000e+00> : vector<8x128xf32>
    %120 = tpu.matmul %118, %119, %cst_60 {dimension_numbers = #tpu.dot_dimension_numbers<[1], [0], [0], [1], [0, 0, 1, 1], [], []>} : vector<8x128xf32>, vector<128x128xf32>, vector<8x128xf32> -> vector<8x128xf32>
    %c3_61 = arith.constant 3 : index
    %c0_62 = arith.constant 0 : index
    %121 = vector.load %arg7[%c3_61, %c0_62] : memref<5x128xf32, #tpu.memory_space<vmem>>, vector<1x128xf32>
    %122 = vector.broadcast %121 : vector<1x128xf32> to vector<8x128xf32>
    %123 = arith.addf %120, %122 : vector<8x128xf32>
    %cst_63 = arith.constant 0.000000e+00 : f32
    %124 = vector.broadcast %cst_63 : f32 to vector<8x128xf32>
    %125 = arith.maximumf %123, %124 : vector<8x128xf32>
    %c0_64 = arith.constant 0 : index
    %c0_65 = arith.constant 0 : index
    %126 = vector.load %arg6[%c0_64, %c0_65] : memref<128x128xf32, #tpu.memory_space<vmem>>, vector<128x128xf32>
    %cst_66 = arith.constant dense<0.000000e+00> : vector<8x128xf32>
    %127 = tpu.matmul %125, %126, %cst_66 {dimension_numbers = #tpu.dot_dimension_numbers<[1], [0], [0], [1], [0, 0, 1, 1], [], []>} : vector<8x128xf32>, vector<128x128xf32>, vector<8x128xf32> -> vector<8x128xf32>
    %c4_67 = arith.constant 4 : index
    %c0_68 = arith.constant 0 : index
    %128 = vector.load %arg7[%c4_67, %c0_68] : memref<5x128xf32, #tpu.memory_space<vmem>>, vector<1x128xf32>
    %129 = vector.broadcast %128 : vector<1x128xf32> to vector<8x128xf32>
    %130 = arith.addf %127, %129 : vector<8x128xf32>
    %cst_69 = arith.constant dense<0xFF800000> : vector<8xf32>
    %131 = vector.multi_reduction <maximumf>, %130, %cst_69 [1] : vector<8x128xf32> to vector<8xf32>
    %132 = vector.shape_cast %131 : vector<8xf32> to vector<8x1xf32>
    %133 = vector.broadcast %132 : vector<8x1xf32> to vector<8x128xf32>
    %134 = arith.subf %130, %133 : vector<8x128xf32>
    %135 = math.exp %134 : vector<8x128xf32>
    %cst_70 = arith.constant dense<0.000000e+00> : vector<8xf32>
    %136 = vector.multi_reduction <add>, %135, %cst_70 [1] : vector<8x128xf32> to vector<8xf32>
    %137 = vector.shape_cast %136 : vector<8xf32> to vector<8x1xf32>
    %138 = tpu.reciprocal %137 {approx = true} : vector<8x1xf32> -> vector<8x1xf32>
    %139 = vector.broadcast %138 : vector<8x1xf32> to vector<8x128xf32>
    %140 = arith.mulf %135, %139 : vector<8x128xf32>
    %c0_71 = arith.constant 0 : index
    %c0_72 = arith.constant 0 : index
    %141 = vector.load %arg8[%c0_71, %c0_72] : memref<8x128xf32, #tpu.memory_space<vmem>>, vector<8x128xf32>
    tpu.vector_store %arg8[%c0_71, %c0_72], %140 {strides = array<i32>} : memref<8x128xf32, #tpu.memory_space<vmem>>, vector<8x128xf32>,
    return
  }
  func.func @transform_0(%arg0: i32) -> (i32, i32, i32) {
    %c0_i32 = arith.constant 0 : i32
    %c0_i32_0 = arith.constant 0 : i32
    %c0_i32_1 = arith.constant 0 : i32
    return %arg0, %c0_i32, %c0_i32_0 : i32, i32, i32
  }
  func.func @transform_1(%arg0: i32) -> (i32, i32, i32) {
    %c0_i32 = arith.constant 0 : i32
    %c0_i32_0 = arith.constant 0 : i32
    %c0_i32_1 = arith.constant 0 : i32
    %c0_i32_2 = arith.constant 0 : i32
    return %c0_i32, %c0_i32_0, %c0_i32_1 : i32, i32, i32
  }
  func.func @transform_2(%arg0: i32) -> (i32, i32, i32) {
    %c0_i32 = arith.constant 0 : i32
    %c0_i32_0 = arith.constant 0 : i32
    %c0_i32_1 = arith.constant 0 : i32
    %c0_i32_2 = arith.constant 0 : i32
    return %c0_i32, %c0_i32_0, %c0_i32_1 : i32, i32, i32
  }
  func.func @transform_3(%arg0: i32) -> (i32, i32) {
    %c0_i32 = arith.constant 0 : i32
    %c0_i32_0 = arith.constant 0 : i32
    %c0_i32_1 = arith.constant 0 : i32
    return %c0_i32, %c0_i32_0 : i32, i32
  }
  func.func @transform_4(%arg0: i32) -> (i32, i32) {
    %c0_i32 = arith.constant 0 : i32
    %c0_i32_0 = arith.constant 0 : i32
    %c0_i32_1 = arith.constant 0 : i32
    return %c0_i32, %c0_i32_0 : i32, i32
  }
  func.func @transform_5(%arg0: i32) -> (i32, i32) {
    %c0_i32 = arith.constant 0 : i32
    %c0_i32_0 = arith.constant 0 : i32
    %c0_i32_1 = arith.constant 0 : i32
    return %c0_i32, %c0_i32_0 : i32, i32
  }
  func.func @transform_6(%arg0: i32) -> (i32, i32) {
    %c0_i32 = arith.constant 0 : i32
    %c0_i32_0 = arith.constant 0 : i32
    %c0_i32_1 = arith.constant 0 : i32
    return %c0_i32, %c0_i32_0 : i32, i32
  }
  func.func @transform_7(%arg0: i32) -> (i32, i32) {
    %c0_i32 = arith.constant 0 : i32
    %c0_i32_0 = arith.constant 0 : i32
    return %arg0, %c0_i32 : i32, i32
  }
}

</mosaic_0001>

<llo_original>
// kernel: lenet_apply.1
$region0: #{lenet_apply.1}
  #allocation0 [shape = 'u32[]', space=smem, size = 0x4, offset = 0x4, fixed_abs, tag = 'smem constant byte address 0x4 - core index']
  #allocation1 [shape = 'u32[72,128]{1,0:T(1,128)}', space=vmem, size = 0x9000, scoped, tag = 'internal scratch']
  %s0 = inlined_call_operand.vmem [shape: f32[8,28,28], index: 0, kind: input, shape index: {}]
  %s1 = inlined_call_operand.hbm [shape: f32[5,28,144], index: 1, kind: input, shape index: {}]
  %s2 = inlined_call_operand.vmem [shape: f32[5,72,128], index: 2, kind: input, shape index: {}]
  %s3 = inlined_call_operand.hbm [shape: f32[256,128], index: 3, kind: input, shape index: {}]
  %s4 = inlined_call_operand.vmem [shape: f32[128,128], index: 4, kind: input, shape index: {}]
  %s5 = inlined_call_operand.hbm [shape: f32[128,128], index: 5, kind: input, shape index: {}]
  %s6 = inlined_call_operand.vmem [shape: f32[5,128], index: 6, kind: input, shape index: {}]
  %s7 = inlined_call_operand.vmem [shape: f32[8,128], index: 7, kind: output, shape index: {}]
  %s8 = sld [smem:[#allocation0]]
  $region50: #{lenet_apply.1} parent=0
    _
  %s10 = ssub.s32 1, %s8
  %s11 = scalar_select 0, %s10, %s8
  $region1: #{lenet_apply.1} parent=0
    #allocation2 [shape = 'u8[163840]{0}', space=vmem, size = 0x28000, scoped, tag = 'input window, operand 1, single buffered']
    #allocation3 [shape = 's32[1]{0}', space=sflag, size = 0x4, scoped, tag = 'scoped memory for lenet_apply.1']
    #allocation4 [shape = 'u8[131072]{0}', space=vmem, size = 0x20000, scoped, tag = 'input window, operand 3, single buffered']
    #allocation5 [shape = 's32[1]{0}', space=sflag, size = 0x4, scoped, tag = 'scoped memory for lenet_apply.1']
    #allocation6 [shape = 'u8[65536]{0}', space=vmem, size = 0x10000, scoped, tag = 'input window, operand 5, single buffered']
    %12 = vsyncpa [#allocation3], 0
    %13 = vsyncpa [#allocation5], 0
    // Predicated region
    $region2: #{lenet_apply.1} parent=1 // pred_check
      _
    $region3: #{lenet_apply.1} parent=1 // pred_check_branch
      %15 = sbr.rel (0) target = $region5
    $region4: #{lenet_apply.1} parent=1 // pred_region
      _
    $region5: #{lenet_apply.1} parent=1 // pred_fallthru
      _
    // Predicated region
    $region6: #{lenet_apply.1} parent=1 // pred_check
      _
    $region7: #{lenet_apply.1} parent=1 // pred_check_branch
      %17 = sbr.rel (0) target = $region9
    $region8: #{lenet_apply.1} parent=1 // pred_region
      %19 = vsyncadd [#allocation3], 0
      %s20 = sshll.u32 %s1, 4
      %s21 = int_to_ptr.hbm [resolvable:$true] %s20
      %s22 = sshll.u32 [#allocation2], 4
      %s23 = int_to_ptr.vmem [resolvable:$true] %s22
      %28 = dma.hbm_to_vmem [thread:$0]  %s21, 5120, %s23, [#allocation3], 256, 256, 16
    $region9: #{lenet_apply.1} parent=1 // pred_fallthru
      _
    // Predicated region
    $region10: #{lenet_apply.1} parent=1 // pred_check
      _
    $region11: #{lenet_apply.1} parent=1 // pred_check_branch
      %30 = sbr.rel (0) target = $region13
    $region12: #{lenet_apply.1} parent=1 // pred_region
      _
    $region13: #{lenet_apply.1} parent=1 // pred_fallthru
      _
    // Predicated region
    $region14: #{lenet_apply.1} parent=1 // pred_check
      _
    $region15: #{lenet_apply.1} parent=1 // pred_check_branch
      %32 = sbr.rel (0) target = $region17
    $region16: #{lenet_apply.1} parent=1 // pred_region
      %34 = vsyncadd [#allocation5], 0
      %s35 = sshll.u32 %s3, 4
      %s36 = int_to_ptr.hbm [resolvable:$true] %s35
      %s37 = sshll.u32 [#allocation4], 4
      %s38 = int_to_ptr.vmem [resolvable:$true] %s37
      %43 = dma.hbm_to_vmem [thread:$0]  %s36, 4096, %s38, [#allocation5], 128, 128, 8
    $region17: #{lenet_apply.1} parent=1 // pred_fallthru
      _
    // Predicated region
    $region18: #{lenet_apply.1} parent=1 // pred_check
      _
    $region19: #{lenet_apply.1} parent=1 // pred_check_branch
      %45 = sbr.rel (0) target = $region21
    $region20: #{lenet_apply.1} parent=1 // pred_region
      _
    $region21: #{lenet_apply.1} parent=1 // pred_fallthru
      _
    // Predicated region
    $region22: #{lenet_apply.1} parent=1 // pred_check
      _
    $region23: #{lenet_apply.1} parent=1 // pred_check_branch
      %47 = sbr.rel (0) target = $region25
    $region24: #{lenet_apply.1} parent=1 // pred_region
      %49 = vsyncadd [#allocation5], 0
      %s50 = sshll.u32 %s5, 4
      %s51 = int_to_ptr.hbm [resolvable:$true] %s50
      %s52 = sshll.u32 [#allocation6], 4
      %s53 = int_to_ptr.vmem [resolvable:$true] %s52
      %58 = dma.hbm_to_vmem [thread:$0]  %s51, 2048, %s53, [#allocation5], 128, 128, 8
    $region25: #{lenet_apply.1} parent=1 // pred_fallthru
      _
    // Predicated region
    $region26: #{lenet_apply.1} parent=1 // pred_check
      _
    $region27: #{lenet_apply.1} parent=1 // pred_check_branch
      %60 = sbr.rel (0) target = $region29
    $region28: #{lenet_apply.1} parent=1 // pred_region
      _
    $region29: #{lenet_apply.1} parent=1 // pred_fallthru
      _
    // Predicated region
    $region30: #{lenet_apply.1} parent=1 // pred_check
      _
    $region31: #{lenet_apply.1} parent=1 // pred_check_branch
      %62 = sbr.rel (0) target = $region33
    $region32: #{lenet_apply.1} parent=1 // pred_region
      %64 = dma.done [#allocation3], 5120
    $region33: #{lenet_apply.1} parent=1 // pred_fallthru
      _
    // Predicated region
    $region34: #{lenet_apply.1} parent=1 // pred_check
      _
    $region35: #{lenet_apply.1} parent=1 // pred_check_branch
      %66 = sbr.rel (0) target = $region37
    $region36: #{lenet_apply.1} parent=1 // pred_region
      %68 = dma.done [#allocation5], 4096
    $region37: #{lenet_apply.1} parent=1 // pred_fallthru
      _
    // Predicated region
    $region38: #{lenet_apply.1} parent=1 // pred_check
      _
    $region39: #{lenet_apply.1} parent=1 // pred_check_branch
      %70 = sbr.rel (0) target = $region41
    $region40: #{lenet_apply.1} parent=1 // pred_region
      %72 = dma.done [#allocation5], 2048
    $region41: #{lenet_apply.1} parent=1 // pred_fallthru
      _
    %v73 = vld [vmem:[%s0] sm:$0xff]
    %v74 = vld [vmem:[%s0 + $0x8] sm:$0xff]
    %v75 = vld [vmem:[%s0 + $0x10] sm:$0xff]
    %v76 = vld [vmem:[%s0 + $0x18] sm:$0xf]
    %v77 = vld [vmem:[%s0 + $0x20] sm:$0xff]
    %v78 = vld [vmem:[%s0 + $0x28] sm:$0xff]
    %v79 = vld [vmem:[%s0 + $0x30] sm:$0xff]
    %v80 = vld [vmem:[%s0 + $0x38] sm:$0xf]
    %v81 = vld [vmem:[%s0 + $0x40] sm:$0xff]
    %v82 = vld [vmem:[%s0 + $0x48] sm:$0xff]
    %v83 = vld [vmem:[%s0 + $0x50] sm:$0xff]
    %v84 = vld [vmem:[%s0 + $0x58] sm:$0xf]
    %v85 = vld [vmem:[%s0 + $0x60] sm:$0xff]
    %v86 = vld [vmem:[%s0 + $0x68] sm:$0xff]
    %v87 = vld [vmem:[%s0 + $0x70] sm:$0xff]
    %v88 = vld [vmem:[%s0 + $0x78] sm:$0xf]
    %v89 = vld [vmem:[%s0 + $0x80] sm:$0xff]
    %v90 = vld [vmem:[%s0 + $0x88] sm:$0xff]
    %v91 = vld [vmem:[%s0 + $0x90] sm:$0xff]
    %v92 = vld [vmem:[%s0 + $0x98] sm:$0xf]
    %v93 = vld [vmem:[%s0 + $0xa0] sm:$0xff]
    %v94 = vld [vmem:[%s0 + $0xa8] sm:$0xff]
    %v95 = vld [vmem:[%s0 + $0xb0] sm:$0xff]
    %v96 = vld [vmem:[%s0 + $0xb8] sm:$0xf]
    %v97 = vld [vmem:[%s0 + $0xc0] sm:$0xff]
    %v98 = vld [vmem:[%s0 + $0xc8] sm:$0xff]
    %v99 = vld [vmem:[%s0 + $0xd0] sm:$0xff]
    %v100 = vld [vmem:[%s0 + $0xd8] sm:$0xf]
    %v101 = vld [vmem:[%s0 + $0xe0] sm:$0xff]
    %v102 = vld [vmem:[%s0 + $0xe8] sm:$0xff]
    %v103 = vld [vmem:[%s0 + $0xf0] sm:$0xff]
    %v104 = vld [vmem:[%s0 + $0xf8] sm:$0xf]
    %v105 = vld [vmem:[#allocation2] sm:$0xff]
    %v106 = vld [vmem:[#allocation2 + $0x8] sm:$0xff]
    %v107 = vld [vmem:[#allocation2 + $0x10] sm:$0xff]
    %v108 = vld [vmem:[#allocation2 + $0x18] sm:$0xff]
    %v109 = vld [vmem:[#allocation2 + $0x20] sm:$0xff]
    %v110 = vld [vmem:[#allocation2 + $0x28] sm:$0xff]
    %v111 = vld [vmem:[#allocation2 + $0x30] sm:$0xf]
    %v112 = vld [vmem:[#allocation2 + $0x38] sm:$0xf]
    %vm145 = vcmask 1046528
    %v146 = vrot.slane %v73, 1
    %v147 = vrot.slane %v74, 1
    %v148 = vsel %vm145, %v146, %v147
    %v149 = vrot.slane %v75, 1
    %v150 = vsel %vm145, %v147, %v149
    %v151 = vrot.slane %v76, 1
    %v152 = vsel %vm145, %v149, %v151
    %v153 = vrot.slane %v77, 1
    %v154 = vrot.slane %v78, 1
    %v155 = vsel %vm145, %v153, %v154
    %v156 = vrot.slane %v79, 1
    %v157 = vsel %vm145, %v154, %v156
    %v158 = vrot.slane %v80, 1
    %v159 = vsel %vm145, %v156, %v158
    %v160 = vrot.slane %v81, 1
    %v161 = vrot.slane %v82, 1
    %v162 = vsel %vm145, %v160, %v161
    %v163 = vrot.slane %v83, 1
    %v164 = vsel %vm145, %v161, %v163
    %v165 = vrot.slane %v84, 1
    %v166 = vsel %vm145, %v163, %v165
    %v167 = vrot.slane %v85, 1
    %v168 = vrot.slane %v86, 1
    %v169 = vsel %vm145, %v167, %v168
    %v170 = vrot.slane %v87, 1
    %v171 = vsel %vm145, %v168, %v170
    %v172 = vrot.slane %v88, 1
    %v173 = vsel %vm145, %v170, %v172
    %v174 = vrot.slane %v89, 1
    %v175 = vrot.slane %v90, 1
    %v176 = vsel %vm145, %v174, %v175
    %v177 = vrot.slane %v91, 1
    %v178 = vsel %vm145, %v175, %v177
    %v179 = vrot.slane %v92, 1
    %v180 = vsel %vm145, %v177, %v179
    %v181 = vrot.slane %v93, 1
    %v182 = vrot.slane %v94, 1
    %v183 = vsel %vm145, %v181, %v182
    %v184 = vrot.slane %v95, 1
    %v185 = vsel %vm145, %v182, %v184
    %v186 = vrot.slane %v96, 1
    %v187 = vsel %vm145, %v184, %v186
    %v188 = vrot.slane %v97, 1
    %v189 = vrot.slane %v98, 1
    %v190 = vsel %vm145, %v188, %v189
    %v191 = vrot.slane %v99, 1
    %v192 = vsel %vm145, %v189, %v191
    %v193 = vrot.slane %v100, 1
    %v194 = vsel %vm145, %v191, %v193
    %v195 = vrot.slane %v101, 1
    %v196 = vrot.slane %v102, 1
    %v197 = vsel %vm145, %v195, %v196
    %v198 = vrot.slane %v103, 1
    %v199 = vsel %vm145, %v196, %v198
    %v200 = vrot.slane %v104, 1
    %v201 = vsel %vm145, %v198, %v200
    %s202 = scalar_lea.vmem [#allocation2], 64
    %v203 = vld [vmem:[%s202] sm:$0xff]
    %v204 = vld [vmem:[%s202 + $0x8] sm:$0xff]
    %v205 = vld [vmem:[%s202 + $0x10] sm:$0xff]
    %v206 = vld [vmem:[%s202 + $0x18] sm:$0xff]
    %v207 = vld [vmem:[%s202 + $0x20] sm:$0xff]
    %v208 = vld [vmem:[%s202 + $0x28] sm:$0xff]
    %v209 = vld [vmem:[%s202 + $0x30] sm:$0xf]
    %v210 = vld [vmem:[%s202 + $0x38] sm:$0xf]
    %vm211 = vcmask 228352
    %v212 = vsel %vm211, %v148, 0
    %v214 = vsel %vm211, %v150, 0
    %v216 = vsel %vm211, %v152, 0
    %v218 = vsel %vm211, %v155, 0
    %v220 = vsel %vm211, %v157, 0
    %v222 = vsel %vm211, %v159, 0
    %v224 = vsel %vm211, %v162, 0
    %v226 = vsel %vm211, %v164, 0
    %v228 = vsel %vm211, %v166, 0
    %v230 = vsel %vm211, %v169, 0
    %v232 = vsel %vm211, %v171, 0
    %v234 = vsel %vm211, %v173, 0
    %v236 = vsel %vm211, %v176, 0
    %v238 = vsel %vm211, %v178, 0
    %v240 = vsel %vm211, %v180, 0
    %v242 = vsel %vm211, %v183, 0
    %v244 = vsel %vm211, %v185, 0
    %v246 = vsel %vm211, %v187, 0
    %v248 = vsel %vm211, %v190, 0
    %v250 = vsel %vm211, %v192, 0
    %v252 = vsel %vm211, %v194, 0
    %v254 = vsel %vm211, %v197, 0
    %v256 = vsel %vm211, %v199, 0
    %v258 = vsel %vm211, %v201, 0
    %vm260 = vcmask 1043456
    %v262 = vsel %vm260, %v209, 0
    %v265 = vsel %vm260, %v210, 0
    %267 = vmatpush.msra.mxu0 0.0
    %268 = vmatpush.msra.mxu0 0.0
    %269 = vmatpush.msra.mxu0 0.0
    %270 = vmatpush.msra.mxu0 0.0
    %271 = vmatpush.msra.mxu0 0.0
    %272 = vmatpush.msra.mxu0 0.0
    %273 = vmatpush.msra.mxu0 0.0
    %274 = vmatpush.msra.mxu0 0.0
    %275 = vmatpush.msra.mxu0 0.0
    %276 = vmatpush.msra.mxu0 0.0
    %277 = vmatpush.msra.mxu0 0.0
    %278 = vmatpush.msra.mxu0 0.0
    %279 = vmatpush.msra.mxu0 %v262
    %280 = vmatpush.msra.mxu0 %v207
    %281 = vmatpush.msra.mxu0 %v205
    %282 = vmatpush.msra.mxu0 %v203
    %283 = vmatmul.f32.gmra.mxu0 %v212
    %v284 = vpop.f32.mrf.mxu0
    %v285 = vadd.f32 0.0, %v284
    %286 = vmatmul.f32.gmra.mxu0 %v214
    %v287 = vpop.f32.mrf.mxu0
    %v288 = vadd.f32 0.0, %v287
    %289 = vmatmul.f32.gmra.mxu0 %v216
    %v290 = vpop.f32.mrf.mxu0
    %v291 = vadd.f32 0.0, %v290
    %292 = vmatmul.f32.gmra.mxu0 %v218
    %v293 = vpop.f32.mrf.mxu0
    %v294 = vadd.f32 0.0, %v293
    %295 = vmatmul.f32.gmra.mxu0 %v220
    %v296 = vpop.f32.mrf.mxu0
    %v297 = vadd.f32 0.0, %v296
    %298 = vmatmul.f32.gmra.mxu0 %v222
    %v299 = vpop.f32.mrf.mxu0
    %v300 = vadd.f32 0.0, %v299
    %301 = vmatmul.f32.gmra.mxu0 %v224
    %v302 = vpop.f32.mrf.mxu0
    %v303 = vadd.f32 0.0, %v302
    %304 = vmatmul.f32.gmra.mxu0 %v226
    %v305 = vpop.f32.mrf.mxu0
    %v306 = vadd.f32 0.0, %v305
    %307 = vmatmul.f32.gmra.mxu0 %v228
    %v308 = vpop.f32.mrf.mxu0
    %v309 = vadd.f32 0.0, %v308
    %310 = vmatmul.f32.gmra.mxu0 %v230
    %v311 = vpop.f32.mrf.mxu0
    %v312 = vadd.f32 0.0, %v311
    %313 = vmatmul.f32.gmra.mxu0 %v232
    %v314 = vpop.f32.mrf.mxu0
    %v315 = vadd.f32 0.0, %v314
    %316 = vmatmul.f32.gmra.mxu0 %v234
    %v317 = vpop.f32.mrf.mxu0
    %v318 = vadd.f32 0.0, %v317
    %319 = vmatmul.f32.gmra.mxu0 %v236
    %v320 = vpop.f32.mrf.mxu0
    %v321 = vadd.f32 0.0, %v320
    %322 = vmatmul.f32.gmra.mxu0 %v238
    %v323 = vpop.f32.mrf.mxu0
    %v324 = vadd.f32 0.0, %v323
    %325 = vmatmul.f32.gmra.mxu0 %v240
    %v326 = vpop.f32.mrf.mxu0
    %v327 = vadd.f32 0.0, %v326
    %328 = vmatmul.f32.gmra.mxu0 %v242
    %v329 = vpop.f32.mrf.mxu0
    %v330 = vadd.f32 0.0, %v329
    %331 = vmatmul.f32.gmra.mxu0 %v244
    %v332 = vpop.f32.mrf.mxu0
    %v333 = vadd.f32 0.0, %v332
    %334 = vmatmul.f32.gmra.mxu0 %v246
    %v335 = vpop.f32.mrf.mxu0
    %v336 = vadd.f32 0.0, %v335
    %337 = vmatmul.f32.gmra.mxu0 %v248
    %v338 = vpop.f32.mrf.mxu0
    %v339 = vadd.f32 0.0, %v338
    %340 = vmatmul.f32.gmra.mxu0 %v250
    %v341 = vpop.f32.mrf.mxu0
    %v342 = vadd.f32 0.0, %v341
    %343 = vmatmul.f32.gmra.mxu0 %v252
    %v344 = vpop.f32.mrf.mxu0
    %v345 = vadd.f32 0.0, %v344
    %346 = vmatmul.f32.gmra.mxu0 %v254
    %v347 = vpop.f32.mrf.mxu0
    %v348 = vadd.f32 0.0, %v347
    %349 = vmatmul.f32.gmra.mxu0 %v256
    %v350 = vpop.f32.mrf.mxu0
    %v351 = vadd.f32 0.0, %v350
    %352 = vmatmul.f32.gmra.mxu0 %v258
    %v353 = vpop.f32.mrf.mxu0
    %v354 = vadd.f32 0.0, %v353
    %355 = vdwg.mxu0
    %356 = vmatpush.msra.mxu0 0.0
    %357 = vmatpush.msra.mxu0 0.0
    %358 = vmatpush.msra.mxu0 0.0
    %359 = vmatpush.msra.mxu0 0.0
    %360 = vmatpush.msra.mxu0 0.0
    %361 = vmatpush.msra.mxu0 0.0
    %362 = vmatpush.msra.mxu0 0.0
    %363 = vmatpush.msra.mxu0 0.0
    %364 = vmatpush.msra.mxu0 0.0
    %365 = vmatpush.msra.mxu0 0.0
    %366 = vmatpush.msra.mxu0 0.0
    %367 = vmatpush.msra.mxu0 0.0
    %368 = vmatpush.msra.mxu0 %v265
    %369 = vmatpush.msra.mxu0 %v208
    %370 = vmatpush.msra.mxu0 %v206
    %371 = vmatpush.msra.mxu0 %v204
    %372 = vmatmul.f32.gmra.mxu0 %v212
    %v373 = vpop.f32.mrf.mxu0
    %v374 = vadd.f32 0.0, %v373
    %375 = vmatmul.f32.gmra.mxu0 %v214
    %v376 = vpop.f32.mrf.mxu0
    %v377 = vadd.f32 0.0, %v376
    %378 = vmatmul.f32.gmra.mxu0 %v216
    %v379 = vpop.f32.mrf.mxu0
    %v380 = vadd.f32 0.0, %v379
    %381 = vmatmul.f32.gmra.mxu0 %v218
    %v382 = vpop.f32.mrf.mxu0
    %v383 = vadd.f32 0.0, %v382
    %384 = vmatmul.f32.gmra.mxu0 %v220
    %v385 = vpop.f32.mrf.mxu0
    %v386 = vadd.f32 0.0, %v385
    %387 = vmatmul.f32.gmra.mxu0 %v222
    %v388 = vpop.f32.mrf.mxu0
    %v389 = vadd.f32 0.0, %v388
    %390 = vmatmul.f32.gmra.mxu0 %v224
    %v391 = vpop.f32.mrf.mxu0
    %v392 = vadd.f32 0.0, %v391
    %393 = vmatmul.f32.gmra.mxu0 %v226
    %v394 = vpop.f32.mrf.mxu0
    %v395 = vadd.f32 0.0, %v394
    %396 = vmatmul.f32.gmra.mxu0 %v228
    %v397 = vpop.f32.mrf.mxu0
    %v398 = vadd.f32 0.0, %v397
    %399 = vmatmul.f32.gmra.mxu0 %v230
    %v400 = vpop.f32.mrf.mxu0
    %v401 = vadd.f32 0.0, %v400
    %402 = vmatmul.f32.gmra.mxu0 %v232
    %v403 = vpop.f32.mrf.mxu0
    %v404 = vadd.f32 0.0, %v403
    %405 = vmatmul.f32.gmra.mxu0 %v234
    %v406 = vpop.f32.mrf.mxu0
    %v407 = vadd.f32 0.0, %v406
    %408 = vmatmul.f32.gmra.mxu0 %v236
    %v409 = vpop.f32.mrf.mxu0
    %v410 = vadd.f32 0.0, %v409
    %411 = vmatmul.f32.gmra.mxu0 %v238
    %v412 = vpop.f32.mrf.mxu0
    %v413 = vadd.f32 0.0, %v412
    %414 = vmatmul.f32.gmra.mxu0 %v240
    %v415 = vpop.f32.mrf.mxu0
    %v416 = vadd.f32 0.0, %v415
    %417 = vmatmul.f32.gmra.mxu0 %v242
    %v418 = vpop.f32.mrf.mxu0
    %v419 = vadd.f32 0.0, %v418
    %420 = vmatmul.f32.gmra.mxu0 %v244
    %v421 = vpop.f32.mrf.mxu0
    %v422 = vadd.f32 0.0, %v421
    %423 = vmatmul.f32.gmra.mxu0 %v246
    %v424 = vpop.f32.mrf.mxu0
    %v425 = vadd.f32 0.0, %v424
    %426 = vmatmul.f32.gmra.mxu0 %v248
    %v427 = vpop.f32.mrf.mxu0
    %v428 = vadd.f32 0.0, %v427
    %429 = vmatmul.f32.gmra.mxu0 %v250
    %v430 = vpop.f32.mrf.mxu0
    %v431 = vadd.f32 0.0, %v430
    %432 = vmatmul.f32.gmra.mxu0 %v252
    %v433 = vpop.f32.mrf.mxu0
    %v434 = vadd.f32 0.0, %v433
    %435 = vmatmul.f32.gmra.mxu0 %v254
    %v436 = vpop.f32.mrf.mxu0
    %v437 = vadd.f32 0.0, %v436
    %438 = vmatmul.f32.gmra.mxu0 %v256
    %v439 = vpop.f32.mrf.mxu0
    %v440 = vadd.f32 0.0, %v439
    %441 = vmatmul.f32.gmra.mxu0 %v258
    %v442 = vpop.f32.mrf.mxu0
    %v443 = vadd.f32 0.0, %v442
    %444 = vdwg.mxu0
    %v445 = vsel %vm211, %v73, 0
    %v447 = vsel %vm211, %v74, 0
    %v449 = vsel %vm211, %v75, 0
    %v451 = vsel %vm211, %v77, 0
    %v453 = vsel %vm211, %v78, 0
    %v455 = vsel %vm211, %v79, 0
    %v457 = vsel %vm211, %v81, 0
    %v459 = vsel %vm211, %v82, 0
    %v461 = vsel %vm211, %v83, 0
    %v463 = vsel %vm211, %v85, 0
    %v465 = vsel %vm211, %v86, 0
    %v467 = vsel %vm211, %v87, 0
    %v469 = vsel %vm211, %v89, 0
    %v471 = vsel %vm211, %v90, 0
    %v473 = vsel %vm211, %v91, 0
    %v475 = vsel %vm211, %v93, 0
    %v477 = vsel %vm211, %v94, 0
    %v479 = vsel %vm211, %v95, 0
    %v481 = vsel %vm211, %v97, 0
    %v483 = vsel %vm211, %v98, 0
    %v485 = vsel %vm211, %v99, 0
    %v487 = vsel %vm211, %v101, 0
    %v489 = vsel %vm211, %v102, 0
    %v491 = vsel %vm211, %v103, 0
    %v494 = vsel %vm260, %v111, 0
    %v497 = vsel %vm260, %v112, 0
    %499 = vmatpush.msra.mxu0 0.0
    %500 = vmatpush.msra.mxu0 0.0
    %501 = vmatpush.msra.mxu0 0.0
    %502 = vmatpush.msra.mxu0 0.0
    %503 = vmatpush.msra.mxu0 0.0
    %504 = vmatpush.msra.mxu0 0.0
    %505 = vmatpush.msra.mxu0 0.0
    %506 = vmatpush.msra.mxu0 0.0
    %507 = vmatpush.msra.mxu0 0.0
    %508 = vmatpush.msra.mxu0 0.0
    %509 = vmatpush.msra.mxu0 0.0
    %510 = vmatpush.msra.mxu0 0.0
    %511 = vmatpush.msra.mxu0 %v494
    %512 = vmatpush.msra.mxu0 %v109
    %513 = vmatpush.msra.mxu0 %v107
    %514 = vmatpush.msra.mxu0 %v105
    %515 = vmatmul.f32.gmra.mxu0 %v445
    %v516 = vpop.f32.mrf.mxu0
    %v517 = vadd.f32 %v285, %v516
    %518 = vmatmul.f32.gmra.mxu0 %v447
    %v519 = vpop.f32.mrf.mxu0
    %v520 = vadd.f32 %v288, %v519
    %521 = vmatmul.f32.gmra.mxu0 %v449
    %v522 = vpop.f32.mrf.mxu0
    %v523 = vadd.f32 %v291, %v522
    %524 = vmatmul.f32.gmra.mxu0 %v451
    %v525 = vpop.f32.mrf.mxu0
    %v526 = vadd.f32 %v294, %v525
    %527 = vmatmul.f32.gmra.mxu0 %v453
    %v528 = vpop.f32.mrf.mxu0
    %v529 = vadd.f32 %v297, %v528
    %530 = vmatmul.f32.gmra.mxu0 %v455
    %v531 = vpop.f32.mrf.mxu0
    %v532 = vadd.f32 %v300, %v531
    %533 = vmatmul.f32.gmra.mxu0 %v457
    %v534 = vpop.f32.mrf.mxu0
    %v535 = vadd.f32 %v303, %v534
    %536 = vmatmul.f32.gmra.mxu0 %v459
    %v537 = vpop.f32.mrf.mxu0
    %v538 = vadd.f32 %v306, %v537
    %539 = vmatmul.f32.gmra.mxu0 %v461
    %v540 = vpop.f32.mrf.mxu0
    %v541 = vadd.f32 %v309, %v540
    %542 = vmatmul.f32.gmra.mxu0 %v463
    %v543 = vpop.f32.mrf.mxu0
    %v544 = vadd.f32 %v312, %v543
    %545 = vmatmul.f32.gmra.mxu0 %v465
    %v546 = vpop.f32.mrf.mxu0
    %v547 = vadd.f32 %v315, %v546
    %548 = vmatmul.f32.gmra.mxu0 %v467
    %v549 = vpop.f32.mrf.mxu0
    %v550 = vadd.f32 %v318, %v549
    %551 = vmatmul.f32.gmra.mxu0 %v469
    %v552 = vpop.f32.mrf.mxu0
    %v553 = vadd.f32 %v321, %v552
    %554 = vmatmul.f32.gmra.mxu0 %v471
    %v555 = vpop.f32.mrf.mxu0
    %v556 = vadd.f32 %v324, %v555
    %557 = vmatmul.f32.gmra.mxu0 %v473
    %v558 = vpop.f32.mrf.mxu0
    %v559 = vadd.f32 %v327, %v558
    %560 = vmatmul.f32.gmra.mxu0 %v475
    %v561 = vpop.f32.mrf.mxu0
    %v562 = vadd.f32 %v330, %v561
    %563 = vmatmul.f32.gmra.mxu0 %v477
    %v564 = vpop.f32.mrf.mxu0
    %v565 = vadd.f32 %v333, %v564
    %566 = vmatmul.f32.gmra.mxu0 %v479
    %v567 = vpop.f32.mrf.mxu0
    %v568 = vadd.f32 %v336, %v567
    %569 = vmatmul.f32.gmra.mxu0 %v481
    %v570 = vpop.f32.mrf.mxu0
    %v571 = vadd.f32 %v339, %v570
    %572 = vmatmul.f32.gmra.mxu0 %v483
    %v573 = vpop.f32.mrf.mxu0
    %v574 = vadd.f32 %v342, %v573
    %575 = vmatmul.f32.gmra.mxu0 %v485
    %v576 = vpop.f32.mrf.mxu0
    %v577 = vadd.f32 %v345, %v576
    %578 = vmatmul.f32.gmra.mxu0 %v487
    %v579 = vpop.f32.mrf.mxu0
    %v580 = vadd.f32 %v348, %v579
    %581 = vmatmul.f32.gmra.mxu0 %v489
    %v582 = vpop.f32.mrf.mxu0
    %v583 = vadd.f32 %v351, %v582
    %584 = vmatmul.f32.gmra.mxu0 %v491
    %v585 = vpop.f32.mrf.mxu0
    %v586 = vadd.f32 %v354, %v585
    %587 = vdwg.mxu0
    %588 = vmatpush.msra.mxu0 0.0
    %589 = vmatpush.msra.mxu0 0.0
    %590 = vmatpush.msra.mxu0 0.0
    %591 = vmatpush.msra.mxu0 0.0
    %592 = vmatpush.msra.mxu0 0.0
    %593 = vmatpush.msra.mxu0 0.0
    %594 = vmatpush.msra.mxu0 0.0
    %595 = vmatpush.msra.mxu0 0.0
    %596 = vmatpush.msra.mxu0 0.0
    %597 = vmatpush.msra.mxu0 0.0
    %598 = vmatpush.msra.mxu0 0.0
    %599 = vmatpush.msra.mxu0 0.0
    %600 = vmatpush.msra.mxu0 %v497
    %601 = vmatpush.msra.mxu0 %v110
    %602 = vmatpush.msra.mxu0 %v108
    %603 = vmatpush.msra.mxu0 %v106
    %604 = vmatmul.f32.gmra.mxu0 %v445
    %v605 = vpop.f32.mrf.mxu0
    %v606 = vadd.f32 %v374, %v605
    %607 = vmatmul.f32.gmra.mxu0 %v447
    %v608 = vpop.f32.mrf.mxu0
    %v609 = vadd.f32 %v377, %v608
    %610 = vmatmul.f32.gmra.mxu0 %v449
    %v611 = vpop.f32.mrf.mxu0
    %v612 = vadd.f32 %v380, %v611
    %613 = vmatmul.f32.gmra.mxu0 %v451
    %v614 = vpop.f32.mrf.mxu0
    %v615 = vadd.f32 %v383, %v614
    %616 = vmatmul.f32.gmra.mxu0 %v453
    %v617 = vpop.f32.mrf.mxu0
    %v618 = vadd.f32 %v386, %v617
    %619 = vmatmul.f32.gmra.mxu0 %v455
    %v620 = vpop.f32.mrf.mxu0
    %v621 = vadd.f32 %v389, %v620
    %622 = vmatmul.f32.gmra.mxu0 %v457
    %v623 = vpop.f32.mrf.mxu0
    %v624 = vadd.f32 %v392, %v623
    %625 = vmatmul.f32.gmra.mxu0 %v459
    %v626 = vpop.f32.mrf.mxu0
    %v627 = vadd.f32 %v395, %v626
    %628 = vmatmul.f32.gmra.mxu0 %v461
    %v629 = vpop.f32.mrf.mxu0
    %v630 = vadd.f32 %v398, %v629
    %631 = vmatmul.f32.gmra.mxu0 %v463
    %v632 = vpop.f32.mrf.mxu0
    %v633 = vadd.f32 %v401, %v632
    %634 = vmatmul.f32.gmra.mxu0 %v465
    %v635 = vpop.f32.mrf.mxu0
    %v636 = vadd.f32 %v404, %v635
    %637 = vmatmul.f32.gmra.mxu0 %v467
    %v638 = vpop.f32.mrf.mxu0
    %v639 = vadd.f32 %v407, %v638
    %640 = vmatmul.f32.gmra.mxu0 %v469
    %v641 = vpop.f32.mrf.mxu0
    %v642 = vadd.f32 %v410, %v641
    %643 = vmatmul.f32.gmra.mxu0 %v471
    %v644 = vpop.f32.mrf.mxu0
    %v645 = vadd.f32 %v413, %v644
    %646 = vmatmul.f32.gmra.mxu0 %v473
    %v647 = vpop.f32.mrf.mxu0
    %v648 = vadd.f32 %v416, %v647
    %649 = vmatmul.f32.gmra.mxu0 %v475
    %v650 = vpop.f32.mrf.mxu0
    %v651 = vadd.f32 %v419, %v650
    %652 = vmatmul.f32.gmra.mxu0 %v477
    %v653 = vpop.f32.mrf.mxu0
    %v654 = vadd.f32 %v422, %v653
    %655 = vmatmul.f32.gmra.mxu0 %v479
    %v656 = vpop.f32.mrf.mxu0
    %v657 = vadd.f32 %v425, %v656
    %658 = vmatmul.f32.gmra.mxu0 %v481
    %v659 = vpop.f32.mrf.mxu0
    %v660 = vadd.f32 %v428, %v659
    %661 = vmatmul.f32.gmra.mxu0 %v483
    %v662 = vpop.f32.mrf.mxu0
    %v663 = vadd.f32 %v431, %v662
    %664 = vmatmul.f32.gmra.mxu0 %v485
    %v665 = vpop.f32.mrf.mxu0
    %v666 = vadd.f32 %v434, %v665
    %667 = vmatmul.f32.gmra.mxu0 %v487
    %v668 = vpop.f32.mrf.mxu0
    %v669 = vadd.f32 %v437, %v668
    %670 = vmatmul.f32.gmra.mxu0 %v489
    %v671 = vpop.f32.mrf.mxu0
    %v672 = vadd.f32 %v440, %v671
    %673 = vmatmul.f32.gmra.mxu0 %v491
    %v674 = vpop.f32.mrf.mxu0
    %v675 = vadd.f32 %v443, %v674
    %676 = vdwg.mxu0
    %vm677 = vcmask 1045504
    %v678 = vrot.slane %v73, 2
    %v679 = vrot.slane %v74, 2
    %v680 = vsel %vm677, %v678, %v679
    %v681 = vrot.slane %v75, 2
    %v682 = vsel %vm677, %v679, %v681
    %v683 = vrot.slane %v76, 2
    %v684 = vsel %vm677, %v681, %v683
    %v685 = vrot.slane %v77, 2
    %v686 = vrot.slane %v78, 2
    %v687 = vsel %vm677, %v685, %v686
    %v688 = vrot.slane %v79, 2
    %v689 = vsel %vm677, %v686, %v688
    %v690 = vrot.slane %v80, 2
    %v691 = vsel %vm677, %v688, %v690
    %v692 = vrot.slane %v81, 2
    %v693 = vrot.slane %v82, 2
    %v694 = vsel %vm677, %v692, %v693
    %v695 = vrot.slane %v83, 2
    %v696 = vsel %vm677, %v693, %v695
    %v697 = vrot.slane %v84, 2
    %v698 = vsel %vm677, %v695, %v697
    %v699 = vrot.slane %v85, 2
    %v700 = vrot.slane %v86, 2
    %v701 = vsel %vm677, %v699, %v700
    %v702 = vrot.slane %v87, 2
    %v703 = vsel %vm677, %v700, %v702
    %v704 = vrot.slane %v88, 2
    %v705 = vsel %vm677, %v702, %v704
    %v706 = vrot.slane %v89, 2
    %v707 = vrot.slane %v90, 2
    %v708 = vsel %vm677, %v706, %v707
    %v709 = vrot.slane %v91, 2
    %v710 = vsel %vm677, %v707, %v709
    %v711 = vrot.slane %v92, 2
    %v712 = vsel %vm677, %v709, %v711
    %v713 = vrot.slane %v93, 2
    %v714 = vrot.slane %v94, 2
    %v715 = vsel %vm677, %v713, %v714
    %v716 = vrot.slane %v95, 2
    %v717 = vsel %vm677, %v714, %v716
    %v718 = vrot.slane %v96, 2
    %v719 = vsel %vm677, %v716, %v718
    %v720 = vrot.slane %v97, 2
    %v721 = vrot.slane %v98, 2
    %v722 = vsel %vm677, %v720, %v721
    %v723 = vrot.slane %v99, 2
    %v724 = vsel %vm677, %v721, %v723
    %v725 = vrot.slane %v100, 2
    %v726 = vsel %vm677, %v723, %v725
    %v727 = vrot.slane %v101, 2
    %v728 = vrot.slane %v102, 2
    %v729 = vsel %vm677, %v727, %v728
    %v730 = vrot.slane %v103, 2
    %v731 = vsel %vm677, %v728, %v730
    %v732 = vrot.slane %v104, 2
    %v733 = vsel %vm677, %v730, %v732
    %s734 = scalar_lea.vmem [#allocation2], 128
    %v735 = vld [vmem:[%s734] sm:$0xff]
    %v736 = vld [vmem:[%s734 + $0x8] sm:$0xff]
    %v737 = vld [vmem:[%s734 + $0x10] sm:$0xff]
    %v738 = vld [vmem:[%s734 + $0x18] sm:$0xff]
    %v739 = vld [vmem:[%s734 + $0x20] sm:$0xff]
    %v740 = vld [vmem:[%s734 + $0x28] sm:$0xff]
    %v741 = vld [vmem:[%s734 + $0x30] sm:$0xf]
    %v742 = vld [vmem:[%s734 + $0x38] sm:$0xf]
    %v743 = vsel %vm211, %v680, 0
    %v745 = vsel %vm211, %v682, 0
    %v747 = vsel %vm211, %v684, 0
    %v749 = vsel %vm211, %v687, 0
    %v751 = vsel %vm211, %v689, 0
    %v753 = vsel %vm211, %v691, 0
    %v755 = vsel %vm211, %v694, 0
    %v757 = vsel %vm211, %v696, 0
    %v759 = vsel %vm211, %v698, 0
    %v761 = vsel %vm211, %v701, 0
    %v763 = vsel %vm211, %v703, 0
    %v765 = vsel %vm211, %v705, 0
    %v767 = vsel %vm211, %v708, 0
    %v769 = vsel %vm211, %v710, 0
    %v771 = vsel %vm211, %v712, 0
    %v773 = vsel %vm211, %v715, 0
    %v775 = vsel %vm211, %v717, 0
    %v777 = vsel %vm211, %v719, 0
    %v779 = vsel %vm211, %v722, 0
    %v781 = vsel %vm211, %v724, 0
    %v783 = vsel %vm211, %v726, 0
    %v785 = vsel %vm211, %v729, 0
    %v787 = vsel %vm211, %v731, 0
    %v789 = vsel %vm211, %v733, 0
    %v792 = vsel %vm260, %v741, 0
    %v795 = vsel %vm260, %v742, 0
    %797 = vmatpush.msra.mxu0 0.0
    %798 = vmatpush.msra.mxu0 0.0
    %799 = vmatpush.msra.mxu0 0.0
    %800 = vmatpush.msra.mxu0 0.0
    %801 = vmatpush.msra.mxu0 0.0
    %802 = vmatpush.msra.mxu0 0.0
    %803 = vmatpush.msra.mxu0 0.0
    %804 = vmatpush.msra.mxu0 0.0
    %805 = vmatpush.msra.mxu0 0.0
    %806 = vmatpush.msra.mxu0 0.0
    %807 = vmatpush.msra.mxu0 0.0
    %808 = vmatpush.msra.mxu0 0.0
    %809 = vmatpush.msra.mxu0 %v792
    %810 = vmatpush.msra.mxu0 %v739
    %811 = vmatpush.msra.mxu0 %v737
    %812 = vmatpush.msra.mxu0 %v735
    %813 = vmatmul.f32.gmra.mxu0 %v743
    %v814 = vpop.f32.mrf.mxu0
    %v815 = vadd.f32 0.0, %v814
    %816 = vmatmul.f32.gmra.mxu0 %v745
    %v817 = vpop.f32.mrf.mxu0
    %v818 = vadd.f32 0.0, %v817
    %819 = vmatmul.f32.gmra.mxu0 %v747
    %v820 = vpop.f32.mrf.mxu0
    %v821 = vadd.f32 0.0, %v820
    %822 = vmatmul.f32.gmra.mxu0 %v749
    %v823 = vpop.f32.mrf.mxu0
    %v824 = vadd.f32 0.0, %v823
    %825 = vmatmul.f32.gmra.mxu0 %v751
    %v826 = vpop.f32.mrf.mxu0
    %v827 = vadd.f32 0.0, %v826
    %828 = vmatmul.f32.gmra.mxu0 %v753
    %v829 = vpop.f32.mrf.mxu0
    %v830 = vadd.f32 0.0, %v829
    %831 = vmatmul.f32.gmra.mxu0 %v755
    %v832 = vpop.f32.mrf.mxu0
    %v833 = vadd.f32 0.0, %v832
    %834 = vmatmul.f32.gmra.mxu0 %v757
    %v835 = vpop.f32.mrf.mxu0
    %v836 = vadd.f32 0.0, %v835
    %837 = vmatmul.f32.gmra.mxu0 %v759
    %v838 = vpop.f32.mrf.mxu0
    %v839 = vadd.f32 0.0, %v838
    %840 = vmatmul.f32.gmra.mxu0 %v761
    %v841 = vpop.f32.mrf.mxu0
    %v842 = vadd.f32 0.0, %v841
    %843 = vmatmul.f32.gmra.mxu0 %v763
    %v844 = vpop.f32.mrf.mxu0
    %v845 = vadd.f32 0.0, %v844
    %846 = vmatmul.f32.gmra.mxu0 %v765
    %v847 = vpop.f32.mrf.mxu0
    %v848 = vadd.f32 0.0, %v847
    %849 = vmatmul.f32.gmra.mxu0 %v767
    %v850 = vpop.f32.mrf.mxu0
    %v851 = vadd.f32 0.0, %v850
    %852 = vmatmul.f32.gmra.mxu0 %v769
    %v853 = vpop.f32.mrf.mxu0
    %v854 = vadd.f32 0.0, %v853
    %855 = vmatmul.f32.gmra.mxu0 %v771
    %v856 = vpop.f32.mrf.mxu0
    %v857 = vadd.f32 0.0, %v856
    %858 = vmatmul.f32.gmra.mxu0 %v773
    %v859 = vpop.f32.mrf.mxu0
    %v860 = vadd.f32 0.0, %v859
    %861 = vmatmul.f32.gmra.mxu0 %v775
    %v862 = vpop.f32.mrf.mxu0
    %v863 = vadd.f32 0.0, %v862
    %864 = vmatmul.f32.gmra.mxu0 %v777
    %v865 = vpop.f32.mrf.mxu0
    %v866 = vadd.f32 0.0, %v865
    %867 = vmatmul.f32.gmra.mxu0 %v779
    %v868 = vpop.f32.mrf.mxu0
    %v869 = vadd.f32 0.0, %v868
    %870 = vmatmul.f32.gmra.mxu0 %v781
    %v871 = vpop.f32.mrf.mxu0
    %v872 = vadd.f32 0.0, %v871
    %873 = vmatmul.f32.gmra.mxu0 %v783
    %v874 = vpop.f32.mrf.mxu0
    %v875 = vadd.f32 0.0, %v874
    %876 = vmatmul.f32.gmra.mxu0 %v785
    %v877 = vpop.f32.mrf.mxu0
    %v878 = vadd.f32 0.0, %v877
    %879 = vmatmul.f32.gmra.mxu0 %v787
    %v880 = vpop.f32.mrf.mxu0
    %v881 = vadd.f32 0.0, %v880
    %882 = vmatmul.f32.gmra.mxu0 %v789
    %v883 = vpop.f32.mrf.mxu0
    %v884 = vadd.f32 0.0, %v883
    %885 = vdwg.mxu0
    %886 = vmatpush.msra.mxu0 0.0
    %887 = vmatpush.msra.mxu0 0.0
    %888 = vmatpush.msra.mxu0 0.0
    %889 = vmatpush.msra.mxu0 0.0
    %890 = vmatpush.msra.mxu0 0.0
    %891 = vmatpush.msra.mxu0 0.0
    %892 = vmatpush.msra.mxu0 0.0
    %893 = vmatpush.msra.mxu0 0.0
    %894 = vmatpush.msra.mxu0 0.0
    %895 = vmatpush.msra.mxu0 0.0
    %896 = vmatpush.msra.mxu0 0.0
    %897 = vmatpush.msra.mxu0 0.0
    %898 = vmatpush.msra.mxu0 %v795
    %899 = vmatpush.msra.mxu0 %v740
    %900 = vmatpush.msra.mxu0 %v738
    %901 = vmatpush.msra.mxu0 %v736
    %902 = vmatmul.f32.gmra.mxu0 %v743
    %v903 = vpop.f32.mrf.mxu0
    %v904 = vadd.f32 0.0, %v903
    %905 = vmatmul.f32.gmra.mxu0 %v745
    %v906 = vpop.f32.mrf.mxu0
    %v907 = vadd.f32 0.0, %v906
    %908 = vmatmul.f32.gmra.mxu0 %v747
    %v909 = vpop.f32.mrf.mxu0
    %v910 = vadd.f32 0.0, %v909
    %911 = vmatmul.f32.gmra.mxu0 %v749
    %v912 = vpop.f32.mrf.mxu0
    %v913 = vadd.f32 0.0, %v912
    %914 = vmatmul.f32.gmra.mxu0 %v751
    %v915 = vpop.f32.mrf.mxu0
    %v916 = vadd.f32 0.0, %v915
    %917 = vmatmul.f32.gmra.mxu0 %v753
    %v918 = vpop.f32.mrf.mxu0
    %v919 = vadd.f32 0.0, %v918
    %920 = vmatmul.f32.gmra.mxu0 %v755
    %v921 = vpop.f32.mrf.mxu0
    %v922 = vadd.f32 0.0, %v921
    %923 = vmatmul.f32.gmra.mxu0 %v757
    %v924 = vpop.f32.mrf.mxu0
    %v925 = vadd.f32 0.0, %v924
    %926 = vmatmul.f32.gmra.mxu0 %v759
    %v927 = vpop.f32.mrf.mxu0
    %v928 = vadd.f32 0.0, %v927
    %929 = vmatmul.f32.gmra.mxu0 %v761
    %v930 = vpop.f32.mrf.mxu0
    %v931 = vadd.f32 0.0, %v930
    %932 = vmatmul.f32.gmra.mxu0 %v763
    %v933 = vpop.f32.mrf.mxu0
    %v934 = vadd.f32 0.0, %v933
    %935 = vmatmul.f32.gmra.mxu0 %v765
    %v936 = vpop.f32.mrf.mxu0
    %v937 = vadd.f32 0.0, %v936
    %938 = vmatmul.f32.gmra.mxu0 %v767
    %v939 = vpop.f32.mrf.mxu0
    %v940 = vadd.f32 0.0, %v939
    %941 = vmatmul.f32.gmra.mxu0 %v769
    %v942 = vpop.f32.mrf.mxu0
    %v943 = vadd.f32 0.0, %v942
    %944 = vmatmul.f32.gmra.mxu0 %v771
    %v945 = vpop.f32.mrf.mxu0
    %v946 = vadd.f32 0.0, %v945
    %947 = vmatmul.f32.gmra.mxu0 %v773
    %v948 = vpop.f32.mrf.mxu0
    %v949 = vadd.f32 0.0, %v948
    %950 = vmatmul.f32.gmra.mxu0 %v775
    %v951 = vpop.f32.mrf.mxu0
    %v952 = vadd.f32 0.0, %v951
    %953 = vmatmul.f32.gmra.mxu0 %v777
    %v954 = vpop.f32.mrf.mxu0
    %v955 = vadd.f32 0.0, %v954
    %956 = vmatmul.f32.gmra.mxu0 %v779
    %v957 = vpop.f32.mrf.mxu0
    %v958 = vadd.f32 0.0, %v957
    %959 = vmatmul.f32.gmra.mxu0 %v781
    %v960 = vpop.f32.mrf.mxu0
    %v961 = vadd.f32 0.0, %v960
    %962 = vmatmul.f32.gmra.mxu0 %v783
    %v963 = vpop.f32.mrf.mxu0
    %v964 = vadd.f32 0.0, %v963
    %965 = vmatmul.f32.gmra.mxu0 %v785
    %v966 = vpop.f32.mrf.mxu0
    %v967 = vadd.f32 0.0, %v966
    %968 = vmatmul.f32.gmra.mxu0 %v787
    %v969 = vpop.f32.mrf.mxu0
    %v970 = vadd.f32 0.0, %v969
    %971 = vmatmul.f32.gmra.mxu0 %v789
    %v972 = vpop.f32.mrf.mxu0
    %v973 = vadd.f32 0.0, %v972
    %974 = vdwg.mxu0
    %v975 = vadd.f32 %v517, %v815
    %v976 = vadd.f32 %v606, %v904
    %v977 = vadd.f32 %v520, %v818
    %v978 = vadd.f32 %v609, %v907
    %v979 = vadd.f32 %v523, %v821
    %v980 = vadd.f32 %v612, %v910
    %v981 = vadd.f32 %v526, %v824
    %v982 = vadd.f32 %v615, %v913
    %v983 = vadd.f32 %v529, %v827
    %v984 = vadd.f32 %v618, %v916
    %v985 = vadd.f32 %v532, %v830
    %v986 = vadd.f32 %v621, %v919
    %v987 = vadd.f32 %v535, %v833
    %v988 = vadd.f32 %v624, %v922
    %v989 = vadd.f32 %v538, %v836
    %v990 = vadd.f32 %v627, %v925
    %v991 = vadd.f32 %v541, %v839
    %v992 = vadd.f32 %v630, %v928
    %v993 = vadd.f32 %v544, %v842
    %v994 = vadd.f32 %v633, %v931
    %v995 = vadd.f32 %v547, %v845
    %v996 = vadd.f32 %v636, %v934
    %v997 = vadd.f32 %v550, %v848
    %v998 = vadd.f32 %v639, %v937
    %v999 = vadd.f32 %v553, %v851
    %v1000 = vadd.f32 %v642, %v940
    %v1001 = vadd.f32 %v556, %v854
    %v1002 = vadd.f32 %v645, %v943
    %v1003 = vadd.f32 %v559, %v857
    %v1004 = vadd.f32 %v648, %v946
    %v1005 = vadd.f32 %v562, %v860
    %v1006 = vadd.f32 %v651, %v949
    %v1007 = vadd.f32 %v565, %v863
    %v1008 = vadd.f32 %v654, %v952
    %v1009 = vadd.f32 %v568, %v866
    %v1010 = vadd.f32 %v657, %v955
    %v1011 = vadd.f32 %v571, %v869
    %v1012 = vadd.f32 %v660, %v958
    %v1013 = vadd.f32 %v574, %v872
    %v1014 = vadd.f32 %v663, %v961
    %v1015 = vadd.f32 %v577, %v875
    %v1016 = vadd.f32 %v666, %v964
    %v1017 = vadd.f32 %v580, %v878
    %v1018 = vadd.f32 %v669, %v967
    %v1019 = vadd.f32 %v583, %v881
    %v1020 = vadd.f32 %v672, %v970
    %v1021 = vadd.f32 %v586, %v884
    %v1022 = vadd.f32 %v675, %v973
    %vm1023 = vcmask 1044480
    %v1024 = vrot.slane %v73, 3
    %v1025 = vrot.slane %v74, 3
    %v1026 = vsel %vm1023, %v1024, %v1025
    %v1027 = vrot.slane %v75, 3
    %v1028 = vsel %vm1023, %v1025, %v1027
    %v1029 = vrot.slane %v76, 3
    %v1030 = vsel %vm1023, %v1027, %v1029
    %v1031 = vrot.slane %v77, 3
    %v1032 = vrot.slane %v78, 3
    %v1033 = vsel %vm1023, %v1031, %v1032
    %v1034 = vrot.slane %v79, 3
    %v1035 = vsel %vm1023, %v1032, %v1034
    %v1036 = vrot.slane %v80, 3
    %v1037 = vsel %vm1023, %v1034, %v1036
    %v1038 = vrot.slane %v81, 3
    %v1039 = vrot.slane %v82, 3
    %v1040 = vsel %vm1023, %v1038, %v1039
    %v1041 = vrot.slane %v83, 3
    %v1042 = vsel %vm1023, %v1039, %v1041
    %v1043 = vrot.slane %v84, 3
    %v1044 = vsel %vm1023, %v1041, %v1043
    %v1045 = vrot.slane %v85, 3
    %v1046 = vrot.slane %v86, 3
    %v1047 = vsel %vm1023, %v1045, %v1046
    %v1048 = vrot.slane %v87, 3
    %v1049 = vsel %vm1023, %v1046, %v1048
    %v1050 = vrot.slane %v88, 3
    %v1051 = vsel %vm1023, %v1048, %v1050
    %v1052 = vrot.slane %v89, 3
    %v1053 = vrot.slane %v90, 3
    %v1054 = vsel %vm1023, %v1052, %v1053
    %v1055 = vrot.slane %v91, 3
    %v1056 = vsel %vm1023, %v1053, %v1055
    %v1057 = vrot.slane %v92, 3
    %v1058 = vsel %vm1023, %v1055, %v1057
    %v1059 = vrot.slane %v93, 3
    %v1060 = vrot.slane %v94, 3
    %v1061 = vsel %vm1023, %v1059, %v1060
    %v1062 = vrot.slane %v95, 3
    %v1063 = vsel %vm1023, %v1060, %v1062
    %v1064 = vrot.slane %v96, 3
    %v1065 = vsel %vm1023, %v1062, %v1064
    %v1066 = vrot.slane %v97, 3
    %v1067 = vrot.slane %v98, 3
    %v1068 = vsel %vm1023, %v1066, %v1067
    %v1069 = vrot.slane %v99, 3
    %v1070 = vsel %vm1023, %v1067, %v1069
    %v1071 = vrot.slane %v100, 3
    %v1072 = vsel %vm1023, %v1069, %v1071
    %v1073 = vrot.slane %v101, 3
    %v1074 = vrot.slane %v102, 3
    %v1075 = vsel %vm1023, %v1073, %v1074
    %v1076 = vrot.slane %v103, 3
    %v1077 = vsel %vm1023, %v1074, %v1076
    %v1078 = vrot.slane %v104, 3
    %v1079 = vsel %vm1023, %v1076, %v1078
    %s1080 = scalar_lea.vmem [#allocation2], 192
    %v1081 = vld [vmem:[%s1080] sm:$0xff]
    %v1082 = vld [vmem:[%s1080 + $0x8] sm:$0xff]
    %v1083 = vld [vmem:[%s1080 + $0x10] sm:$0xff]
    %v1084 = vld [vmem:[%s1080 + $0x18] sm:$0xff]
    %v1085 = vld [vmem:[%s1080 + $0x20] sm:$0xff]
    %v1086 = vld [vmem:[%s1080 + $0x28] sm:$0xff]
    %v1087 = vld [vmem:[%s1080 + $0x30] sm:$0xf]
    %v1088 = vld [vmem:[%s1080 + $0x38] sm:$0xf]
    %v1089 = vsel %vm211, %v1026, 0
    %v1091 = vsel %vm211, %v1028, 0
    %v1093 = vsel %vm211, %v1030, 0
    %v1095 = vsel %vm211, %v1033, 0
    %v1097 = vsel %vm211, %v1035, 0
    %v1099 = vsel %vm211, %v1037, 0
    %v1101 = vsel %vm211, %v1040, 0
    %v1103 = vsel %vm211, %v1042, 0
    %v1105 = vsel %vm211, %v1044, 0
    %v1107 = vsel %vm211, %v1047, 0
    %v1109 = vsel %vm211, %v1049, 0
    %v1111 = vsel %vm211, %v1051, 0
    %v1113 = vsel %vm211, %v1054, 0
    %v1115 = vsel %vm211, %v1056, 0
    %v1117 = vsel %vm211, %v1058, 0
    %v1119 = vsel %vm211, %v1061, 0
    %v1121 = vsel %vm211, %v1063, 0
    %v1123 = vsel %vm211, %v1065, 0
    %v1125 = vsel %vm211, %v1068, 0
    %v1127 = vsel %vm211, %v1070, 0
    %v1129 = vsel %vm211, %v1072, 0
    %v1131 = vsel %vm211, %v1075, 0
    %v1133 = vsel %vm211, %v1077, 0
    %v1135 = vsel %vm211, %v1079, 0
    %v1138 = vsel %vm260, %v1087, 0
    %v1141 = vsel %vm260, %v1088, 0
    %1143 = vmatpush.msra.mxu0 0.0
    %1144 = vmatpush.msra.mxu0 0.0
    %1145 = vmatpush.msra.mxu0 0.0
    %1146 = vmatpush.msra.mxu0 0.0
    %1147 = vmatpush.msra.mxu0 0.0
    %1148 = vmatpush.msra.mxu0 0.0
    %1149 = vmatpush.msra.mxu0 0.0
    %1150 = vmatpush.msra.mxu0 0.0
    %1151 = vmatpush.msra.mxu0 0.0
    %1152 = vmatpush.msra.mxu0 0.0
    %1153 = vmatpush.msra.mxu0 0.0
    %1154 = vmatpush.msra.mxu0 0.0
    %1155 = vmatpush.msra.mxu0 %v1138
    %1156 = vmatpush.msra.mxu0 %v1085
    %1157 = vmatpush.msra.mxu0 %v1083
    %1158 = vmatpush.msra.mxu0 %v1081
    %1159 = vmatmul.f32.gmra.mxu0 %v1089
    %v1160 = vpop.f32.mrf.mxu0
    %v1161 = vadd.f32 0.0, %v1160
    %1162 = vmatmul.f32.gmra.mxu0 %v1091
    %v1163 = vpop.f32.mrf.mxu0
    %v1164 = vadd.f32 0.0, %v1163
    %1165 = vmatmul.f32.gmra.mxu0 %v1093
    %v1166 = vpop.f32.mrf.mxu0
    %v1167 = vadd.f32 0.0, %v1166
    %1168 = vmatmul.f32.gmra.mxu0 %v1095
    %v1169 = vpop.f32.mrf.mxu0
    %v1170 = vadd.f32 0.0, %v1169
    %1171 = vmatmul.f32.gmra.mxu0 %v1097
    %v1172 = vpop.f32.mrf.mxu0
    %v1173 = vadd.f32 0.0, %v1172
    %1174 = vmatmul.f32.gmra.mxu0 %v1099
    %v1175 = vpop.f32.mrf.mxu0
    %v1176 = vadd.f32 0.0, %v1175
    %1177 = vmatmul.f32.gmra.mxu0 %v1101
    %v1178 = vpop.f32.mrf.mxu0
    %v1179 = vadd.f32 0.0, %v1178
    %1180 = vmatmul.f32.gmra.mxu0 %v1103
    %v1181 = vpop.f32.mrf.mxu0
    %v1182 = vadd.f32 0.0, %v1181
    %1183 = vmatmul.f32.gmra.mxu0 %v1105
    %v1184 = vpop.f32.mrf.mxu0
    %v1185 = vadd.f32 0.0, %v1184
    %1186 = vmatmul.f32.gmra.mxu0 %v1107
    %v1187 = vpop.f32.mrf.mxu0
    %v1188 = vadd.f32 0.0, %v1187
    %1189 = vmatmul.f32.gmra.mxu0 %v1109
    %v1190 = vpop.f32.mrf.mxu0
    %v1191 = vadd.f32 0.0, %v1190
    %1192 = vmatmul.f32.gmra.mxu0 %v1111
    %v1193 = vpop.f32.mrf.mxu0
    %v1194 = vadd.f32 0.0, %v1193
    %1195 = vmatmul.f32.gmra.mxu0 %v1113
    %v1196 = vpop.f32.mrf.mxu0
    %v1197 = vadd.f32 0.0, %v1196
    %1198 = vmatmul.f32.gmra.mxu0 %v1115
    %v1199 = vpop.f32.mrf.mxu0
    %v1200 = vadd.f32 0.0, %v1199
    %1201 = vmatmul.f32.gmra.mxu0 %v1117
    %v1202 = vpop.f32.mrf.mxu0
    %v1203 = vadd.f32 0.0, %v1202
    %1204 = vmatmul.f32.gmra.mxu0 %v1119
    %v1205 = vpop.f32.mrf.mxu0
    %v1206 = vadd.f32 0.0, %v1205
    %1207 = vmatmul.f32.gmra.mxu0 %v1121
    %v1208 = vpop.f32.mrf.mxu0
    %v1209 = vadd.f32 0.0, %v1208
    %1210 = vmatmul.f32.gmra.mxu0 %v1123
    %v1211 = vpop.f32.mrf.mxu0
    %v1212 = vadd.f32 0.0, %v1211
    %1213 = vmatmul.f32.gmra.mxu0 %v1125
    %v1214 = vpop.f32.mrf.mxu0
    %v1215 = vadd.f32 0.0, %v1214
    %1216 = vmatmul.f32.gmra.mxu0 %v1127
    %v1217 = vpop.f32.mrf.mxu0
    %v1218 = vadd.f32 0.0, %v1217
    %1219 = vmatmul.f32.gmra.mxu0 %v1129
    %v1220 = vpop.f32.mrf.mxu0
    %v1221 = vadd.f32 0.0, %v1220
    %1222 = vmatmul.f32.gmra.mxu0 %v1131
    %v1223 = vpop.f32.mrf.mxu0
    %v1224 = vadd.f32 0.0, %v1223
    %1225 = vmatmul.f32.gmra.mxu0 %v1133
    %v1226 = vpop.f32.mrf.mxu0
    %v1227 = vadd.f32 0.0, %v1226
    %1228 = vmatmul.f32.gmra.mxu0 %v1135
    %v1229 = vpop.f32.mrf.mxu0
    %v1230 = vadd.f32 0.0, %v1229
    %1231 = vdwg.mxu0
    %1232 = vmatpush.msra.mxu0 0.0
    %1233 = vmatpush.msra.mxu0 0.0
    %1234 = vmatpush.msra.mxu0 0.0
    %1235 = vmatpush.msra.mxu0 0.0
    %1236 = vmatpush.msra.mxu0 0.0
    %1237 = vmatpush.msra.mxu0 0.0
    %1238 = vmatpush.msra.mxu0 0.0
    %1239 = vmatpush.msra.mxu0 0.0
    %1240 = vmatpush.msra.mxu0 0.0
    %1241 = vmatpush.msra.mxu0 0.0
    %1242 = vmatpush.msra.mxu0 0.0
    %1243 = vmatpush.msra.mxu0 0.0
    %1244 = vmatpush.msra.mxu0 %v1141
    %1245 = vmatpush.msra.mxu0 %v1086
    %1246 = vmatpush.msra.mxu0 %v1084
    %1247 = vmatpush.msra.mxu0 %v1082
    %1248 = vmatmul.f32.gmra.mxu0 %v1089
    %v1249 = vpop.f32.mrf.mxu0
    %v1250 = vadd.f32 0.0, %v1249
    %1251 = vmatmul.f32.gmra.mxu0 %v1091
    %v1252 = vpop.f32.mrf.mxu0
    %v1253 = vadd.f32 0.0, %v1252
    %1254 = vmatmul.f32.gmra.mxu0 %v1093
    %v1255 = vpop.f32.mrf.mxu0
    %v1256 = vadd.f32 0.0, %v1255
    %1257 = vmatmul.f32.gmra.mxu0 %v1095
    %v1258 = vpop.f32.mrf.mxu0
    %v1259 = vadd.f32 0.0, %v1258
    %1260 = vmatmul.f32.gmra.mxu0 %v1097
    %v1261 = vpop.f32.mrf.mxu0
    %v1262 = vadd.f32 0.0, %v1261
    %1263 = vmatmul.f32.gmra.mxu0 %v1099
    %v1264 = vpop.f32.mrf.mxu0
    %v1265 = vadd.f32 0.0, %v1264
    %1266 = vmatmul.f32.gmra.mxu0 %v1101
    %v1267 = vpop.f32.mrf.mxu0
    %v1268 = vadd.f32 0.0, %v1267
    %1269 = vmatmul.f32.gmra.mxu0 %v1103
    %v1270 = vpop.f32.mrf.mxu0
    %v1271 = vadd.f32 0.0, %v1270
    %1272 = vmatmul.f32.gmra.mxu0 %v1105
    %v1273 = vpop.f32.mrf.mxu0
    %v1274 = vadd.f32 0.0, %v1273
    %1275 = vmatmul.f32.gmra.mxu0 %v1107
    %v1276 = vpop.f32.mrf.mxu0
    %v1277 = vadd.f32 0.0, %v1276
    %1278 = vmatmul.f32.gmra.mxu0 %v1109
    %v1279 = vpop.f32.mrf.mxu0
    %v1280 = vadd.f32 0.0, %v1279
    %1281 = vmatmul.f32.gmra.mxu0 %v1111
    %v1282 = vpop.f32.mrf.mxu0
    %v1283 = vadd.f32 0.0, %v1282
    %1284 = vmatmul.f32.gmra.mxu0 %v1113
    %v1285 = vpop.f32.mrf.mxu0
    %v1286 = vadd.f32 0.0, %v1285
    %1287 = vmatmul.f32.gmra.mxu0 %v1115
    %v1288 = vpop.f32.mrf.mxu0
    %v1289 = vadd.f32 0.0, %v1288
    %1290 = vmatmul.f32.gmra.mxu0 %v1117
    %v1291 = vpop.f32.mrf.mxu0
    %v1292 = vadd.f32 0.0, %v1291
    %1293 = vmatmul.f32.gmra.mxu0 %v1119
    %v1294 = vpop.f32.mrf.mxu0
    %v1295 = vadd.f32 0.0, %v1294
    %1296 = vmatmul.f32.gmra.mxu0 %v1121
    %v1297 = vpop.f32.mrf.mxu0
    %v1298 = vadd.f32 0.0, %v1297
    %1299 = vmatmul.f32.gmra.mxu0 %v1123
    %v1300 = vpop.f32.mrf.mxu0
    %v1301 = vadd.f32 0.0, %v1300
    %1302 = vmatmul.f32.gmra.mxu0 %v1125
    %v1303 = vpop.f32.mrf.mxu0
    %v1304 = vadd.f32 0.0, %v1303
    %1305 = vmatmul.f32.gmra.mxu0 %v1127
    %v1306 = vpop.f32.mrf.mxu0
    %v1307 = vadd.f32 0.0, %v1306
    %1308 = vmatmul.f32.gmra.mxu0 %v1129
    %v1309 = vpop.f32.mrf.mxu0
    %v1310 = vadd.f32 0.0, %v1309
    %1311 = vmatmul.f32.gmra.mxu0 %v1131
    %v1312 = vpop.f32.mrf.mxu0
    %v1313 = vadd.f32 0.0, %v1312
    %1314 = vmatmul.f32.gmra.mxu0 %v1133
    %v1315 = vpop.f32.mrf.mxu0
    %v1316 = vadd.f32 0.0, %v1315
    %1317 = vmatmul.f32.gmra.mxu0 %v1135
    %v1318 = vpop.f32.mrf.mxu0
    %v1319 = vadd.f32 0.0, %v1318
    %1320 = vdwg.mxu0
    %v1321 = vadd.f32 %v975, %v1161
    %v1322 = vadd.f32 %v976, %v1250
    %v1323 = vadd.f32 %v977, %v1164
    %v1324 = vadd.f32 %v978, %v1253
    %v1325 = vadd.f32 %v979, %v1167
    %v1326 = vadd.f32 %v980, %v1256
    %v1327 = vadd.f32 %v981, %v1170
    %v1328 = vadd.f32 %v982, %v1259
    %v1329 = vadd.f32 %v983, %v1173
    %v1330 = vadd.f32 %v984, %v1262
    %v1331 = vadd.f32 %v985, %v1176
    %v1332 = vadd.f32 %v986, %v1265
    %v1333 = vadd.f32 %v987, %v1179
    %v1334 = vadd.f32 %v988, %v1268
    %v1335 = vadd.f32 %v989, %v1182
    %v1336 = vadd.f32 %v990, %v1271
    %v1337 = vadd.f32 %v991, %v1185
    %v1338 = vadd.f32 %v992, %v1274
    %v1339 = vadd.f32 %v993, %v1188
    %v1340 = vadd.f32 %v994, %v1277
    %v1341 = vadd.f32 %v995, %v1191
    %v1342 = vadd.f32 %v996, %v1280
    %v1343 = vadd.f32 %v997, %v1194
    %v1344 = vadd.f32 %v998, %v1283
    %v1345 = vadd.f32 %v999, %v1197
    %v1346 = vadd.f32 %v1000, %v1286
    %v1347 = vadd.f32 %v1001, %v1200
    %v1348 = vadd.f32 %v1002, %v1289
    %v1349 = vadd.f32 %v1003, %v1203
    %v1350 = vadd.f32 %v1004, %v1292
    %v1351 = vadd.f32 %v1005, %v1206
    %v1352 = vadd.f32 %v1006, %v1295
    %v1353 = vadd.f32 %v1007, %v1209
    %v1354 = vadd.f32 %v1008, %v1298
    %v1355 = vadd.f32 %v1009, %v1212
    %v1356 = vadd.f32 %v1010, %v1301
    %v1357 = vadd.f32 %v1011, %v1215
    %v1358 = vadd.f32 %v1012, %v1304
    %v1359 = vadd.f32 %v1013, %v1218
    %v1360 = vadd.f32 %v1014, %v1307
    %v1361 = vadd.f32 %v1015, %v1221
    %v1362 = vadd.f32 %v1016, %v1310
    %v1363 = vadd.f32 %v1017, %v1224
    %v1364 = vadd.f32 %v1018, %v1313
    %v1365 = vadd.f32 %v1019, %v1227
    %v1366 = vadd.f32 %v1020, %v1316
    %v1367 = vadd.f32 %v1021, %v1230
    %v1368 = vadd.f32 %v1022, %v1319
    %v1369 = vrot.slane %v73, 4
    %v1370 = vrot.slane %v74, 4
    %v1371 = vsel %vm260, %v1369, %v1370
    %v1372 = vrot.slane %v75, 4
    %v1373 = vsel %vm260, %v1370, %v1372
    %v1374 = vrot.slane %v76, 4
    %v1375 = vsel %vm260, %v1372, %v1374
    %v1376 = vrot.slane %v77, 4
    %v1377 = vrot.slane %v78, 4
    %v1378 = vsel %vm260, %v1376, %v1377
    %v1379 = vrot.slane %v79, 4
    %v1380 = vsel %vm260, %v1377, %v1379
    %v1381 = vrot.slane %v80, 4
    %v1382 = vsel %vm260, %v1379, %v1381
    %v1383 = vrot.slane %v81, 4
    %v1384 = vrot.slane %v82, 4
    %v1385 = vsel %vm260, %v1383, %v1384
    %v1386 = vrot.slane %v83, 4
    %v1387 = vsel %vm260, %v1384, %v1386
    %v1388 = vrot.slane %v84, 4
    %v1389 = vsel %vm260, %v1386, %v1388
    %v1390 = vrot.slane %v85, 4
    %v1391 = vrot.slane %v86, 4
    %v1392 = vsel %vm260, %v1390, %v1391
    %v1393 = vrot.slane %v87, 4
    %v1394 = vsel %vm260, %v1391, %v1393
    %v1395 = vrot.slane %v88, 4
    %v1396 = vsel %vm260, %v1393, %v1395
    %v1397 = vrot.slane %v89, 4
    %v1398 = vrot.slane %v90, 4
    %v1399 = vsel %vm260, %v1397, %v1398
    %v1400 = vrot.slane %v91, 4
    %v1401 = vsel %vm260, %v1398, %v1400
    %v1402 = vrot.slane %v92, 4
    %v1403 = vsel %vm260, %v1400, %v1402
    %v1404 = vrot.slane %v93, 4
    %v1405 = vrot.slane %v94, 4
    %v1406 = vsel %vm260, %v1404, %v1405
    %v1407 = vrot.slane %v95, 4
    %v1408 = vsel %vm260, %v1405, %v1407
    %v1409 = vrot.slane %v96, 4
    %v1410 = vsel %vm260, %v1407, %v1409
    %v1411 = vrot.slane %v97, 4
    %v1412 = vrot.slane %v98, 4
    %v1413 = vsel %vm260, %v1411, %v1412
    %v1414 = vrot.slane %v99, 4
    %v1415 = vsel %vm260, %v1412, %v1414
    %v1416 = vrot.slane %v100, 4
    %v1417 = vsel %vm260, %v1414, %v1416
    %v1418 = vrot.slane %v101, 4
    %v1419 = vrot.slane %v102, 4
    %v1420 = vsel %vm260, %v1418, %v1419
    %v1421 = vrot.slane %v103, 4
    %v1422 = vsel %vm260, %v1419, %v1421
    %v1423 = vrot.slane %v104, 4
    %v1424 = vsel %vm260, %v1421, %v1423
    %s1425 = scalar_lea.vmem [#allocation2], 256
    %v1426 = vld [vmem:[%s1425] sm:$0xff]
    %v1427 = vld [vmem:[%s1425 + $0x8] sm:$0xff]
    %v1428 = vld [vmem:[%s1425 + $0x10] sm:$0xff]
    %v1429 = vld [vmem:[%s1425 + $0x18] sm:$0xff]
    %v1430 = vld [vmem:[%s1425 + $0x20] sm:$0xff]
    %v1431 = vld [vmem:[%s1425 + $0x28] sm:$0xff]
    %v1432 = vld [vmem:[%s1425 + $0x30] sm:$0xf]
    %v1433 = vld [vmem:[%s1425 + $0x38] sm:$0xf]
    %v1434 = vsel %vm211, %v1371, 0
    %v1436 = vsel %vm211, %v1373, 0
    %v1438 = vsel %vm211, %v1375, 0
    %v1440 = vsel %vm211, %v1378, 0
    %v1442 = vsel %vm211, %v1380, 0
    %v1444 = vsel %vm211, %v1382, 0
    %v1446 = vsel %vm211, %v1385, 0
    %v1448 = vsel %vm211, %v1387, 0
    %v1450 = vsel %vm211, %v1389, 0
    %v1452 = vsel %vm211, %v1392, 0
    %v1454 = vsel %vm211, %v1394, 0
    %v1456 = vsel %vm211, %v1396, 0
    %v1458 = vsel %vm211, %v1399, 0
    %v1460 = vsel %vm211, %v1401, 0
    %v1462 = vsel %vm211, %v1403, 0
    %v1464 = vsel %vm211, %v1406, 0
    %v1466 = vsel %vm211, %v1408, 0
    %v1468 = vsel %vm211, %v1410, 0
    %v1470 = vsel %vm211, %v1413, 0
    %v1472 = vsel %vm211, %v1415, 0
    %v1474 = vsel %vm211, %v1417, 0
    %v1476 = vsel %vm211, %v1420, 0
    %v1478 = vsel %vm211, %v1422, 0
    %v1480 = vsel %vm211, %v1424, 0
    %v1483 = vsel %vm260, %v1432, 0
    %v1486 = vsel %vm260, %v1433, 0
    %1488 = vmatpush.msra.mxu0 0.0
    %1489 = vmatpush.msra.mxu0 0.0
    %1490 = vmatpush.msra.mxu0 0.0
    %1491 = vmatpush.msra.mxu0 0.0
    %1492 = vmatpush.msra.mxu0 0.0
    %1493 = vmatpush.msra.mxu0 0.0
    %1494 = vmatpush.msra.mxu0 0.0
    %1495 = vmatpush.msra.mxu0 0.0
    %1496 = vmatpush.msra.mxu0 0.0
    %1497 = vmatpush.msra.mxu0 0.0
    %1498 = vmatpush.msra.mxu0 0.0
    %1499 = vmatpush.msra.mxu0 0.0
    %1500 = vmatpush.msra.mxu0 %v1483
    %1501 = vmatpush.msra.mxu0 %v1430
    %1502 = vmatpush.msra.mxu0 %v1428
    %1503 = vmatpush.msra.mxu0 %v1426
    %1504 = vmatmul.f32.gmra.mxu0 %v1434
    %v1505 = vpop.f32.mrf.mxu0
    %v1506 = vadd.f32 0.0, %v1505
    %1507 = vmatmul.f32.gmra.mxu0 %v1436
    %v1508 = vpop.f32.mrf.mxu0
    %v1509 = vadd.f32 0.0, %v1508
    %1510 = vmatmul.f32.gmra.mxu0 %v1438
    %v1511 = vpop.f32.mrf.mxu0
    %v1512 = vadd.f32 0.0, %v1511
    %1513 = vmatmul.f32.gmra.mxu0 %v1440
    %v1514 = vpop.f32.mrf.mxu0
    %v1515 = vadd.f32 0.0, %v1514
    %1516 = vmatmul.f32.gmra.mxu0 %v1442
    %v1517 = vpop.f32.mrf.mxu0
    %v1518 = vadd.f32 0.0, %v1517
    %1519 = vmatmul.f32.gmra.mxu0 %v1444
    %v1520 = vpop.f32.mrf.mxu0
    %v1521 = vadd.f32 0.0, %v1520
    %1522 = vmatmul.f32.gmra.mxu0 %v1446
    %v1523 = vpop.f32.mrf.mxu0
    %v1524 = vadd.f32 0.0, %v1523
    %1525 = vmatmul.f32.gmra.mxu0 %v1448
    %v1526 = vpop.f32.mrf.mxu0
    %v1527 = vadd.f32 0.0, %v1526
    %1528 = vmatmul.f32.gmra.mxu0 %v1450
    %v1529 = vpop.f32.mrf.mxu0
    %v1530 = vadd.f32 0.0, %v1529
    %1531 = vmatmul.f32.gmra.mxu0 %v1452
    %v1532 = vpop.f32.mrf.mxu0
    %v1533 = vadd.f32 0.0, %v1532
    %1534 = vmatmul.f32.gmra.mxu0 %v1454
    %v1535 = vpop.f32.mrf.mxu0
    %v1536 = vadd.f32 0.0, %v1535
    %1537 = vmatmul.f32.gmra.mxu0 %v1456
    %v1538 = vpop.f32.mrf.mxu0
    %v1539 = vadd.f32 0.0, %v1538
    %1540 = vmatmul.f32.gmra.mxu0 %v1458
    %v1541 = vpop.f32.mrf.mxu0
    %v1542 = vadd.f32 0.0, %v1541
    %1543 = vmatmul.f32.gmra.mxu0 %v1460
    %v1544 = vpop.f32.mrf.mxu0
    %v1545 = vadd.f32 0.0, %v1544
    %1546 = vmatmul.f32.gmra.mxu0 %v1462
    %v1547 = vpop.f32.mrf.mxu0
    %v1548 = vadd.f32 0.0, %v1547
    %1549 = vmatmul.f32.gmra.mxu0 %v1464
    %v1550 = vpop.f32.mrf.mxu0
    %v1551 = vadd.f32 0.0, %v1550
    %1552 = vmatmul.f32.gmra.mxu0 %v1466
    %v1553 = vpop.f32.mrf.mxu0
    %v1554 = vadd.f32 0.0, %v1553
    %1555 = vmatmul.f32.gmra.mxu0 %v1468
    %v1556 = vpop.f32.mrf.mxu0
    %v1557 = vadd.f32 0.0, %v1556
    %1558 = vmatmul.f32.gmra.mxu0 %v1470
    %v1559 = vpop.f32.mrf.mxu0
    %v1560 = vadd.f32 0.0, %v1559
    %1561 = vmatmul.f32.gmra.mxu0 %v1472
    %v1562 = vpop.f32.mrf.mxu0
    %v1563 = vadd.f32 0.0, %v1562
    %1564 = vmatmul.f32.gmra.mxu0 %v1474
    %v1565 = vpop.f32.mrf.mxu0
    %v1566 = vadd.f32 0.0, %v1565
    %1567 = vmatmul.f32.gmra.mxu0 %v1476
    %v1568 = vpop.f32.mrf.mxu0
    %v1569 = vadd.f32 0.0, %v1568
    %1570 = vmatmul.f32.gmra.mxu0 %v1478
    %v1571 = vpop.f32.mrf.mxu0
    %v1572 = vadd.f32 0.0, %v1571
    %1573 = vmatmul.f32.gmra.mxu0 %v1480
    %v1574 = vpop.f32.mrf.mxu0
    %v1575 = vadd.f32 0.0, %v1574
    %1576 = vdwg.mxu0
    %1577 = vmatpush.msra.mxu0 0.0
    %1578 = vmatpush.msra.mxu0 0.0
    %1579 = vmatpush.msra.mxu0 0.0
    %1580 = vmatpush.msra.mxu0 0.0
    %1581 = vmatpush.msra.mxu0 0.0
    %1582 = vmatpush.msra.mxu0 0.0
    %1583 = vmatpush.msra.mxu0 0.0
    %1584 = vmatpush.msra.mxu0 0.0
    %1585 = vmatpush.msra.mxu0 0.0
    %1586 = vmatpush.msra.mxu0 0.0
    %1587 = vmatpush.msra.mxu0 0.0
    %1588 = vmatpush.msra.mxu0 0.0
    %1589 = vmatpush.msra.mxu0 %v1486
    %1590 = vmatpush.msra.mxu0 %v1431
    %1591 = vmatpush.msra.mxu0 %v1429
    %1592 = vmatpush.msra.mxu0 %v1427
    %1593 = vmatmul.f32.gmra.mxu0 %v1434
    %v1594 = vpop.f32.mrf.mxu0
    %v1595 = vadd.f32 0.0, %v1594
    %1596 = vmatmul.f32.gmra.mxu0 %v1436
    %v1597 = vpop.f32.mrf.mxu0
    %v1598 = vadd.f32 0.0, %v1597
    %1599 = vmatmul.f32.gmra.mxu0 %v1438
    %v1600 = vpop.f32.mrf.mxu0
    %v1601 = vadd.f32 0.0, %v1600
    %1602 = vmatmul.f32.gmra.mxu0 %v1440
    %v1603 = vpop.f32.mrf.mxu0
    %v1604 = vadd.f32 0.0, %v1603
    %1605 = vmatmul.f32.gmra.mxu0 %v1442
    %v1606 = vpop.f32.mrf.mxu0
    %v1607 = vadd.f32 0.0, %v1606
    %1608 = vmatmul.f32.gmra.mxu0 %v1444
    %v1609 = vpop.f32.mrf.mxu0
    %v1610 = vadd.f32 0.0, %v1609
    %1611 = vmatmul.f32.gmra.mxu0 %v1446
    %v1612 = vpop.f32.mrf.mxu0
    %v1613 = vadd.f32 0.0, %v1612
    %1614 = vmatmul.f32.gmra.mxu0 %v1448
    %v1615 = vpop.f32.mrf.mxu0
    %v1616 = vadd.f32 0.0, %v1615
    %1617 = vmatmul.f32.gmra.mxu0 %v1450
    %v1618 = vpop.f32.mrf.mxu0
    %v1619 = vadd.f32 0.0, %v1618
    %1620 = vmatmul.f32.gmra.mxu0 %v1452
    %v1621 = vpop.f32.mrf.mxu0
    %v1622 = vadd.f32 0.0, %v1621
    %1623 = vmatmul.f32.gmra.mxu0 %v1454
    %v1624 = vpop.f32.mrf.mxu0
    %v1625 = vadd.f32 0.0, %v1624
    %1626 = vmatmul.f32.gmra.mxu0 %v1456
    %v1627 = vpop.f32.mrf.mxu0
    %v1628 = vadd.f32 0.0, %v1627
    %1629 = vmatmul.f32.gmra.mxu0 %v1458
    %v1630 = vpop.f32.mrf.mxu0
    %v1631 = vadd.f32 0.0, %v1630
    %1632 = vmatmul.f32.gmra.mxu0 %v1460
    %v1633 = vpop.f32.mrf.mxu0
    %v1634 = vadd.f32 0.0, %v1633
    %1635 = vmatmul.f32.gmra.mxu0 %v1462
    %v1636 = vpop.f32.mrf.mxu0
    %v1637 = vadd.f32 0.0, %v1636
    %1638 = vmatmul.f32.gmra.mxu0 %v1464
    %v1639 = vpop.f32.mrf.mxu0
    %v1640 = vadd.f32 0.0, %v1639
    %1641 = vmatmul.f32.gmra.mxu0 %v1466
    %v1642 = vpop.f32.mrf.mxu0
    %v1643 = vadd.f32 0.0, %v1642
    %1644 = vmatmul.f32.gmra.mxu0 %v1468
    %v1645 = vpop.f32.mrf.mxu0
    %v1646 = vadd.f32 0.0, %v1645
    %1647 = vmatmul.f32.gmra.mxu0 %v1470
    %v1648 = vpop.f32.mrf.mxu0
    %v1649 = vadd.f32 0.0, %v1648
    %1650 = vmatmul.f32.gmra.mxu0 %v1472
    %v1651 = vpop.f32.mrf.mxu0
    %v1652 = vadd.f32 0.0, %v1651
    %1653 = vmatmul.f32.gmra.mxu0 %v1474
    %v1654 = vpop.f32.mrf.mxu0
    %v1655 = vadd.f32 0.0, %v1654
    %1656 = vmatmul.f32.gmra.mxu0 %v1476
    %v1657 = vpop.f32.mrf.mxu0
    %v1658 = vadd.f32 0.0, %v1657
    %1659 = vmatmul.f32.gmra.mxu0 %v1478
    %v1660 = vpop.f32.mrf.mxu0
    %v1661 = vadd.f32 0.0, %v1660
    %1662 = vmatmul.f32.gmra.mxu0 %v1480
    %v1663 = vpop.f32.mrf.mxu0
    %v1664 = vadd.f32 0.0, %v1663
    %1665 = vdwg.mxu0
    %v1666 = vadd.f32 %v1321, %v1506
    %v1667 = vadd.f32 %v1322, %v1595
    %v1668 = vadd.f32 %v1323, %v1509
    %v1669 = vadd.f32 %v1324, %v1598
    %v1670 = vadd.f32 %v1325, %v1512
    %v1671 = vadd.f32 %v1326, %v1601
    %v1672 = vadd.f32 %v1327, %v1515
    %v1673 = vadd.f32 %v1328, %v1604
    %v1674 = vadd.f32 %v1329, %v1518
    %v1675 = vadd.f32 %v1330, %v1607
    %v1676 = vadd.f32 %v1331, %v1521
    %v1677 = vadd.f32 %v1332, %v1610
    %v1678 = vadd.f32 %v1333, %v1524
    %v1679 = vadd.f32 %v1334, %v1613
    %v1680 = vadd.f32 %v1335, %v1527
    %v1681 = vadd.f32 %v1336, %v1616
    %v1682 = vadd.f32 %v1337, %v1530
    %v1683 = vadd.f32 %v1338, %v1619
    %v1684 = vadd.f32 %v1339, %v1533
    %v1685 = vadd.f32 %v1340, %v1622
    %v1686 = vadd.f32 %v1341, %v1536
    %v1687 = vadd.f32 %v1342, %v1625
    %v1688 = vadd.f32 %v1343, %v1539
    %v1689 = vadd.f32 %v1344, %v1628
    %v1690 = vadd.f32 %v1345, %v1542
    %v1691 = vadd.f32 %v1346, %v1631
    %v1692 = vadd.f32 %v1347, %v1545
    %v1693 = vadd.f32 %v1348, %v1634
    %v1694 = vadd.f32 %v1349, %v1548
    %v1695 = vadd.f32 %v1350, %v1637
    %v1696 = vadd.f32 %v1351, %v1551
    %v1697 = vadd.f32 %v1352, %v1640
    %v1698 = vadd.f32 %v1353, %v1554
    %v1699 = vadd.f32 %v1354, %v1643
    %v1700 = vadd.f32 %v1355, %v1557
    %v1701 = vadd.f32 %v1356, %v1646
    %v1702 = vadd.f32 %v1357, %v1560
    %v1703 = vadd.f32 %v1358, %v1649
    %v1704 = vadd.f32 %v1359, %v1563
    %v1705 = vadd.f32 %v1360, %v1652
    %v1706 = vadd.f32 %v1361, %v1566
    %v1707 = vadd.f32 %v1362, %v1655
    %v1708 = vadd.f32 %v1363, %v1569
    %v1709 = vadd.f32 %v1364, %v1658
    %v1710 = vadd.f32 %v1365, %v1572
    %v1711 = vadd.f32 %v1366, %v1661
    %v1712 = vadd.f32 %v1367, %v1575
    %v1713 = vadd.f32 %v1368, %v1664
    %v1762 = vrot.slane %v1667, 6
    %v1763 = vrot.slane %v1669, 6
    %v1764 = vrot.slane %v1671, 6
    %v1765 = vrot.slane %v1673, 6
    %v1766 = vrot.slane %v1675, 6
    %v1767 = vrot.slane %v1677, 6
    %v1768 = vrot.slane %v1679, 6
    %v1769 = vrot.slane %v1681, 6
    %v1770 = vrot.slane %v1683, 6
    %v1771 = vrot.slane %v1685, 6
    %v1772 = vrot.slane %v1687, 6
    %v1773 = vrot.slane %v1689, 6
    %v1774 = vrot.slane %v1691, 6
    %v1775 = vrot.slane %v1693, 6
    %v1776 = vrot.slane %v1695, 6
    %v1777 = vrot.slane %v1697, 6
    %v1778 = vrot.slane %v1699, 6
    %v1779 = vrot.slane %v1701, 6
    %v1780 = vrot.slane %v1703, 6
    %v1781 = vrot.slane %v1705, 6
    %v1782 = vrot.slane %v1707, 6
    %v1783 = vrot.slane %v1709, 6
    %v1784 = vrot.slane %v1711, 6
    %v1785 = vrot.slane %v1713, 6
    %vm1786 = vcmask 1041408
    %v1787 = vsel %vm1786, %v1666, %v1762
    %vm1788 = vcmask 1043458
    %v1789 = vsel %vm1788, %v1666, %v1762
    %v1790 = vrot.slane %v1789, 2
    %vm1791 = vcmask 1045508
    %v1792 = vsel %vm1791, %v1666, %v1762
    %v1793 = vrot.slane %v1792, 4
    %v1794 = vsel %vm677, %v1762, %v1666
    %v1795 = vrot.slane %v1794, 6
    %v1796 = vsel %vm1786, %v1668, %v1763
    %v1797 = vsel %vm1788, %v1668, %v1763
    %v1798 = vrot.slane %v1797, 2
    %v1799 = vsel %vm1791, %v1668, %v1763
    %v1800 = vrot.slane %v1799, 4
    %v1801 = vsel %vm677, %v1763, %v1668
    %v1802 = vrot.slane %v1801, 6
    %v1803 = vsel %vm1786, %v1670, %v1764
    %v1804 = vsel %vm1788, %v1670, %v1764
    %v1805 = vrot.slane %v1804, 2
    %v1806 = vsel %vm1791, %v1670, %v1764
    %v1807 = vrot.slane %v1806, 4
    %v1808 = vsel %vm677, %v1764, %v1670
    %v1809 = vrot.slane %v1808, 6
    %v1810 = vsel %vm1786, %v1672, %v1765
    %v1811 = vsel %vm1788, %v1672, %v1765
    %v1812 = vrot.slane %v1811, 2
    %v1813 = vsel %vm1791, %v1672, %v1765
    %v1814 = vrot.slane %v1813, 4
    %v1815 = vsel %vm677, %v1765, %v1672
    %v1816 = vrot.slane %v1815, 6
    %v1817 = vsel %vm1786, %v1674, %v1766
    %v1818 = vsel %vm1788, %v1674, %v1766
    %v1819 = vrot.slane %v1818, 2
    %v1820 = vsel %vm1791, %v1674, %v1766
    %v1821 = vrot.slane %v1820, 4
    %v1822 = vsel %vm677, %v1766, %v1674
    %v1823 = vrot.slane %v1822, 6
    %v1824 = vsel %vm1786, %v1676, %v1767
    %v1825 = vsel %vm1788, %v1676, %v1767
    %v1826 = vrot.slane %v1825, 2
    %v1827 = vsel %vm1791, %v1676, %v1767
    %v1828 = vrot.slane %v1827, 4
    %v1829 = vsel %vm677, %v1767, %v1676
    %v1830 = vrot.slane %v1829, 6
    %v1831 = vsel %vm1786, %v1678, %v1768
    %v1832 = vsel %vm1788, %v1678, %v1768
    %v1833 = vrot.slane %v1832, 2
    %v1834 = vsel %vm1791, %v1678, %v1768
    %v1835 = vrot.slane %v1834, 4
    %v1836 = vsel %vm677, %v1768, %v1678
    %v1837 = vrot.slane %v1836, 6
    %v1838 = vsel %vm1786, %v1680, %v1769
    %v1839 = vsel %vm1788, %v1680, %v1769
    %v1840 = vrot.slane %v1839, 2
    %v1841 = vsel %vm1791, %v1680, %v1769
    %v1842 = vrot.slane %v1841, 4
    %v1843 = vsel %vm677, %v1769, %v1680
    %v1844 = vrot.slane %v1843, 6
    %v1845 = vsel %vm1786, %v1682, %v1770
    %v1846 = vsel %vm1788, %v1682, %v1770
    %v1847 = vrot.slane %v1846, 2
    %v1848 = vsel %vm1791, %v1682, %v1770
    %v1849 = vrot.slane %v1848, 4
    %v1850 = vsel %vm677, %v1770, %v1682
    %v1851 = vrot.slane %v1850, 6
    %v1852 = vsel %vm1786, %v1684, %v1771
    %v1853 = vsel %vm1788, %v1684, %v1771
    %v1854 = vrot.slane %v1853, 2
    %v1855 = vsel %vm1791, %v1684, %v1771
    %v1856 = vrot.slane %v1855, 4
    %v1857 = vsel %vm677, %v1771, %v1684
    %v1858 = vrot.slane %v1857, 6
    %v1859 = vsel %vm1786, %v1686, %v1772
    %v1860 = vsel %vm1788, %v1686, %v1772
    %v1861 = vrot.slane %v1860, 2
    %v1862 = vsel %vm1791, %v1686, %v1772
    %v1863 = vrot.slane %v1862, 4
    %v1864 = vsel %vm677, %v1772, %v1686
    %v1865 = vrot.slane %v1864, 6
    %v1866 = vsel %vm1786, %v1688, %v1773
    %v1867 = vsel %vm1788, %v1688, %v1773
    %v1868 = vrot.slane %v1867, 2
    %v1869 = vsel %vm1791, %v1688, %v1773
    %v1870 = vrot.slane %v1869, 4
    %v1871 = vsel %vm677, %v1773, %v1688
    %v1872 = vrot.slane %v1871, 6
    %v1873 = vsel %vm1786, %v1690, %v1774
    %v1874 = vsel %vm1788, %v1690, %v1774
    %v1875 = vrot.slane %v1874, 2
    %v1876 = vsel %vm1791, %v1690, %v1774
    %v1877 = vrot.slane %v1876, 4
    %v1878 = vsel %vm677, %v1774, %v1690
    %v1879 = vrot.slane %v1878, 6
    %v1880 = vsel %vm1786, %v1692, %v1775
    %v1881 = vsel %vm1788, %v1692, %v1775
    %v1882 = vrot.slane %v1881, 2
    %v1883 = vsel %vm1791, %v1692, %v1775
    %v1884 = vrot.slane %v1883, 4
    %v1885 = vsel %vm677, %v1775, %v1692
    %v1886 = vrot.slane %v1885, 6
    %v1887 = vsel %vm1786, %v1694, %v1776
    %v1888 = vsel %vm1788, %v1694, %v1776
    %v1889 = vrot.slane %v1888, 2
    %v1890 = vsel %vm1791, %v1694, %v1776
    %v1891 = vrot.slane %v1890, 4
    %v1892 = vsel %vm677, %v1776, %v1694
    %v1893 = vrot.slane %v1892, 6
    %v1894 = vsel %vm1786, %v1696, %v1777
    %v1895 = vsel %vm1788, %v1696, %v1777
    %v1896 = vrot.slane %v1895, 2
    %v1897 = vsel %vm1791, %v1696, %v1777
    %v1898 = vrot.slane %v1897, 4
    %v1899 = vsel %vm677, %v1777, %v1696
    %v1900 = vrot.slane %v1899, 6
    %v1901 = vsel %vm1786, %v1698, %v1778
    %v1902 = vsel %vm1788, %v1698, %v1778
    %v1903 = vrot.slane %v1902, 2
    %v1904 = vsel %vm1791, %v1698, %v1778
    %v1905 = vrot.slane %v1904, 4
    %v1906 = vsel %vm677, %v1778, %v1698
    %v1907 = vrot.slane %v1906, 6
    %v1908 = vsel %vm1786, %v1700, %v1779
    %v1909 = vsel %vm1788, %v1700, %v1779
    %v1910 = vrot.slane %v1909, 2
    %v1911 = vsel %vm1791, %v1700, %v1779
    %v1912 = vrot.slane %v1911, 4
    %v1913 = vsel %vm677, %v1779, %v1700
    %v1914 = vrot.slane %v1913, 6
    %v1915 = vsel %vm1786, %v1702, %v1780
    %v1916 = vsel %vm1788, %v1702, %v1780
    %v1917 = vrot.slane %v1916, 2
    %v1918 = vsel %vm1791, %v1702, %v1780
    %v1919 = vrot.slane %v1918, 4
    %v1920 = vsel %vm677, %v1780, %v1702
    %v1921 = vrot.slane %v1920, 6
    %v1922 = vsel %vm1786, %v1704, %v1781
    %v1923 = vsel %vm1788, %v1704, %v1781
    %v1924 = vrot.slane %v1923, 2
    %v1925 = vsel %vm1791, %v1704, %v1781
    %v1926 = vrot.slane %v1925, 4
    %v1927 = vsel %vm677, %v1781, %v1704
    %v1928 = vrot.slane %v1927, 6
    %v1929 = vsel %vm1786, %v1706, %v1782
    %v1930 = vsel %vm1788, %v1706, %v1782
    %v1931 = vrot.slane %v1930, 2
    %v1932 = vsel %vm1791, %v1706, %v1782
    %v1933 = vrot.slane %v1932, 4
    %v1934 = vsel %vm677, %v1782, %v1706
    %v1935 = vrot.slane %v1934, 6
    %v1936 = vsel %vm1786, %v1708, %v1783
    %v1937 = vsel %vm1788, %v1708, %v1783
    %v1938 = vrot.slane %v1937, 2
    %v1939 = vsel %vm1791, %v1708, %v1783
    %v1940 = vrot.slane %v1939, 4
    %v1941 = vsel %vm677, %v1783, %v1708
    %v1942 = vrot.slane %v1941, 6
    %v1943 = vsel %vm1786, %v1710, %v1784
    %v1944 = vsel %vm1788, %v1710, %v1784
    %v1945 = vrot.slane %v1944, 2
    %v1946 = vsel %vm1791, %v1710, %v1784
    %v1947 = vrot.slane %v1946, 4
    %v1948 = vsel %vm677, %v1784, %v1710
    %v1949 = vrot.slane %v1948, 6
    %v1950 = vsel %vm1786, %v1712, %v1785
    %v1951 = vsel %vm1788, %v1712, %v1785
    %v1952 = vrot.slane %v1951, 2
    %v1953 = vsel %vm1791, %v1712, %v1785
    %v1954 = vrot.slane %v1953, 4
    %v1955 = vsel %vm677, %v1785, %v1712
    %v1956 = vrot.slane %v1955, 6
    %v2053 = vrot.slane %v1787, 7
    %v2054 = vrot.slane %v2053, 2
    %v2055 = vrot.slane %v1790, 7
    %v2056 = vrot.slane %v2055, 2
    %v2057 = vrot.slane %v1793, 7
    %v2058 = vrot.slane %v2057, 2
    %v2059 = vrot.slane %v1795, 7
    %v2060 = vrot.slane %v2059, 2
    %v2061 = vrot.slane %v1796, 7
    %v2062 = vrot.slane %v2061, 2
    %v2063 = vrot.slane %v1798, 7
    %v2064 = vrot.slane %v2063, 2
    %v2065 = vrot.slane %v1800, 7
    %v2066 = vrot.slane %v2065, 2
    %v2067 = vrot.slane %v1802, 7
    %v2068 = vrot.slane %v2067, 2
    %v2069 = vrot.slane %v1803, 7
    %v2070 = vrot.slane %v2069, 2
    %v2071 = vrot.slane %v1805, 7
    %v2072 = vrot.slane %v2071, 2
    %v2073 = vrot.slane %v1807, 7
    %v2074 = vrot.slane %v2073, 2
    %v2075 = vrot.slane %v1809, 7
    %v2076 = vrot.slane %v2075, 2
    %v2077 = vrot.slane %v1810, 7
    %v2078 = vrot.slane %v2077, 2
    %v2079 = vrot.slane %v1812, 7
    %v2080 = vrot.slane %v2079, 2
    %v2081 = vrot.slane %v1814, 7
    %v2082 = vrot.slane %v2081, 2
    %v2083 = vrot.slane %v1816, 7
    %v2084 = vrot.slane %v2083, 2
    %v2085 = vrot.slane %v1817, 7
    %v2086 = vrot.slane %v2085, 2
    %v2087 = vrot.slane %v1819, 7
    %v2088 = vrot.slane %v2087, 2
    %v2089 = vrot.slane %v1821, 7
    %v2090 = vrot.slane %v2089, 2
    %v2091 = vrot.slane %v1823, 7
    %v2092 = vrot.slane %v2091, 2
    %v2093 = vrot.slane %v1824, 7
    %v2094 = vrot.slane %v2093, 2
    %v2095 = vrot.slane %v1826, 7
    %v2096 = vrot.slane %v2095, 2
    %v2097 = vrot.slane %v1828, 7
    %v2098 = vrot.slane %v2097, 2
    %v2099 = vrot.slane %v1830, 7
    %v2100 = vrot.slane %v2099, 2
    %v2101 = vrot.slane %v1831, 7
    %v2102 = vrot.slane %v2101, 2
    %v2103 = vrot.slane %v1833, 7
    %v2104 = vrot.slane %v2103, 2
    %v2105 = vrot.slane %v1835, 7
    %v2106 = vrot.slane %v2105, 2
    %v2107 = vrot.slane %v1837, 7
    %v2108 = vrot.slane %v2107, 2
    %v2109 = vrot.slane %v1838, 7
    %v2110 = vrot.slane %v2109, 2
    %v2111 = vrot.slane %v1840, 7
    %v2112 = vrot.slane %v2111, 2
    %v2113 = vrot.slane %v1842, 7
    %v2114 = vrot.slane %v2113, 2
    %v2115 = vrot.slane %v1844, 7
    %v2116 = vrot.slane %v2115, 2
    %v2117 = vrot.slane %v1845, 7
    %v2118 = vrot.slane %v2117, 2
    %v2119 = vrot.slane %v1847, 7
    %v2120 = vrot.slane %v2119, 2
    %v2121 = vrot.slane %v1849, 7
    %v2122 = vrot.slane %v2121, 2
    %v2123 = vrot.slane %v1851, 7
    %v2124 = vrot.slane %v2123, 2
    %v2125 = vrot.slane %v1852, 7
    %v2126 = vrot.slane %v2125, 2
    %v2127 = vrot.slane %v1854, 7
    %v2128 = vrot.slane %v2127, 2
    %v2129 = vrot.slane %v1856, 7
    %v2130 = vrot.slane %v2129, 2
    %v2131 = vrot.slane %v1858, 7
    %v2132 = vrot.slane %v2131, 2
    %v2133 = vrot.slane %v1859, 7
    %v2134 = vrot.slane %v2133, 2
    %v2135 = vrot.slane %v1861, 7
    %v2136 = vrot.slane %v2135, 2
    %v2137 = vrot.slane %v1863, 7
    %v2138 = vrot.slane %v2137, 2
    %v2139 = vrot.slane %v1865, 7
    %v2140 = vrot.slane %v2139, 2
    %v2141 = vrot.slane %v1866, 7
    %v2142 = vrot.slane %v2141, 2
    %v2143 = vrot.slane %v1868, 7
    %v2144 = vrot.slane %v2143, 2
    %v2145 = vrot.slane %v1870, 7
    %v2146 = vrot.slane %v2145, 2
    %v2147 = vrot.slane %v1872, 7
    %v2148 = vrot.slane %v2147, 2
    %v2149 = vrot.slane %v1873, 7
    %v2150 = vrot.slane %v2149, 2
    %v2151 = vrot.slane %v1875, 7
    %v2152 = vrot.slane %v2151, 2
    %v2153 = vrot.slane %v1877, 7
    %v2154 = vrot.slane %v2153, 2
    %v2155 = vrot.slane %v1879, 7
    %v2156 = vrot.slane %v2155, 2
    %v2157 = vrot.slane %v1880, 7
    %v2158 = vrot.slane %v2157, 2
    %v2159 = vrot.slane %v1882, 7
    %v2160 = vrot.slane %v2159, 2
    %v2161 = vrot.slane %v1884, 7
    %v2162 = vrot.slane %v2161, 2
    %v2163 = vrot.slane %v1886, 7
    %v2164 = vrot.slane %v2163, 2
    %v2165 = vrot.slane %v1887, 7
    %v2166 = vrot.slane %v2165, 2
    %v2167 = vrot.slane %v1889, 7
    %v2168 = vrot.slane %v2167, 2
    %v2169 = vrot.slane %v1891, 7
    %v2170 = vrot.slane %v2169, 2
    %v2171 = vrot.slane %v1893, 7
    %v2172 = vrot.slane %v2171, 2
    %v2173 = vrot.slane %v1894, 7
    %v2174 = vrot.slane %v2173, 2
    %v2175 = vrot.slane %v1896, 7
    %v2176 = vrot.slane %v2175, 2
    %v2177 = vrot.slane %v1898, 7
    %v2178 = vrot.slane %v2177, 2
    %v2179 = vrot.slane %v1900, 7
    %v2180 = vrot.slane %v2179, 2
    %v2181 = vrot.slane %v1901, 7
    %v2182 = vrot.slane %v2181, 2
    %v2183 = vrot.slane %v1903, 7
    %v2184 = vrot.slane %v2183, 2
    %v2185 = vrot.slane %v1905, 7
    %v2186 = vrot.slane %v2185, 2
    %v2187 = vrot.slane %v1907, 7
    %v2188 = vrot.slane %v2187, 2
    %v2189 = vrot.slane %v1908, 7
    %v2190 = vrot.slane %v2189, 2
    %v2191 = vrot.slane %v1910, 7
    %v2192 = vrot.slane %v2191, 2
    %v2193 = vrot.slane %v1912, 7
    %v2194 = vrot.slane %v2193, 2
    %v2195 = vrot.slane %v1914, 7
    %v2196 = vrot.slane %v2195, 2
    %v2197 = vrot.slane %v1915, 7
    %v2198 = vrot.slane %v2197, 2
    %v2199 = vrot.slane %v1917, 7
    %v2200 = vrot.slane %v2199, 2
    %v2201 = vrot.slane %v1919, 7
    %v2202 = vrot.slane %v2201, 2
    %v2203 = vrot.slane %v1921, 7
    %v2204 = vrot.slane %v2203, 2
    %v2205 = vrot.slane %v1922, 7
    %v2206 = vrot.slane %v2205, 2
    %v2207 = vrot.slane %v1924, 7
    %v2208 = vrot.slane %v2207, 2
    %v2209 = vrot.slane %v1926, 7
    %v2210 = vrot.slane %v2209, 2
    %v2211 = vrot.slane %v1928, 7
    %v2212 = vrot.slane %v2211, 2
    %v2213 = vrot.slane %v1929, 7
    %v2214 = vrot.slane %v2213, 2
    %v2215 = vrot.slane %v1931, 7
    %v2216 = vrot.slane %v2215, 2
    %v2217 = vrot.slane %v1933, 7
    %v2218 = vrot.slane %v2217, 2
    %v2219 = vrot.slane %v1935, 7
    %v2220 = vrot.slane %v2219, 2
    %v2221 = vrot.slane %v1936, 7
    %v2222 = vrot.slane %v2221, 2
    %v2223 = vrot.slane %v1938, 7
    %v2224 = vrot.slane %v2223, 2
    %v2225 = vrot.slane %v1940, 7
    %v2226 = vrot.slane %v2225, 2
    %v2227 = vrot.slane %v1942, 7
    %v2228 = vrot.slane %v2227, 2
    %v2229 = vrot.slane %v1943, 7
    %v2230 = vrot.slane %v2229, 2
    %v2231 = vrot.slane %v1945, 7
    %v2232 = vrot.slane %v2231, 2
    %v2233 = vrot.slane %v1947, 7
    %v2234 = vrot.slane %v2233, 2
    %v2235 = vrot.slane %v1949, 7
    %v2236 = vrot.slane %v2235, 2
    %v2237 = vrot.slane %v1950, 7
    %v2238 = vrot.slane %v2237, 2
    %v2239 = vrot.slane %v1952, 7
    %v2240 = vrot.slane %v2239, 2
    %v2241 = vrot.slane %v1954, 7
    %v2242 = vrot.slane %v2241, 2
    %v2243 = vrot.slane %v1956, 7
    %v2244 = vrot.slane %v2243, 2
    %v2341 = vmax.f32 %v1787, %v2054
    %v2342 = vmax.f32 %v1790, %v2056
    %v2343 = vmax.f32 %v1793, %v2058
    %v2344 = vmax.f32 %v1795, %v2060
    %v2345 = vmax.f32 %v1796, %v2062
    %v2346 = vmax.f32 %v1798, %v2064
    %v2347 = vmax.f32 %v1800, %v2066
    %v2348 = vmax.f32 %v1802, %v2068
    %v2349 = vmax.f32 %v1803, %v2070
    %v2350 = vmax.f32 %v1805, %v2072
    %v2351 = vmax.f32 %v1807, %v2074
    %v2352 = vmax.f32 %v1809, %v2076
    %v2353 = vmax.f32 %v1810, %v2078
    %v2354 = vmax.f32 %v1812, %v2080
    %v2355 = vmax.f32 %v1814, %v2082
    %v2356 = vmax.f32 %v1816, %v2084
    %v2357 = vmax.f32 %v1817, %v2086
    %v2358 = vmax.f32 %v1819, %v2088
    %v2359 = vmax.f32 %v1821, %v2090
    %v2360 = vmax.f32 %v1823, %v2092
    %v2361 = vmax.f32 %v1824, %v2094
    %v2362 = vmax.f32 %v1826, %v2096
    %v2363 = vmax.f32 %v1828, %v2098
    %v2364 = vmax.f32 %v1830, %v2100
    %v2365 = vmax.f32 %v1831, %v2102
    %v2366 = vmax.f32 %v1833, %v2104
    %v2367 = vmax.f32 %v1835, %v2106
    %v2368 = vmax.f32 %v1837, %v2108
    %v2369 = vmax.f32 %v1838, %v2110
    %v2370 = vmax.f32 %v1840, %v2112
    %v2371 = vmax.f32 %v1842, %v2114
    %v2372 = vmax.f32 %v1844, %v2116
    %v2373 = vmax.f32 %v1845, %v2118
    %v2374 = vmax.f32 %v1847, %v2120
    %v2375 = vmax.f32 %v1849, %v2122
    %v2376 = vmax.f32 %v1851, %v2124
    %v2377 = vmax.f32 %v1852, %v2126
    %v2378 = vmax.f32 %v1854, %v2128
    %v2379 = vmax.f32 %v1856, %v2130
    %v2380 = vmax.f32 %v1858, %v2132
    %v2381 = vmax.f32 %v1859, %v2134
    %v2382 = vmax.f32 %v1861, %v2136
    %v2383 = vmax.f32 %v1863, %v2138
    %v2384 = vmax.f32 %v1865, %v2140
    %v2385 = vmax.f32 %v1866, %v2142
    %v2386 = vmax.f32 %v1868, %v2144
    %v2387 = vmax.f32 %v1870, %v2146
    %v2388 = vmax.f32 %v1872, %v2148
    %v2389 = vmax.f32 %v1873, %v2150
    %v2390 = vmax.f32 %v1875, %v2152
    %v2391 = vmax.f32 %v1877, %v2154
    %v2392 = vmax.f32 %v1879, %v2156
    %v2393 = vmax.f32 %v1880, %v2158
    %v2394 = vmax.f32 %v1882, %v2160
    %v2395 = vmax.f32 %v1884, %v2162
    %v2396 = vmax.f32 %v1886, %v2164
    %v2397 = vmax.f32 %v1887, %v2166
    %v2398 = vmax.f32 %v1889, %v2168
    %v2399 = vmax.f32 %v1891, %v2170
    %v2400 = vmax.f32 %v1893, %v2172
    %v2401 = vmax.f32 %v1894, %v2174
    %v2402 = vmax.f32 %v1896, %v2176
    %v2403 = vmax.f32 %v1898, %v2178
    %v2404 = vmax.f32 %v1900, %v2180
    %v2405 = vmax.f32 %v1901, %v2182
    %v2406 = vmax.f32 %v1903, %v2184
    %v2407 = vmax.f32 %v1905, %v2186
    %v2408 = vmax.f32 %v1907, %v2188
    %v2409 = vmax.f32 %v1908, %v2190
    %v2410 = vmax.f32 %v1910, %v2192
    %v2411 = vmax.f32 %v1912, %v2194
    %v2412 = vmax.f32 %v1914, %v2196
    %v2413 = vmax.f32 %v1915, %v2198
    %v2414 = vmax.f32 %v1917, %v2200
    %v2415 = vmax.f32 %v1919, %v2202
    %v2416 = vmax.f32 %v1921, %v2204
    %v2417 = vmax.f32 %v1922, %v2206
    %v2418 = vmax.f32 %v1924, %v2208
    %v2419 = vmax.f32 %v1926, %v2210
    %v2420 = vmax.f32 %v1928, %v2212
    %v2421 = vmax.f32 %v1929, %v2214
    %v2422 = vmax.f32 %v1931, %v2216
    %v2423 = vmax.f32 %v1933, %v2218
    %v2424 = vmax.f32 %v1935, %v2220
    %v2425 = vmax.f32 %v1936, %v2222
    %v2426 = vmax.f32 %v1938, %v2224
    %v2427 = vmax.f32 %v1940, %v2226
    %v2428 = vmax.f32 %v1942, %v2228
    %v2429 = vmax.f32 %v1943, %v2230
    %v2430 = vmax.f32 %v1945, %v2232
    %v2431 = vmax.f32 %v1947, %v2234
    %v2432 = vmax.f32 %v1949, %v2236
    %v2433 = vmax.f32 %v1950, %v2238
    %v2434 = vmax.f32 %v1952, %v2240
    %v2435 = vmax.f32 %v1954, %v2242
    %v2436 = vmax.f32 %v1956, %v2244
    %2533 = vrot.lane.b32.xlu0 %v2341, 56
    %v2534 = vpop.permute.xlu0 %2533
    %2535 = vrot.lane.b32.xlu0 %v2342, 56
    %v2536 = vpop.permute.xlu0 %2535
    %2537 = vrot.lane.b32.xlu0 %v2343, 56
    %v2538 = vpop.permute.xlu0 %2537
    %2539 = vrot.lane.b32.xlu0 %v2344, 56
    %v2540 = vpop.permute.xlu0 %2539
    %2541 = vrot.lane.b32.xlu0 %v2345, 56
    %v2542 = vpop.permute.xlu0 %2541
    %2543 = vrot.lane.b32.xlu0 %v2346, 56
    %v2544 = vpop.permute.xlu0 %2543
    %2545 = vrot.lane.b32.xlu0 %v2347, 56
    %v2546 = vpop.permute.xlu0 %2545
    %2547 = vrot.lane.b32.xlu0 %v2348, 56
    %v2548 = vpop.permute.xlu0 %2547
    %2549 = vrot.lane.b32.xlu0 %v2349, 56
    %v2550 = vpop.permute.xlu0 %2549
    %2551 = vrot.lane.b32.xlu0 %v2350, 56
    %v2552 = vpop.permute.xlu0 %2551
    %2553 = vrot.lane.b32.xlu0 %v2351, 56
    %v2554 = vpop.permute.xlu0 %2553
    %2555 = vrot.lane.b32.xlu0 %v2352, 56
    %v2556 = vpop.permute.xlu0 %2555
    %2557 = vrot.lane.b32.xlu0 %v2353, 56
    %v2558 = vpop.permute.xlu0 %2557
    %2559 = vrot.lane.b32.xlu0 %v2354, 56
    %v2560 = vpop.permute.xlu0 %2559
    %2561 = vrot.lane.b32.xlu0 %v2355, 56
    %v2562 = vpop.permute.xlu0 %2561
    %2563 = vrot.lane.b32.xlu0 %v2356, 56
    %v2564 = vpop.permute.xlu0 %2563
    %2565 = vrot.lane.b32.xlu0 %v2357, 56
    %v2566 = vpop.permute.xlu0 %2565
    %2567 = vrot.lane.b32.xlu0 %v2358, 56
    %v2568 = vpop.permute.xlu0 %2567
    %2569 = vrot.lane.b32.xlu0 %v2359, 56
    %v2570 = vpop.permute.xlu0 %2569
    %2571 = vrot.lane.b32.xlu0 %v2360, 56
    %v2572 = vpop.permute.xlu0 %2571
    %2573 = vrot.lane.b32.xlu0 %v2361, 56
    %v2574 = vpop.permute.xlu0 %2573
    %2575 = vrot.lane.b32.xlu0 %v2362, 56
    %v2576 = vpop.permute.xlu0 %2575
    %2577 = vrot.lane.b32.xlu0 %v2363, 56
    %v2578 = vpop.permute.xlu0 %2577
    %2579 = vrot.lane.b32.xlu0 %v2364, 56
    %v2580 = vpop.permute.xlu0 %2579
    %2581 = vrot.lane.b32.xlu0 %v2365, 56
    %v2582 = vpop.permute.xlu0 %2581
    %2583 = vrot.lane.b32.xlu0 %v2366, 56
    %v2584 = vpop.permute.xlu0 %2583
    %2585 = vrot.lane.b32.xlu0 %v2367, 56
    %v2586 = vpop.permute.xlu0 %2585
    %2587 = vrot.lane.b32.xlu0 %v2368, 56
    %v2588 = vpop.permute.xlu0 %2587
    %2589 = vrot.lane.b32.xlu0 %v2369, 56
    %v2590 = vpop.permute.xlu0 %2589
    %2591 = vrot.lane.b32.xlu0 %v2370, 56
    %v2592 = vpop.permute.xlu0 %2591
    %2593 = vrot.lane.b32.xlu0 %v2371, 56
    %v2594 = vpop.permute.xlu0 %2593
    %2595 = vrot.lane.b32.xlu0 %v2372, 56
    %v2596 = vpop.permute.xlu0 %2595
    %2597 = vrot.lane.b32.xlu0 %v2373, 56
    %v2598 = vpop.permute.xlu0 %2597
    %2599 = vrot.lane.b32.xlu0 %v2374, 56
    %v2600 = vpop.permute.xlu0 %2599
    %2601 = vrot.lane.b32.xlu0 %v2375, 56
    %v2602 = vpop.permute.xlu0 %2601
    %2603 = vrot.lane.b32.xlu0 %v2376, 56
    %v2604 = vpop.permute.xlu0 %2603
    %2605 = vrot.lane.b32.xlu0 %v2377, 56
    %v2606 = vpop.permute.xlu0 %2605
    %2607 = vrot.lane.b32.xlu0 %v2378, 56
    %v2608 = vpop.permute.xlu0 %2607
    %2609 = vrot.lane.b32.xlu0 %v2379, 56
    %v2610 = vpop.permute.xlu0 %2609
    %2611 = vrot.lane.b32.xlu0 %v2380, 56
    %v2612 = vpop.permute.xlu0 %2611
    %2613 = vrot.lane.b32.xlu0 %v2381, 56
    %v2614 = vpop.permute.xlu0 %2613
    %2615 = vrot.lane.b32.xlu0 %v2382, 56
    %v2616 = vpop.permute.xlu0 %2615
    %2617 = vrot.lane.b32.xlu0 %v2383, 56
    %v2618 = vpop.permute.xlu0 %2617
    %2619 = vrot.lane.b32.xlu0 %v2384, 56
    %v2620 = vpop.permute.xlu0 %2619
    %2621 = vrot.lane.b32.xlu0 %v2385, 56
    %v2622 = vpop.permute.xlu0 %2621
    %2623 = vrot.lane.b32.xlu0 %v2386, 56
    %v2624 = vpop.permute.xlu0 %2623
    %2625 = vrot.lane.b32.xlu0 %v2387, 56
    %v2626 = vpop.permute.xlu0 %2625
    %2627 = vrot.lane.b32.xlu0 %v2388, 56
    %v2628 = vpop.permute.xlu0 %2627
    %2629 = vrot.lane.b32.xlu0 %v2389, 56
    %v2630 = vpop.permute.xlu0 %2629
    %2631 = vrot.lane.b32.xlu0 %v2390, 56
    %v2632 = vpop.permute.xlu0 %2631
    %2633 = vrot.lane.b32.xlu0 %v2391, 56
    %v2634 = vpop.permute.xlu0 %2633
    %2635 = vrot.lane.b32.xlu0 %v2392, 56
    %v2636 = vpop.permute.xlu0 %2635
    %2637 = vrot.lane.b32.xlu0 %v2393, 56
    %v2638 = vpop.permute.xlu0 %2637
    %2639 = vrot.lane.b32.xlu0 %v2394, 56
    %v2640 = vpop.permute.xlu0 %2639
    %2641 = vrot.lane.b32.xlu0 %v2395, 56
    %v2642 = vpop.permute.xlu0 %2641
    %2643 = vrot.lane.b32.xlu0 %v2396, 56
    %v2644 = vpop.permute.xlu0 %2643
    %2645 = vrot.lane.b32.xlu0 %v2397, 56
    %v2646 = vpop.permute.xlu0 %2645
    %2647 = vrot.lane.b32.xlu0 %v2398, 56
    %v2648 = vpop.permute.xlu0 %2647
    %2649 = vrot.lane.b32.xlu0 %v2399, 56
    %v2650 = vpop.permute.xlu0 %2649
    %2651 = vrot.lane.b32.xlu0 %v2400, 56
    %v2652 = vpop.permute.xlu0 %2651
    %2653 = vrot.lane.b32.xlu0 %v2401, 56
    %v2654 = vpop.permute.xlu0 %2653
    %2655 = vrot.lane.b32.xlu0 %v2402, 56
    %v2656 = vpop.permute.xlu0 %2655
    %2657 = vrot.lane.b32.xlu0 %v2403, 56
    %v2658 = vpop.permute.xlu0 %2657
    %2659 = vrot.lane.b32.xlu0 %v2404, 56
    %v2660 = vpop.permute.xlu0 %2659
    %2661 = vrot.lane.b32.xlu0 %v2405, 56
    %v2662 = vpop.permute.xlu0 %2661
    %2663 = vrot.lane.b32.xlu0 %v2406, 56
    %v2664 = vpop.permute.xlu0 %2663
    %2665 = vrot.lane.b32.xlu0 %v2407, 56
    %v2666 = vpop.permute.xlu0 %2665
    %2667 = vrot.lane.b32.xlu0 %v2408, 56
    %v2668 = vpop.permute.xlu0 %2667
    %2669 = vrot.lane.b32.xlu0 %v2409, 56
    %v2670 = vpop.permute.xlu0 %2669
    %2671 = vrot.lane.b32.xlu0 %v2410, 56
    %v2672 = vpop.permute.xlu0 %2671
    %2673 = vrot.lane.b32.xlu0 %v2411, 56
    %v2674 = vpop.permute.xlu0 %2673
    %2675 = vrot.lane.b32.xlu0 %v2412, 56
    %v2676 = vpop.permute.xlu0 %2675
    %2677 = vrot.lane.b32.xlu0 %v2413, 56
    %v2678 = vpop.permute.xlu0 %2677
    %2679 = vrot.lane.b32.xlu0 %v2414, 56
    %v2680 = vpop.permute.xlu0 %2679
    %2681 = vrot.lane.b32.xlu0 %v2415, 56
    %v2682 = vpop.permute.xlu0 %2681
    %2683 = vrot.lane.b32.xlu0 %v2416, 56
    %v2684 = vpop.permute.xlu0 %2683
    %2685 = vrot.lane.b32.xlu0 %v2417, 56
    %v2686 = vpop.permute.xlu0 %2685
    %2687 = vrot.lane.b32.xlu0 %v2418, 56
    %v2688 = vpop.permute.xlu0 %2687
    %2689 = vrot.lane.b32.xlu0 %v2419, 56
    %v2690 = vpop.permute.xlu0 %2689
    %2691 = vrot.lane.b32.xlu0 %v2420, 56
    %v2692 = vpop.permute.xlu0 %2691
    %2693 = vrot.lane.b32.xlu0 %v2421, 56
    %v2694 = vpop.permute.xlu0 %2693
    %2695 = vrot.lane.b32.xlu0 %v2422, 56
    %v2696 = vpop.permute.xlu0 %2695
    %2697 = vrot.lane.b32.xlu0 %v2423, 56
    %v2698 = vpop.permute.xlu0 %2697
    %2699 = vrot.lane.b32.xlu0 %v2424, 56
    %v2700 = vpop.permute.xlu0 %2699
    %2701 = vrot.lane.b32.xlu0 %v2425, 56
    %v2702 = vpop.permute.xlu0 %2701
    %2703 = vrot.lane.b32.xlu0 %v2426, 56
    %v2704 = vpop.permute.xlu0 %2703
    %2705 = vrot.lane.b32.xlu0 %v2427, 56
    %v2706 = vpop.permute.xlu0 %2705
    %2707 = vrot.lane.b32.xlu0 %v2428, 56
    %v2708 = vpop.permute.xlu0 %2707
    %2709 = vrot.lane.b32.xlu0 %v2429, 56
    %v2710 = vpop.permute.xlu0 %2709
    %2711 = vrot.lane.b32.xlu0 %v2430, 56
    %v2712 = vpop.permute.xlu0 %2711
    %2713 = vrot.lane.b32.xlu0 %v2431, 56
    %v2714 = vpop.permute.xlu0 %2713
    %2715 = vrot.lane.b32.xlu0 %v2432, 56
    %v2716 = vpop.permute.xlu0 %2715
    %2717 = vrot.lane.b32.xlu0 %v2433, 56
    %v2718 = vpop.permute.xlu0 %2717
    %2719 = vrot.lane.b32.xlu0 %v2434, 56
    %v2720 = vpop.permute.xlu0 %2719
    %2721 = vrot.lane.b32.xlu0 %v2435, 56
    %v2722 = vpop.permute.xlu0 %2721
    %2723 = vrot.lane.b32.xlu0 %v2436, 56
    %v2724 = vpop.permute.xlu0 %2723
    %v2725 = vrot.slane %v2534, 2
    %v2726 = vrot.slane %v2536, 2
    %v2727 = vrot.slane %v2538, 2
    %v2728 = vrot.slane %v2540, 2
    %v2729 = vrot.slane %v2542, 2
    %v2730 = vrot.slane %v2544, 2
    %v2731 = vrot.slane %v2546, 2
    %v2732 = vrot.slane %v2548, 2
    %v2733 = vrot.slane %v2550, 2
    %v2734 = vrot.slane %v2552, 2
    %v2735 = vrot.slane %v2554, 2
    %v2736 = vrot.slane %v2556, 2
    %v2737 = vrot.slane %v2558, 2
    %v2738 = vrot.slane %v2560, 2
    %v2739 = vrot.slane %v2562, 2
    %v2740 = vrot.slane %v2564, 2
    %v2741 = vrot.slane %v2566, 2
    %v2742 = vrot.slane %v2568, 2
    %v2743 = vrot.slane %v2570, 2
    %v2744 = vrot.slane %v2572, 2
    %v2745 = vrot.slane %v2574, 2
    %v2746 = vrot.slane %v2576, 2
    %v2747 = vrot.slane %v2578, 2
    %v2748 = vrot.slane %v2580, 2
    %v2749 = vrot.slane %v2582, 2
    %v2750 = vrot.slane %v2584, 2
    %v2751 = vrot.slane %v2586, 2
    %v2752 = vrot.slane %v2588, 2
    %v2753 = vrot.slane %v2590, 2
    %v2754 = vrot.slane %v2592, 2
    %v2755 = vrot.slane %v2594, 2
    %v2756 = vrot.slane %v2596, 2
    %v2757 = vrot.slane %v2598, 2
    %v2758 = vrot.slane %v2600, 2
    %v2759 = vrot.slane %v2602, 2
    %v2760 = vrot.slane %v2604, 2
    %v2761 = vrot.slane %v2606, 2
    %v2762 = vrot.slane %v2608, 2
    %v2763 = vrot.slane %v2610, 2
    %v2764 = vrot.slane %v2612, 2
    %v2765 = vrot.slane %v2614, 2
    %v2766 = vrot.slane %v2616, 2
    %v2767 = vrot.slane %v2618, 2
    %v2768 = vrot.slane %v2620, 2
    %v2769 = vrot.slane %v2622, 2
    %v2770 = vrot.slane %v2624, 2
    %v2771 = vrot.slane %v2626, 2
    %v2772 = vrot.slane %v2628, 2
    %v2773 = vrot.slane %v2630, 2
    %v2774 = vrot.slane %v2632, 2
    %v2775 = vrot.slane %v2634, 2
    %v2776 = vrot.slane %v2636, 2
    %v2777 = vrot.slane %v2638, 2
    %v2778 = vrot.slane %v2640, 2
    %v2779 = vrot.slane %v2642, 2
    %v2780 = vrot.slane %v2644, 2
    %v2781 = vrot.slane %v2646, 2
    %v2782 = vrot.slane %v2648, 2
    %v2783 = vrot.slane %v2650, 2
    %v2784 = vrot.slane %v2652, 2
    %v2785 = vrot.slane %v2654, 2
    %v2786 = vrot.slane %v2656, 2
    %v2787 = vrot.slane %v2658, 2
    %v2788 = vrot.slane %v2660, 2
    %v2789 = vrot.slane %v2662, 2
    %v2790 = vrot.slane %v2664, 2
    %v2791 = vrot.slane %v2666, 2
    %v2792 = vrot.slane %v2668, 2
    %v2793 = vrot.slane %v2670, 2
    %v2794 = vrot.slane %v2672, 2
    %v2795 = vrot.slane %v2674, 2
    %v2796 = vrot.slane %v2676, 2
    %v2797 = vrot.slane %v2678, 2
    %v2798 = vrot.slane %v2680, 2
    %v2799 = vrot.slane %v2682, 2
    %v2800 = vrot.slane %v2684, 2
    %v2801 = vrot.slane %v2686, 2
    %v2802 = vrot.slane %v2688, 2
    %v2803 = vrot.slane %v2690, 2
    %v2804 = vrot.slane %v2692, 2
    %v2805 = vrot.slane %v2694, 2
    %v2806 = vrot.slane %v2696, 2
    %v2807 = vrot.slane %v2698, 2
    %v2808 = vrot.slane %v2700, 2
    %v2809 = vrot.slane %v2702, 2
    %v2810 = vrot.slane %v2704, 2
    %v2811 = vrot.slane %v2706, 2
    %v2812 = vrot.slane %v2708, 2
    %v2813 = vrot.slane %v2710, 2
    %v2814 = vrot.slane %v2712, 2
    %v2815 = vrot.slane %v2714, 2
    %v2816 = vrot.slane %v2716, 2
    %v2817 = vrot.slane %v2718, 2
    %v2818 = vrot.slane %v2720, 2
    %v2819 = vrot.slane %v2722, 2
    %v2820 = vrot.slane %v2724, 2
    %vm2821 = vcmask 457728
    %v2822 = vsel %vm2821, %v2534, %v2725
    %v2823 = vsel %vm2821, %v2536, %v2726
    %v2824 = vsel %vm2821, %v2538, %v2727
    %v2825 = vsel %vm2821, %v2540, %v2728
    %v2826 = vsel %vm2821, %v2542, %v2729
    %v2827 = vsel %vm2821, %v2544, %v2730
    %v2828 = vsel %vm2821, %v2546, %v2731
    %v2829 = vsel %vm2821, %v2548, %v2732
    %v2830 = vsel %vm2821, %v2550, %v2733
    %v2831 = vsel %vm2821, %v2552, %v2734
    %v2832 = vsel %vm2821, %v2554, %v2735
    %v2833 = vsel %vm2821, %v2556, %v2736
    %v2834 = vsel %vm2821, %v2558, %v2737
    %v2835 = vsel %vm2821, %v2560, %v2738
    %v2836 = vsel %vm2821, %v2562, %v2739
    %v2837 = vsel %vm2821, %v2564, %v2740
    %v2838 = vsel %vm2821, %v2566, %v2741
    %v2839 = vsel %vm2821, %v2568, %v2742
    %v2840 = vsel %vm2821, %v2570, %v2743
    %v2841 = vsel %vm2821, %v2572, %v2744
    %v2842 = vsel %vm2821, %v2574, %v2745
    %v2843 = vsel %vm2821, %v2576, %v2746
    %v2844 = vsel %vm2821, %v2578, %v2747
    %v2845 = vsel %vm2821, %v2580, %v2748
    %v2846 = vsel %vm2821, %v2582, %v2749
    %v2847 = vsel %vm2821, %v2584, %v2750
    %v2848 = vsel %vm2821, %v2586, %v2751
    %v2849 = vsel %vm2821, %v2588, %v2752
    %v2850 = vsel %vm2821, %v2590, %v2753
    %v2851 = vsel %vm2821, %v2592, %v2754
    %v2852 = vsel %vm2821, %v2594, %v2755
    %v2853 = vsel %vm2821, %v2596, %v2756
    %v2854 = vsel %vm2821, %v2598, %v2757
    %v2855 = vsel %vm2821, %v2600, %v2758
    %v2856 = vsel %vm2821, %v2602, %v2759
    %v2857 = vsel %vm2821, %v2604, %v2760
    %v2858 = vsel %vm2821, %v2606, %v2761
    %v2859 = vsel %vm2821, %v2608, %v2762
    %v2860 = vsel %vm2821, %v2610, %v2763
    %v2861 = vsel %vm2821, %v2612, %v2764
    %v2862 = vsel %vm2821, %v2614, %v2765
    %v2863 = vsel %vm2821, %v2616, %v2766
    %v2864 = vsel %vm2821, %v2618, %v2767
    %v2865 = vsel %vm2821, %v2620, %v2768
    %v2866 = vsel %vm2821, %v2622, %v2769
    %v2867 = vsel %vm2821, %v2624, %v2770
    %v2868 = vsel %vm2821, %v2626, %v2771
    %v2869 = vsel %vm2821, %v2628, %v2772
    %v2870 = vsel %vm2821, %v2630, %v2773
    %v2871 = vsel %vm2821, %v2632, %v2774
    %v2872 = vsel %vm2821, %v2634, %v2775
    %v2873 = vsel %vm2821, %v2636, %v2776
    %v2874 = vsel %vm2821, %v2638, %v2777
    %v2875 = vsel %vm2821, %v2640, %v2778
    %v2876 = vsel %vm2821, %v2642, %v2779
    %v2877 = vsel %vm2821, %v2644, %v2780
    %v2878 = vsel %vm2821, %v2646, %v2781
    %v2879 = vsel %vm2821, %v2648, %v2782
    %v2880 = vsel %vm2821, %v2650, %v2783
    %v2881 = vsel %vm2821, %v2652, %v2784
    %v2882 = vsel %vm2821, %v2654, %v2785
    %v2883 = vsel %vm2821, %v2656, %v2786
    %v2884 = vsel %vm2821, %v2658, %v2787
    %v2885 = vsel %vm2821, %v2660, %v2788
    %v2886 = vsel %vm2821, %v2662, %v2789
    %v2887 = vsel %vm2821, %v2664, %v2790
    %v2888 = vsel %vm2821, %v2666, %v2791
    %v2889 = vsel %vm2821, %v2668, %v2792
    %v2890 = vsel %vm2821, %v2670, %v2793
    %v2891 = vsel %vm2821, %v2672, %v2794
    %v2892 = vsel %vm2821, %v2674, %v2795
    %v2893 = vsel %vm2821, %v2676, %v2796
    %v2894 = vsel %vm2821, %v2678, %v2797
    %v2895 = vsel %vm2821, %v2680, %v2798
    %v2896 = vsel %vm2821, %v2682, %v2799
    %v2897 = vsel %vm2821, %v2684, %v2800
    %v2898 = vsel %vm2821, %v2686, %v2801
    %v2899 = vsel %vm2821, %v2688, %v2802
    %v2900 = vsel %vm2821, %v2690, %v2803
    %v2901 = vsel %vm2821, %v2692, %v2804
    %v2902 = vsel %vm2821, %v2694, %v2805
    %v2903 = vsel %vm2821, %v2696, %v2806
    %v2904 = vsel %vm2821, %v2698, %v2807
    %v2905 = vsel %vm2821, %v2700, %v2808
    %v2906 = vsel %vm2821, %v2702, %v2809
    %v2907 = vsel %vm2821, %v2704, %v2810
    %v2908 = vsel %vm2821, %v2706, %v2811
    %v2909 = vsel %vm2821, %v2708, %v2812
    %v2910 = vsel %vm2821, %v2710, %v2813
    %v2911 = vsel %vm2821, %v2712, %v2814
    %v2912 = vsel %vm2821, %v2714, %v2815
    %v2913 = vsel %vm2821, %v2716, %v2816
    %v2914 = vsel %vm2821, %v2718, %v2817
    %v2915 = vsel %vm2821, %v2720, %v2818
    %v2916 = vsel %vm2821, %v2722, %v2819
    %v2917 = vsel %vm2821, %v2724, %v2820
    %v3014 = vmax.f32 %v2341, %v2822
    %v3015 = vmax.f32 %v2342, %v2823
    %v3016 = vmax.f32 %v2343, %v2824
    %v3017 = vmax.f32 %v2344, %v2825
    %v3018 = vmax.f32 %v2345, %v2826
    %v3019 = vmax.f32 %v2346, %v2827
    %v3020 = vmax.f32 %v2347, %v2828
    %v3021 = vmax.f32 %v2348, %v2829
    %v3022 = vmax.f32 %v2349, %v2830
    %v3023 = vmax.f32 %v2350, %v2831
    %v3024 = vmax.f32 %v2351, %v2832
    %v3025 = vmax.f32 %v2352, %v2833
    %v3026 = vmax.f32 %v2353, %v2834
    %v3027 = vmax.f32 %v2354, %v2835
    %v3028 = vmax.f32 %v2355, %v2836
    %v3029 = vmax.f32 %v2356, %v2837
    %v3030 = vmax.f32 %v2357, %v2838
    %v3031 = vmax.f32 %v2358, %v2839
    %v3032 = vmax.f32 %v2359, %v2840
    %v3033 = vmax.f32 %v2360, %v2841
    %v3034 = vmax.f32 %v2361, %v2842
    %v3035 = vmax.f32 %v2362, %v2843
    %v3036 = vmax.f32 %v2363, %v2844
    %v3037 = vmax.f32 %v2364, %v2845
    %v3038 = vmax.f32 %v2365, %v2846
    %v3039 = vmax.f32 %v2366, %v2847
    %v3040 = vmax.f32 %v2367, %v2848
    %v3041 = vmax.f32 %v2368, %v2849
    %v3042 = vmax.f32 %v2369, %v2850
    %v3043 = vmax.f32 %v2370, %v2851
    %v3044 = vmax.f32 %v2371, %v2852
    %v3045 = vmax.f32 %v2372, %v2853
    %v3046 = vmax.f32 %v2373, %v2854
    %v3047 = vmax.f32 %v2374, %v2855
    %v3048 = vmax.f32 %v2375, %v2856
    %v3049 = vmax.f32 %v2376, %v2857
    %v3050 = vmax.f32 %v2377, %v2858
    %v3051 = vmax.f32 %v2378, %v2859
    %v3052 = vmax.f32 %v2379, %v2860
    %v3053 = vmax.f32 %v2380, %v2861
    %v3054 = vmax.f32 %v2381, %v2862
    %v3055 = vmax.f32 %v2382, %v2863
    %v3056 = vmax.f32 %v2383, %v2864
    %v3057 = vmax.f32 %v2384, %v2865
    %v3058 = vmax.f32 %v2385, %v2866
    %v3059 = vmax.f32 %v2386, %v2867
    %v3060 = vmax.f32 %v2387, %v2868
    %v3061 = vmax.f32 %v2388, %v2869
    %v3062 = vmax.f32 %v2389, %v2870
    %v3063 = vmax.f32 %v2390, %v2871
    %v3064 = vmax.f32 %v2391, %v2872
    %v3065 = vmax.f32 %v2392, %v2873
    %v3066 = vmax.f32 %v2393, %v2874
    %v3067 = vmax.f32 %v2394, %v2875
    %v3068 = vmax.f32 %v2395, %v2876
    %v3069 = vmax.f32 %v2396, %v2877
    %v3070 = vmax.f32 %v2397, %v2878
    %v3071 = vmax.f32 %v2398, %v2879
    %v3072 = vmax.f32 %v2399, %v2880
    %v3073 = vmax.f32 %v2400, %v2881
    %v3074 = vmax.f32 %v2401, %v2882
    %v3075 = vmax.f32 %v2402, %v2883
    %v3076 = vmax.f32 %v2403, %v2884
    %v3077 = vmax.f32 %v2404, %v2885
    %v3078 = vmax.f32 %v2405, %v2886
    %v3079 = vmax.f32 %v2406, %v2887
    %v3080 = vmax.f32 %v2407, %v2888
    %v3081 = vmax.f32 %v2408, %v2889
    %v3082 = vmax.f32 %v2409, %v2890
    %v3083 = vmax.f32 %v2410, %v2891
    %v3084 = vmax.f32 %v2411, %v2892
    %v3085 = vmax.f32 %v2412, %v2893
    %v3086 = vmax.f32 %v2413, %v2894
    %v3087 = vmax.f32 %v2414, %v2895
    %v3088 = vmax.f32 %v2415, %v2896
    %v3089 = vmax.f32 %v2416, %v2897
    %v3090 = vmax.f32 %v2417, %v2898
    %v3091 = vmax.f32 %v2418, %v2899
    %v3092 = vmax.f32 %v2419, %v2900
    %v3093 = vmax.f32 %v2420, %v2901
    %v3094 = vmax.f32 %v2421, %v2902
    %v3095 = vmax.f32 %v2422, %v2903
    %v3096 = vmax.f32 %v2423, %v2904
    %v3097 = vmax.f32 %v2424, %v2905
    %v3098 = vmax.f32 %v2425, %v2906
    %v3099 = vmax.f32 %v2426, %v2907
    %v3100 = vmax.f32 %v2427, %v2908
    %v3101 = vmax.f32 %v2428, %v2909
    %v3102 = vmax.f32 %v2429, %v2910
    %v3103 = vmax.f32 %v2430, %v2911
    %v3104 = vmax.f32 %v2431, %v2912
    %v3105 = vmax.f32 %v2432, %v2913
    %v3106 = vmax.f32 %v2433, %v2914
    %v3107 = vmax.f32 %v2434, %v2915
    %v3108 = vmax.f32 %v2435, %v2916
    %v3109 = vmax.f32 %v2436, %v2917
    %v3110 = vld [vmem:[%s6] sm:$0x1]
    %v3111 = vperm.slane %v3110, 0
    %v3113 = vrot.slane %v3111, 2
    %v3114 = vrot.slane %v3111, 4
    %v3115 = vrot.slane %v3111, 6
    %v3116 = vrot.slane %v3111, 1
    %v3117 = vrot.slane %v3113, 1
    %v3118 = vrot.slane %v3114, 1
    %v3119 = vrot.slane %v3115, 1
    %v3128 = vadd.f32 %v3014, %v3111
    %v3129 = vadd.f32 %v3015, %v3116
    %v3130 = vadd.f32 %v3016, %v3113
    %v3131 = vadd.f32 %v3017, %v3117
    %v3132 = vadd.f32 %v3018, %v3114
    %v3133 = vadd.f32 %v3019, %v3118
    %v3134 = vadd.f32 %v3020, %v3115
    %v3135 = vadd.f32 %v3021, %v3119
    %v3136 = vadd.f32 %v3022, %v3111
    %v3137 = vadd.f32 %v3023, %v3116
    %v3138 = vadd.f32 %v3024, %v3113
    %v3139 = vadd.f32 %v3025, %v3117
    %v3140 = vadd.f32 %v3026, %v3114
    %v3141 = vadd.f32 %v3027, %v3118
    %v3142 = vadd.f32 %v3028, %v3115
    %v3143 = vadd.f32 %v3029, %v3119
    %v3144 = vadd.f32 %v3030, %v3111
    %v3145 = vadd.f32 %v3031, %v3116
    %v3146 = vadd.f32 %v3032, %v3113
    %v3147 = vadd.f32 %v3033, %v3117
    %v3148 = vadd.f32 %v3034, %v3114
    %v3149 = vadd.f32 %v3035, %v3118
    %v3150 = vadd.f32 %v3036, %v3115
    %v3151 = vadd.f32 %v3037, %v3119
    %v3152 = vadd.f32 %v3038, %v3111
    %v3153 = vadd.f32 %v3039, %v3116
    %v3154 = vadd.f32 %v3040, %v3113
    %v3155 = vadd.f32 %v3041, %v3117
    %v3156 = vadd.f32 %v3042, %v3114
    %v3157 = vadd.f32 %v3043, %v3118
    %v3158 = vadd.f32 %v3044, %v3115
    %v3159 = vadd.f32 %v3045, %v3119
    %v3160 = vadd.f32 %v3046, %v3111
    %v3161 = vadd.f32 %v3047, %v3116
    %v3162 = vadd.f32 %v3048, %v3113
    %v3163 = vadd.f32 %v3049, %v3117
    %v3164 = vadd.f32 %v3050, %v3114
    %v3165 = vadd.f32 %v3051, %v3118
    %v3166 = vadd.f32 %v3052, %v3115
    %v3167 = vadd.f32 %v3053, %v3119
    %v3168 = vadd.f32 %v3054, %v3111
    %v3169 = vadd.f32 %v3055, %v3116
    %v3170 = vadd.f32 %v3056, %v3113
    %v3171 = vadd.f32 %v3057, %v3117
    %v3172 = vadd.f32 %v3058, %v3114
    %v3173 = vadd.f32 %v3059, %v3118
    %v3174 = vadd.f32 %v3060, %v3115
    %v3175 = vadd.f32 %v3061, %v3119
    %v3176 = vadd.f32 %v3062, %v3111
    %v3177 = vadd.f32 %v3063, %v3116
    %v3178 = vadd.f32 %v3064, %v3113
    %v3179 = vadd.f32 %v3065, %v3117
    %v3180 = vadd.f32 %v3066, %v3114
    %v3181 = vadd.f32 %v3067, %v3118
    %v3182 = vadd.f32 %v3068, %v3115
    %v3183 = vadd.f32 %v3069, %v3119
    %v3184 = vadd.f32 %v3070, %v3111
    %v3185 = vadd.f32 %v3071, %v3116
    %v3186 = vadd.f32 %v3072, %v3113
    %v3187 = vadd.f32 %v3073, %v3117
    %v3188 = vadd.f32 %v3074, %v3114
    %v3189 = vadd.f32 %v3075, %v3118
    %v3190 = vadd.f32 %v3076, %v3115
    %v3191 = vadd.f32 %v3077, %v3119
    %v3192 = vadd.f32 %v3078, %v3111
    %v3193 = vadd.f32 %v3079, %v3116
    %v3194 = vadd.f32 %v3080, %v3113
    %v3195 = vadd.f32 %v3081, %v3117
    %v3196 = vadd.f32 %v3082, %v3114
    %v3197 = vadd.f32 %v3083, %v3118
    %v3198 = vadd.f32 %v3084, %v3115
    %v3199 = vadd.f32 %v3085, %v3119
    %v3200 = vadd.f32 %v3086, %v3111
    %v3201 = vadd.f32 %v3087, %v3116
    %v3202 = vadd.f32 %v3088, %v3113
    %v3203 = vadd.f32 %v3089, %v3117
    %v3204 = vadd.f32 %v3090, %v3114
    %v3205 = vadd.f32 %v3091, %v3118
    %v3206 = vadd.f32 %v3092, %v3115
    %v3207 = vadd.f32 %v3093, %v3119
    %v3208 = vadd.f32 %v3094, %v3111
    %v3209 = vadd.f32 %v3095, %v3116
    %v3210 = vadd.f32 %v3096, %v3113
    %v3211 = vadd.f32 %v3097, %v3117
    %v3212 = vadd.f32 %v3098, %v3114
    %v3213 = vadd.f32 %v3099, %v3118
    %v3214 = vadd.f32 %v3100, %v3115
    %v3215 = vadd.f32 %v3101, %v3119
    %v3216 = vadd.f32 %v3102, %v3111
    %v3217 = vadd.f32 %v3103, %v3116
    %v3218 = vadd.f32 %v3104, %v3113
    %v3219 = vadd.f32 %v3105, %v3117
    %v3220 = vadd.f32 %v3106, %v3114
    %v3221 = vadd.f32 %v3107, %v3118
    %v3222 = vadd.f32 %v3108, %v3115
    %v3223 = vadd.f32 %v3109, %v3119
    %v3224 = vmax.f32 %v3128, 0.0
    %v3225 = vmax.f32 %v3129, 0.0
    %v3226 = vmax.f32 %v3130, 0.0
    %v3227 = vmax.f32 %v3131, 0.0
    %v3228 = vmax.f32 %v3132, 0.0
    %v3229 = vmax.f32 %v3133, 0.0
    %v3230 = vmax.f32 %v3134, 0.0
    %v3231 = vmax.f32 %v3135, 0.0
    %v3232 = vmax.f32 %v3136, 0.0
    %v3233 = vmax.f32 %v3137, 0.0
    %v3234 = vmax.f32 %v3138, 0.0
    %v3235 = vmax.f32 %v3139, 0.0
    %v3236 = vmax.f32 %v3140, 0.0
    %v3237 = vmax.f32 %v3141, 0.0
    %v3238 = vmax.f32 %v3142, 0.0
    %v3239 = vmax.f32 %v3143, 0.0
    %v3240 = vmax.f32 %v3144, 0.0
    %v3241 = vmax.f32 %v3145, 0.0
    %v3242 = vmax.f32 %v3146, 0.0
    %v3243 = vmax.f32 %v3147, 0.0
    %v3244 = vmax.f32 %v3148, 0.0
    %v3245 = vmax.f32 %v3149, 0.0
    %v3246 = vmax.f32 %v3150, 0.0
    %v3247 = vmax.f32 %v3151, 0.0
    %v3248 = vmax.f32 %v3152, 0.0
    %v3249 = vmax.f32 %v3153, 0.0
    %v3250 = vmax.f32 %v3154, 0.0
    %v3251 = vmax.f32 %v3155, 0.0
    %v3252 = vmax.f32 %v3156, 0.0
    %v3253 = vmax.f32 %v3157, 0.0
    %v3254 = vmax.f32 %v3158, 0.0
    %v3255 = vmax.f32 %v3159, 0.0
    %v3256 = vmax.f32 %v3160, 0.0
    %v3257 = vmax.f32 %v3161, 0.0
    %v3258 = vmax.f32 %v3162, 0.0
    %v3259 = vmax.f32 %v3163, 0.0
    %v3260 = vmax.f32 %v3164, 0.0
    %v3261 = vmax.f32 %v3165, 0.0
    %v3262 = vmax.f32 %v3166, 0.0
    %v3263 = vmax.f32 %v3167, 0.0
    %v3264 = vmax.f32 %v3168, 0.0
    %v3265 = vmax.f32 %v3169, 0.0
    %v3266 = vmax.f32 %v3170, 0.0
    %v3267 = vmax.f32 %v3171, 0.0
    %v3268 = vmax.f32 %v3172, 0.0
    %v3269 = vmax.f32 %v3173, 0.0
    %v3270 = vmax.f32 %v3174, 0.0
    %v3271 = vmax.f32 %v3175, 0.0
    %v3272 = vmax.f32 %v3176, 0.0
    %v3273 = vmax.f32 %v3177, 0.0
    %v3274 = vmax.f32 %v3178, 0.0
    %v3275 = vmax.f32 %v3179, 0.0
    %v3276 = vmax.f32 %v3180, 0.0
    %v3277 = vmax.f32 %v3181, 0.0
    %v3278 = vmax.f32 %v3182, 0.0
    %v3279 = vmax.f32 %v3183, 0.0
    %v3280 = vmax.f32 %v3184, 0.0
    %v3281 = vmax.f32 %v3185, 0.0
    %v3282 = vmax.f32 %v3186, 0.0
    %v3283 = vmax.f32 %v3187, 0.0
    %v3284 = vmax.f32 %v3188, 0.0
    %v3285 = vmax.f32 %v3189, 0.0
    %v3286 = vmax.f32 %v3190, 0.0
    %v3287 = vmax.f32 %v3191, 0.0
    %v3288 = vmax.f32 %v3192, 0.0
    %v3289 = vmax.f32 %v3193, 0.0
    %v3290 = vmax.f32 %v3194, 0.0
    %v3291 = vmax.f32 %v3195, 0.0
    %v3292 = vmax.f32 %v3196, 0.0
    %v3293 = vmax.f32 %v3197, 0.0
    %v3294 = vmax.f32 %v3198, 0.0
    %v3295 = vmax.f32 %v3199, 0.0
    %v3296 = vmax.f32 %v3200, 0.0
    %v3297 = vmax.f32 %v3201, 0.0
    %v3298 = vmax.f32 %v3202, 0.0
    %v3299 = vmax.f32 %v3203, 0.0
    %v3300 = vmax.f32 %v3204, 0.0
    %v3301 = vmax.f32 %v3205, 0.0
    %v3302 = vmax.f32 %v3206, 0.0
    %v3303 = vmax.f32 %v3207, 0.0
    %v3304 = vmax.f32 %v3208, 0.0
    %v3305 = vmax.f32 %v3209, 0.0
    %v3306 = vmax.f32 %v3210, 0.0
    %v3307 = vmax.f32 %v3211, 0.0
    %v3308 = vmax.f32 %v3212, 0.0
    %v3309 = vmax.f32 %v3213, 0.0
    %v3310 = vmax.f32 %v3214, 0.0
    %v3311 = vmax.f32 %v3215, 0.0
    %v3312 = vmax.f32 %v3216, 0.0
    %v3313 = vmax.f32 %v3217, 0.0
    %v3314 = vmax.f32 %v3218, 0.0
    %v3315 = vmax.f32 %v3219, 0.0
    %v3316 = vmax.f32 %v3220, 0.0
    %v3317 = vmax.f32 %v3221, 0.0
    %v3318 = vmax.f32 %v3222, 0.0
    %v3319 = vmax.f32 %v3223, 0.0
    %v3320 = vld [vmem:[%s2] sm:$0xff]
    %v3321 = vld [vmem:[%s2 + $0x8] sm:$0xff]
    %v3322 = vld [vmem:[%s2 + $0x10] sm:$0xff]
    %v3323 = vld [vmem:[%s2 + $0x18] sm:$0xff]
    %v3324 = vld [vmem:[%s2 + $0x20] sm:$0xff]
    %v3325 = vld [vmem:[%s2 + $0x28] sm:$0xff]
    %v3326 = vld [vmem:[%s2 + $0x30] sm:$0xff]
    %v3327 = vld [vmem:[%s2 + $0x38] sm:$0xff]
    %v3328 = vld [vmem:[%s2 + $0x40] sm:$0xff]
    %s3329 = scalar_lea.vmem %s2, 72
    %v3330 = vld [vmem:[%s3329] sm:$0xff]
    %v3331 = vld [vmem:[%s3329 + $0x8] sm:$0xff]
    %v3332 = vld [vmem:[%s3329 + $0x10] sm:$0xff]
    %v3333 = vld [vmem:[%s3329 + $0x18] sm:$0xff]
    %v3334 = vld [vmem:[%s3329 + $0x20] sm:$0xff]
    %v3335 = vld [vmem:[%s3329 + $0x28] sm:$0xff]
    %v3336 = vld [vmem:[%s3329 + $0x30] sm:$0xff]
    %v3337 = vld [vmem:[%s3329 + $0x38] sm:$0xff]
    %v3338 = vld [vmem:[%s3329 + $0x40] sm:$0xff]
    %v3403 = vperm.slane %v3225, 0
    %v3404 = vperm.slane %v3226, 0
    %v3405 = vperm.slane %v3227, 0
    %v3406 = vperm.slane %v3228, 0
    %v3407 = vperm.slane %v3229, 0
    %v3408 = vperm.slane %v3230, 0
    %v3409 = vperm.slane %v3231, 0
    %v3410 = vperm.slane %v3232, 0
    %v3411 = vperm.slane %v3237, 0
    %v3412 = vperm.slane %v3238, 0
    %v3413 = vperm.slane %v3239, 0
    %v3414 = vperm.slane %v3240, 0
    %v3415 = vperm.slane %v3241, 0
    %v3416 = vperm.slane %v3242, 0
    %v3417 = vperm.slane %v3243, 0
    %v3418 = vperm.slane %v3244, 0
    %v3419 = vperm.slane %v3249, 0
    %v3420 = vperm.slane %v3250, 0
    %v3421 = vperm.slane %v3251, 0
    %v3422 = vperm.slane %v3252, 0
    %v3423 = vperm.slane %v3253, 0
    %v3424 = vperm.slane %v3254, 0
    %v3425 = vperm.slane %v3255, 0
    %v3426 = vperm.slane %v3256, 0
    %v3427 = vperm.slane %v3261, 0
    %v3428 = vperm.slane %v3262, 0
    %v3429 = vperm.slane %v3263, 0
    %v3430 = vperm.slane %v3264, 0
    %v3431 = vperm.slane %v3265, 0
    %v3432 = vperm.slane %v3266, 0
    %v3433 = vperm.slane %v3267, 0
    %v3434 = vperm.slane %v3268, 0
    %v3435 = vperm.slane %v3273, 0
    %v3436 = vperm.slane %v3274, 0
    %v3437 = vperm.slane %v3275, 0
    %v3438 = vperm.slane %v3276, 0
    %v3439 = vperm.slane %v3277, 0
    %v3440 = vperm.slane %v3278, 0
    %v3441 = vperm.slane %v3279, 0
    %v3442 = vperm.slane %v3280, 0
    %v3443 = vperm.slane %v3285, 0
    %v3444 = vperm.slane %v3286, 0
    %v3445 = vperm.slane %v3287, 0
    %v3446 = vperm.slane %v3288, 0
    %v3447 = vperm.slane %v3289, 0
    %v3448 = vperm.slane %v3290, 0
    %v3449 = vperm.slane %v3291, 0
    %v3450 = vperm.slane %v3292, 0
    %v3451 = vperm.slane %v3297, 0
    %v3452 = vperm.slane %v3298, 0
    %v3453 = vperm.slane %v3299, 0
    %v3454 = vperm.slane %v3300, 0
    %v3455 = vperm.slane %v3301, 0
    %v3456 = vperm.slane %v3302, 0
    %v3457 = vperm.slane %v3303, 0
    %v3458 = vperm.slane %v3304, 0
    %v3459 = vperm.slane %v3309, 0
    %v3460 = vperm.slane %v3310, 0
    %v3461 = vperm.slane %v3311, 0
    %v3462 = vperm.slane %v3312, 0
    %v3463 = vperm.slane %v3313, 0
    %v3464 = vperm.slane %v3314, 0
    %v3465 = vperm.slane %v3315, 0
    %v3466 = vperm.slane %v3316, 0
    %vm3467 = vcmask 1041409
    %v3468 = vsel %vm3467, %v3404, %v3403
    %vm3469 = vcmask 1042434
    %v3470 = vsel %vm3469, %v3405, %v3468
    %vm3471 = vcmask 1043459
    %v3472 = vsel %vm3471, %v3406, %v3470
    %vm3473 = vcmask 1044484
    %v3474 = vsel %vm3473, %v3407, %v3472
    %vm3475 = vcmask 1045509
    %v3476 = vsel %vm3475, %v3408, %v3474
    %vm3477 = vcmask 1046534
    %v3478 = vsel %vm3477, %v3409, %v3476
    %vm3479 = vcmask 1047559
    %v3480 = vsel %vm3479, %v3410, %v3478
    %v3481 = vsel %vm3467, %v3412, %v3411
    %v3482 = vsel %vm3469, %v3413, %v3481
    %v3483 = vsel %vm3471, %v3414, %v3482
    %v3484 = vsel %vm3473, %v3415, %v3483
    %v3485 = vsel %vm3475, %v3416, %v3484
    %v3486 = vsel %vm3477, %v3417, %v3485
    %v3487 = vsel %vm3479, %v3418, %v3486
    %v3488 = vsel %vm3467, %v3420, %v3419
    %v3489 = vsel %vm3469, %v3421, %v3488
    %v3490 = vsel %vm3471, %v3422, %v3489
    %v3491 = vsel %vm3473, %v3423, %v3490
    %v3492 = vsel %vm3475, %v3424, %v3491
    %v3493 = vsel %vm3477, %v3425, %v3492
    %v3494 = vsel %vm3479, %v3426, %v3493
    %v3495 = vsel %vm3467, %v3428, %v3427
    %v3496 = vsel %vm3469, %v3429, %v3495
    %v3497 = vsel %vm3471, %v3430, %v3496
    %v3498 = vsel %vm3473, %v3431, %v3497
    %v3499 = vsel %vm3475, %v3432, %v3498
    %v3500 = vsel %vm3477, %v3433, %v3499
    %v3501 = vsel %vm3479, %v3434, %v3500
    %v3502 = vsel %vm3467, %v3436, %v3435
    %v3503 = vsel %vm3469, %v3437, %v3502
    %v3504 = vsel %vm3471, %v3438, %v3503
    %v3505 = vsel %vm3473, %v3439, %v3504
    %v3506 = vsel %vm3475, %v3440, %v3505
    %v3507 = vsel %vm3477, %v3441, %v3506
    %v3508 = vsel %vm3479, %v3442, %v3507
    %v3509 = vsel %vm3467, %v3444, %v3443
    %v3510 = vsel %vm3469, %v3445, %v3509
    %v3511 = vsel %vm3471, %v3446, %v3510
    %v3512 = vsel %vm3473, %v3447, %v3511
    %v3513 = vsel %vm3475, %v3448, %v3512
    %v3514 = vsel %vm3477, %v3449, %v3513
    %v3515 = vsel %vm3479, %v3450, %v3514
    %v3516 = vsel %vm3467, %v3452, %v3451
    %v3517 = vsel %vm3469, %v3453, %v3516
    %v3518 = vsel %vm3471, %v3454, %v3517
    %v3519 = vsel %vm3473, %v3455, %v3518
    %v3520 = vsel %vm3475, %v3456, %v3519
    %v3521 = vsel %vm3477, %v3457, %v3520
    %v3522 = vsel %vm3479, %v3458, %v3521
    %v3523 = vsel %vm3467, %v3460, %v3459
    %v3524 = vsel %vm3469, %v3461, %v3523
    %v3525 = vsel %vm3471, %v3462, %v3524
    %v3526 = vsel %vm3473, %v3463, %v3525
    %v3527 = vsel %vm3475, %v3464, %v3526
    %v3528 = vsel %vm3477, %v3465, %v3527
    %v3529 = vsel %vm3479, %v3466, %v3528
    %vm3530 = vcmask 588800
    %v3531 = vsel %vm3530, %v3480, 0
    %v3533 = vsel %vm3530, %v3487, 0
    %v3535 = vsel %vm3530, %v3494, 0
    %v3537 = vsel %vm3530, %v3501, 0
    %v3539 = vsel %vm3530, %v3508, 0
    %v3541 = vsel %vm3530, %v3515, 0
    %v3543 = vsel %vm3530, %v3522, 0
    %v3545 = vsel %vm3530, %v3529, 0
    %3547 = vmatpush.msra.mxu0 0.0
    %3548 = vmatpush.msra.mxu0 0.0
    %3549 = vmatpush.msra.mxu0 0.0
    %3550 = vmatpush.msra.mxu0 0.0
    %3551 = vmatpush.msra.mxu0 0.0
    %3552 = vmatpush.msra.mxu0 0.0
    %3553 = vmatpush.msra.mxu0 0.0
    %3554 = vmatpush.msra.mxu0 %v3338
    %3555 = vmatpush.msra.mxu0 %v3337
    %3556 = vmatpush.msra.mxu0 %v3336
    %3557 = vmatpush.msra.mxu0 %v3335
    %3558 = vmatpush.msra.mxu0 %v3334
    %3559 = vmatpush.msra.mxu0 %v3333
    %3560 = vmatpush.msra.mxu0 %v3332
    %3561 = vmatpush.msra.mxu0 %v3331
    %3562 = vmatpush.msra.mxu0 %v3330
    %3563 = vmatmul.f32.gmra.mxu0 %v3531
    %v3564 = vpop.f32.mrf.mxu0
    %v3565 = vadd.f32 0.0, %v3564
    %3566 = vmatmul.f32.gmra.mxu0 %v3533
    %v3567 = vpop.f32.mrf.mxu0
    %v3568 = vadd.f32 0.0, %v3567
    %3569 = vmatmul.f32.gmra.mxu0 %v3535
    %v3570 = vpop.f32.mrf.mxu0
    %v3571 = vadd.f32 0.0, %v3570
    %3572 = vmatmul.f32.gmra.mxu0 %v3537
    %v3573 = vpop.f32.mrf.mxu0
    %v3574 = vadd.f32 0.0, %v3573
    %3575 = vmatmul.f32.gmra.mxu0 %v3539
    %v3576 = vpop.f32.mrf.mxu0
    %v3577 = vadd.f32 0.0, %v3576
    %3578 = vmatmul.f32.gmra.mxu0 %v3541
    %v3579 = vpop.f32.mrf.mxu0
    %v3580 = vadd.f32 0.0, %v3579
    %3581 = vmatmul.f32.gmra.mxu0 %v3543
    %v3582 = vpop.f32.mrf.mxu0
    %v3583 = vadd.f32 0.0, %v3582
    %3584 = vmatmul.f32.gmra.mxu0 %v3545
    %v3585 = vpop.f32.mrf.mxu0
    %v3586 = vadd.f32 0.0, %v3585
    %3587 = vdwg.mxu0
    %v3596 = vperm.slane %v3224, 0
    %v3597 = vperm.slane %v3236, 0
    %v3598 = vperm.slane %v3248, 0
    %v3599 = vperm.slane %v3260, 0
    %v3600 = vperm.slane %v3272, 0
    %v3601 = vperm.slane %v3284, 0
    %v3602 = vperm.slane %v3296, 0
    %v3603 = vperm.slane %v3308, 0
    %v3604 = vsel %vm3467, %v3403, %v3596
    %v3605 = vsel %vm3469, %v3404, %v3604
    %v3606 = vsel %vm3471, %v3405, %v3605
    %v3607 = vsel %vm3473, %v3406, %v3606
    %v3608 = vsel %vm3475, %v3407, %v3607
    %v3609 = vsel %vm3477, %v3408, %v3608
    %v3610 = vsel %vm3479, %v3409, %v3609
    %v3611 = vsel %vm3467, %v3411, %v3597
    %v3612 = vsel %vm3469, %v3412, %v3611
    %v3613 = vsel %vm3471, %v3413, %v3612
    %v3614 = vsel %vm3473, %v3414, %v3613
    %v3615 = vsel %vm3475, %v3415, %v3614
    %v3616 = vsel %vm3477, %v3416, %v3615
    %v3617 = vsel %vm3479, %v3417, %v3616
    %v3618 = vsel %vm3467, %v3419, %v3598
    %v3619 = vsel %vm3469, %v3420, %v3618
    %v3620 = vsel %vm3471, %v3421, %v3619
    %v3621 = vsel %vm3473, %v3422, %v3620
    %v3622 = vsel %vm3475, %v3423, %v3621
    %v3623 = vsel %vm3477, %v3424, %v3622
    %v3624 = vsel %vm3479, %v3425, %v3623
    %v3625 = vsel %vm3467, %v3427, %v3599
    %v3626 = vsel %vm3469, %v3428, %v3625
    %v3627 = vsel %vm3471, %v3429, %v3626
    %v3628 = vsel %vm3473, %v3430, %v3627
    %v3629 = vsel %vm3475, %v3431, %v3628
    %v3630 = vsel %vm3477, %v3432, %v3629
    %v3631 = vsel %vm3479, %v3433, %v3630
    %v3632 = vsel %vm3467, %v3435, %v3600
    %v3633 = vsel %vm3469, %v3436, %v3632
    %v3634 = vsel %vm3471, %v3437, %v3633
    %v3635 = vsel %vm3473, %v3438, %v3634
    %v3636 = vsel %vm3475, %v3439, %v3635
    %v3637 = vsel %vm3477, %v3440, %v3636
    %v3638 = vsel %vm3479, %v3441, %v3637
    %v3639 = vsel %vm3467, %v3443, %v3601
    %v3640 = vsel %vm3469, %v3444, %v3639
    %v3641 = vsel %vm3471, %v3445, %v3640
    %v3642 = vsel %vm3473, %v3446, %v3641
    %v3643 = vsel %vm3475, %v3447, %v3642
    %v3644 = vsel %vm3477, %v3448, %v3643
    %v3645 = vsel %vm3479, %v3449, %v3644
    %v3646 = vsel %vm3467, %v3451, %v3602
    %v3647 = vsel %vm3469, %v3452, %v3646
    %v3648 = vsel %vm3471, %v3453, %v3647
    %v3649 = vsel %vm3473, %v3454, %v3648
    %v3650 = vsel %vm3475, %v3455, %v3649
    %v3651 = vsel %vm3477, %v3456, %v3650
    %v3652 = vsel %vm3479, %v3457, %v3651
    %v3653 = vsel %vm3467, %v3459, %v3603
    %v3654 = vsel %vm3469, %v3460, %v3653
    %v3655 = vsel %vm3471, %v3461, %v3654
    %v3656 = vsel %vm3473, %v3462, %v3655
    %v3657 = vsel %vm3475, %v3463, %v3656
    %v3658 = vsel %vm3477, %v3464, %v3657
    %v3659 = vsel %vm3479, %v3465, %v3658
    %v3660 = vsel %vm3530, %v3610, 0
    %v3662 = vsel %vm3530, %v3617, 0
    %v3664 = vsel %vm3530, %v3624, 0
    %v3666 = vsel %vm3530, %v3631, 0
    %v3668 = vsel %vm3530, %v3638, 0
    %v3670 = vsel %vm3530, %v3645, 0
    %v3672 = vsel %vm3530, %v3652, 0
    %v3674 = vsel %vm3530, %v3659, 0
    %3676 = vmatpush.msra.mxu0 0.0
    %3677 = vmatpush.msra.mxu0 0.0
    %3678 = vmatpush.msra.mxu0 0.0
    %3679 = vmatpush.msra.mxu0 0.0
    %3680 = vmatpush.msra.mxu0 0.0
    %3681 = vmatpush.msra.mxu0 0.0
    %3682 = vmatpush.msra.mxu0 0.0
    %3683 = vmatpush.msra.mxu0 %v3328
    %3684 = vmatpush.msra.mxu0 %v3327
    %3685 = vmatpush.msra.mxu0 %v3326
    %3686 = vmatpush.msra.mxu0 %v3325
    %3687 = vmatpush.msra.mxu0 %v3324
    %3688 = vmatpush.msra.mxu0 %v3323
    %3689 = vmatpush.msra.mxu0 %v3322
    %3690 = vmatpush.msra.mxu0 %v3321
    %3691 = vmatpush.msra.mxu0 %v3320
    %3692 = vmatmul.f32.gmra.mxu0 %v3660
    %v3693 = vpop.f32.mrf.mxu0
    %v3694 = vadd.f32 %v3565, %v3693
    %3695 = vmatmul.f32.gmra.mxu0 %v3662
    %v3696 = vpop.f32.mrf.mxu0
    %v3697 = vadd.f32 %v3568, %v3696
    %3698 = vmatmul.f32.gmra.mxu0 %v3664
    %v3699 = vpop.f32.mrf.mxu0
    %v3700 = vadd.f32 %v3571, %v3699
    %3701 = vmatmul.f32.gmra.mxu0 %v3666
    %v3702 = vpop.f32.mrf.mxu0
    %v3703 = vadd.f32 %v3574, %v3702
    %3704 = vmatmul.f32.gmra.mxu0 %v3668
    %v3705 = vpop.f32.mrf.mxu0
    %v3706 = vadd.f32 %v3577, %v3705
    %3707 = vmatmul.f32.gmra.mxu0 %v3670
    %v3708 = vpop.f32.mrf.mxu0
    %v3709 = vadd.f32 %v3580, %v3708
    %3710 = vmatmul.f32.gmra.mxu0 %v3672
    %v3711 = vpop.f32.mrf.mxu0
    %v3712 = vadd.f32 %v3583, %v3711
    %3713 = vmatmul.f32.gmra.mxu0 %v3674
    %v3714 = vpop.f32.mrf.mxu0
    %v3715 = vadd.f32 %v3586, %v3714
    %3716 = vdwg.mxu0
    %s3717 = scalar_lea.vmem %s2, 144
    %v3718 = vld [vmem:[%s3717] sm:$0xff]
    %v3719 = vld [vmem:[%s3717 + $0x8] sm:$0xff]
    %v3720 = vld [vmem:[%s3717 + $0x10] sm:$0xff]
    %v3721 = vld [vmem:[%s3717 + $0x18] sm:$0xff]
    %v3722 = vld [vmem:[%s3717 + $0x20] sm:$0xff]
    %v3723 = vld [vmem:[%s3717 + $0x28] sm:$0xff]
    %v3724 = vld [vmem:[%s3717 + $0x30] sm:$0xff]
    %v3725 = vld [vmem:[%s3717 + $0x38] sm:$0xff]
    %v3726 = vld [vmem:[%s3717 + $0x40] sm:$0xff]
    %v3735 = vperm.slane %v3233, 0
    %v3736 = vperm.slane %v3245, 0
    %v3737 = vperm.slane %v3257, 0
    %v3738 = vperm.slane %v3269, 0
    %v3739 = vperm.slane %v3281, 0
    %v3740 = vperm.slane %v3293, 0
    %v3741 = vperm.slane %v3305, 0
    %v3742 = vperm.slane %v3317, 0
    %v3743 = vsel %vm3467, %v3405, %v3404
    %v3744 = vsel %vm3469, %v3406, %v3743
    %v3745 = vsel %vm3471, %v3407, %v3744
    %v3746 = vsel %vm3473, %v3408, %v3745
    %v3747 = vsel %vm3475, %v3409, %v3746
    %v3748 = vsel %vm3477, %v3410, %v3747
    %v3749 = vsel %vm3479, %v3735, %v3748
    %v3750 = vsel %vm3467, %v3413, %v3412
    %v3751 = vsel %vm3469, %v3414, %v3750
    %v3752 = vsel %vm3471, %v3415, %v3751
    %v3753 = vsel %vm3473, %v3416, %v3752
    %v3754 = vsel %vm3475, %v3417, %v3753
    %v3755 = vsel %vm3477, %v3418, %v3754
    %v3756 = vsel %vm3479, %v3736, %v3755
    %v3757 = vsel %vm3467, %v3421, %v3420
    %v3758 = vsel %vm3469, %v3422, %v3757
    %v3759 = vsel %vm3471, %v3423, %v3758
    %v3760 = vsel %vm3473, %v3424, %v3759
    %v3761 = vsel %vm3475, %v3425, %v3760
    %v3762 = vsel %vm3477, %v3426, %v3761
    %v3763 = vsel %vm3479, %v3737, %v3762
    %v3764 = vsel %vm3467, %v3429, %v3428
    %v3765 = vsel %vm3469, %v3430, %v3764
    %v3766 = vsel %vm3471, %v3431, %v3765
    %v3767 = vsel %vm3473, %v3432, %v3766
    %v3768 = vsel %vm3475, %v3433, %v3767
    %v3769 = vsel %vm3477, %v3434, %v3768
    %v3770 = vsel %vm3479, %v3738, %v3769
    %v3771 = vsel %vm3467, %v3437, %v3436
    %v3772 = vsel %vm3469, %v3438, %v3771
    %v3773 = vsel %vm3471, %v3439, %v3772
    %v3774 = vsel %vm3473, %v3440, %v3773
    %v3775 = vsel %vm3475, %v3441, %v3774
    %v3776 = vsel %vm3477, %v3442, %v3775
    %v3777 = vsel %vm3479, %v3739, %v3776
    %v3778 = vsel %vm3467, %v3445, %v3444
    %v3779 = vsel %vm3469, %v3446, %v3778
    %v3780 = vsel %vm3471, %v3447, %v3779
    %v3781 = vsel %vm3473, %v3448, %v3780
    %v3782 = vsel %vm3475, %v3449, %v3781
    %v3783 = vsel %vm3477, %v3450, %v3782
    %v3784 = vsel %vm3479, %v3740, %v3783
    %v3785 = vsel %vm3467, %v3453, %v3452
    %v3786 = vsel %vm3469, %v3454, %v3785
    %v3787 = vsel %vm3471, %v3455, %v3786
    %v3788 = vsel %vm3473, %v3456, %v3787
    %v3789 = vsel %vm3475, %v3457, %v3788
    %v3790 = vsel %vm3477, %v3458, %v3789
    %v3791 = vsel %vm3479, %v3741, %v3790
    %v3792 = vsel %vm3467, %v3461, %v3460
    %v3793 = vsel %vm3469, %v3462, %v3792
    %v3794 = vsel %vm3471, %v3463, %v3793
    %v3795 = vsel %vm3473, %v3464, %v3794
    %v3796 = vsel %vm3475, %v3465, %v3795
    %v3797 = vsel %vm3477, %v3466, %v3796
    %v3798 = vsel %vm3479, %v3742, %v3797
    %v3799 = vsel %vm3530, %v3749, 0
    %v3801 = vsel %vm3530, %v3756, 0
    %v3803 = vsel %vm3530, %v3763, 0
    %v3805 = vsel %vm3530, %v3770, 0
    %v3807 = vsel %vm3530, %v3777, 0
    %v3809 = vsel %vm3530, %v3784, 0
    %v3811 = vsel %vm3530, %v3791, 0
    %v3813 = vsel %vm3530, %v3798, 0
    %3815 = vmatpush.msra.mxu0 0.0
    %3816 = vmatpush.msra.mxu0 0.0
    %3817 = vmatpush.msra.mxu0 0.0
    %3818 = vmatpush.msra.mxu0 0.0
    %3819 = vmatpush.msra.mxu0 0.0
    %3820 = vmatpush.msra.mxu0 0.0
    %3821 = vmatpush.msra.mxu0 0.0
    %3822 = vmatpush.msra.mxu0 %v3726
    %3823 = vmatpush.msra.mxu0 %v3725
    %3824 = vmatpush.msra.mxu0 %v3724
    %3825 = vmatpush.msra.mxu0 %v3723
    %3826 = vmatpush.msra.mxu0 %v3722
    %3827 = vmatpush.msra.mxu0 %v3721
    %3828 = vmatpush.msra.mxu0 %v3720
    %3829 = vmatpush.msra.mxu0 %v3719
    %3830 = vmatpush.msra.mxu0 %v3718
    %3831 = vmatmul.f32.gmra.mxu0 %v3799
    %v3832 = vpop.f32.mrf.mxu0
    %v3833 = vadd.f32 0.0, %v3832
    %3834 = vmatmul.f32.gmra.mxu0 %v3801
    %v3835 = vpop.f32.mrf.mxu0
    %v3836 = vadd.f32 0.0, %v3835
    %3837 = vmatmul.f32.gmra.mxu0 %v3803
    %v3838 = vpop.f32.mrf.mxu0
    %v3839 = vadd.f32 0.0, %v3838
    %3840 = vmatmul.f32.gmra.mxu0 %v3805
    %v3841 = vpop.f32.mrf.mxu0
    %v3842 = vadd.f32 0.0, %v3841
    %3843 = vmatmul.f32.gmra.mxu0 %v3807
    %v3844 = vpop.f32.mrf.mxu0
    %v3845 = vadd.f32 0.0, %v3844
    %3846 = vmatmul.f32.gmra.mxu0 %v3809
    %v3847 = vpop.f32.mrf.mxu0
    %v3848 = vadd.f32 0.0, %v3847
    %3849 = vmatmul.f32.gmra.mxu0 %v3811
    %v3850 = vpop.f32.mrf.mxu0
    %v3851 = vadd.f32 0.0, %v3850
    %3852 = vmatmul.f32.gmra.mxu0 %v3813
    %v3853 = vpop.f32.mrf.mxu0
    %v3854 = vadd.f32 0.0, %v3853
    %3855 = vdwg.mxu0
    %v3856 = vadd.f32 %v3694, %v3833
    %v3857 = vadd.f32 %v3697, %v3836
    %v3858 = vadd.f32 %v3700, %v3839
    %v3859 = vadd.f32 %v3703, %v3842
    %v3860 = vadd.f32 %v3706, %v3845
    %v3861 = vadd.f32 %v3709, %v3848
    %v3862 = vadd.f32 %v3712, %v3851
    %v3863 = vadd.f32 %v3715, %v3854
    %s3864 = scalar_lea.vmem %s2, 216
    %v3865 = vld [vmem:[%s3864] sm:$0xff]
    %v3866 = vld [vmem:[%s3864 + $0x8] sm:$0xff]
    %v3867 = vld [vmem:[%s3864 + $0x10] sm:$0xff]
    %v3868 = vld [vmem:[%s3864 + $0x18] sm:$0xff]
    %v3869 = vld [vmem:[%s3864 + $0x20] sm:$0xff]
    %v3870 = vld [vmem:[%s3864 + $0x28] sm:$0xff]
    %v3871 = vld [vmem:[%s3864 + $0x30] sm:$0xff]
    %v3872 = vld [vmem:[%s3864 + $0x38] sm:$0xff]
    %v3873 = vld [vmem:[%s3864 + $0x40] sm:$0xff]
    %v3882 = vperm.slane %v3234, 0
    %v3883 = vperm.slane %v3246, 0
    %v3884 = vperm.slane %v3258, 0
    %v3885 = vperm.slane %v3270, 0
    %v3886 = vperm.slane %v3282, 0
    %v3887 = vperm.slane %v3294, 0
    %v3888 = vperm.slane %v3306, 0
    %v3889 = vperm.slane %v3318, 0
    %v3890 = vsel %vm3467, %v3406, %v3405
    %v3891 = vsel %vm3469, %v3407, %v3890
    %v3892 = vsel %vm3471, %v3408, %v3891
    %v3893 = vsel %vm3473, %v3409, %v3892
    %v3894 = vsel %vm3475, %v3410, %v3893
    %v3895 = vsel %vm3477, %v3735, %v3894
    %v3896 = vsel %vm3479, %v3882, %v3895
    %v3897 = vsel %vm3467, %v3414, %v3413
    %v3898 = vsel %vm3469, %v3415, %v3897
    %v3899 = vsel %vm3471, %v3416, %v3898
    %v3900 = vsel %vm3473, %v3417, %v3899
    %v3901 = vsel %vm3475, %v3418, %v3900
    %v3902 = vsel %vm3477, %v3736, %v3901
    %v3903 = vsel %vm3479, %v3883, %v3902
    %v3904 = vsel %vm3467, %v3422, %v3421
    %v3905 = vsel %vm3469, %v3423, %v3904
    %v3906 = vsel %vm3471, %v3424, %v3905
    %v3907 = vsel %vm3473, %v3425, %v3906
    %v3908 = vsel %vm3475, %v3426, %v3907
    %v3909 = vsel %vm3477, %v3737, %v3908
    %v3910 = vsel %vm3479, %v3884, %v3909
    %v3911 = vsel %vm3467, %v3430, %v3429
    %v3912 = vsel %vm3469, %v3431, %v3911
    %v3913 = vsel %vm3471, %v3432, %v3912
    %v3914 = vsel %vm3473, %v3433, %v3913
    %v3915 = vsel %vm3475, %v3434, %v3914
    %v3916 = vsel %vm3477, %v3738, %v3915
    %v3917 = vsel %vm3479, %v3885, %v3916
    %v3918 = vsel %vm3467, %v3438, %v3437
    %v3919 = vsel %vm3469, %v3439, %v3918
    %v3920 = vsel %vm3471, %v3440, %v3919
    %v3921 = vsel %vm3473, %v3441, %v3920
    %v3922 = vsel %vm3475, %v3442, %v3921
    %v3923 = vsel %vm3477, %v3739, %v3922
    %v3924 = vsel %vm3479, %v3886, %v3923
    %v3925 = vsel %vm3467, %v3446, %v3445
    %v3926 = vsel %vm3469, %v3447, %v3925
    %v3927 = vsel %vm3471, %v3448, %v3926
    %v3928 = vsel %vm3473, %v3449, %v3927
    %v3929 = vsel %vm3475, %v3450, %v3928
    %v3930 = vsel %vm3477, %v3740, %v3929
    %v3931 = vsel %vm3479, %v3887, %v3930
    %v3932 = vsel %vm3467, %v3454, %v3453
    %v3933 = vsel %vm3469, %v3455, %v3932
    %v3934 = vsel %vm3471, %v3456, %v3933
    %v3935 = vsel %vm3473, %v3457, %v3934
    %v3936 = vsel %vm3475, %v3458, %v3935
    %v3937 = vsel %vm3477, %v3741, %v3936
    %v3938 = vsel %vm3479, %v3888, %v3937
    %v3939 = vsel %vm3467, %v3462, %v3461
    %v3940 = vsel %vm3469, %v3463, %v3939
    %v3941 = vsel %vm3471, %v3464, %v3940
    %v3942 = vsel %vm3473, %v3465, %v3941
    %v3943 = vsel %vm3475, %v3466, %v3942
    %v3944 = vsel %vm3477, %v3742, %v3943
    %v3945 = vsel %vm3479, %v3889, %v3944
    %v3946 = vsel %vm3530, %v3896, 0
    %v3948 = vsel %vm3530, %v3903, 0
    %v3950 = vsel %vm3530, %v3910, 0
    %v3952 = vsel %vm3530, %v3917, 0
    %v3954 = vsel %vm3530, %v3924, 0
    %v3956 = vsel %vm3530, %v3931, 0
    %v3958 = vsel %vm3530, %v3938, 0
    %v3960 = vsel %vm3530, %v3945, 0
    %3962 = vmatpush.msra.mxu0 0.0
    %3963 = vmatpush.msra.mxu0 0.0
    %3964 = vmatpush.msra.mxu0 0.0
    %3965 = vmatpush.msra.mxu0 0.0
    %3966 = vmatpush.msra.mxu0 0.0
    %3967 = vmatpush.msra.mxu0 0.0
    %3968 = vmatpush.msra.mxu0 0.0
    %3969 = vmatpush.msra.mxu0 %v3873
    %3970 = vmatpush.msra.mxu0 %v3872
    %3971 = vmatpush.msra.mxu0 %v3871
    %3972 = vmatpush.msra.mxu0 %v3870
    %3973 = vmatpush.msra.mxu0 %v3869
    %3974 = vmatpush.msra.mxu0 %v3868
    %3975 = vmatpush.msra.mxu0 %v3867
    %3976 = vmatpush.msra.mxu0 %v3866
    %3977 = vmatpush.msra.mxu0 %v3865
    %3978 = vmatmul.f32.gmra.mxu0 %v3946
    %v3979 = vpop.f32.mrf.mxu0
    %v3980 = vadd.f32 0.0, %v3979
    %3981 = vmatmul.f32.gmra.mxu0 %v3948
    %v3982 = vpop.f32.mrf.mxu0
    %v3983 = vadd.f32 0.0, %v3982
    %3984 = vmatmul.f32.gmra.mxu0 %v3950
    %v3985 = vpop.f32.mrf.mxu0
    %v3986 = vadd.f32 0.0, %v3985
    %3987 = vmatmul.f32.gmra.mxu0 %v3952
    %v3988 = vpop.f32.mrf.mxu0
    %v3989 = vadd.f32 0.0, %v3988
    %3990 = vmatmul.f32.gmra.mxu0 %v3954
    %v3991 = vpop.f32.mrf.mxu0
    %v3992 = vadd.f32 0.0, %v3991
    %3993 = vmatmul.f32.gmra.mxu0 %v3956
    %v3994 = vpop.f32.mrf.mxu0
    %v3995 = vadd.f32 0.0, %v3994
    %3996 = vmatmul.f32.gmra.mxu0 %v3958
    %v3997 = vpop.f32.mrf.mxu0
    %v3998 = vadd.f32 0.0, %v3997
    %3999 = vmatmul.f32.gmra.mxu0 %v3960
    %v4000 = vpop.f32.mrf.mxu0
    %v4001 = vadd.f32 0.0, %v4000
    %4002 = vdwg.mxu0
    %v4003 = vadd.f32 %v3856, %v3980
    %v4004 = vadd.f32 %v3857, %v3983
    %v4005 = vadd.f32 %v3858, %v3986
    %v4006 = vadd.f32 %v3859, %v3989
    %v4007 = vadd.f32 %v3860, %v3992
    %v4008 = vadd.f32 %v3861, %v3995
    %v4009 = vadd.f32 %v3862, %v3998
    %v4010 = vadd.f32 %v3863, %v4001
    %s4011 = scalar_lea.vmem %s2, 288
    %v4012 = vld [vmem:[%s4011] sm:$0xff]
    %v4013 = vld [vmem:[%s4011 + $0x8] sm:$0xff]
    %v4014 = vld [vmem:[%s4011 + $0x10] sm:$0xff]
    %v4015 = vld [vmem:[%s4011 + $0x18] sm:$0xff]
    %v4016 = vld [vmem:[%s4011 + $0x20] sm:$0xff]
    %v4017 = vld [vmem:[%s4011 + $0x28] sm:$0xff]
    %v4018 = vld [vmem:[%s4011 + $0x30] sm:$0xff]
    %v4019 = vld [vmem:[%s4011 + $0x38] sm:$0xff]
    %v4020 = vld [vmem:[%s4011 + $0x40] sm:$0xff]
    %v4029 = vperm.slane %v3235, 0
    %v4030 = vperm.slane %v3247, 0
    %v4031 = vperm.slane %v3259, 0
    %v4032 = vperm.slane %v3271, 0
    %v4033 = vperm.slane %v3283, 0
    %v4034 = vperm.slane %v3295, 0
    %v4035 = vperm.slane %v3307, 0
    %v4036 = vperm.slane %v3319, 0
    %v4037 = vsel %vm3467, %v3407, %v3406
    %v4038 = vsel %vm3469, %v3408, %v4037
    %v4039 = vsel %vm3471, %v3409, %v4038
    %v4040 = vsel %vm3473, %v3410, %v4039
    %v4041 = vsel %vm3475, %v3735, %v4040
    %v4042 = vsel %vm3477, %v3882, %v4041
    %v4043 = vsel %vm3479, %v4029, %v4042
    %v4044 = vsel %vm3467, %v3415, %v3414
    %v4045 = vsel %vm3469, %v3416, %v4044
    %v4046 = vsel %vm3471, %v3417, %v4045
    %v4047 = vsel %vm3473, %v3418, %v4046
    %v4048 = vsel %vm3475, %v3736, %v4047
    %v4049 = vsel %vm3477, %v3883, %v4048
    %v4050 = vsel %vm3479, %v4030, %v4049
    %v4051 = vsel %vm3467, %v3423, %v3422
    %v4052 = vsel %vm3469, %v3424, %v4051
    %v4053 = vsel %vm3471, %v3425, %v4052
    %v4054 = vsel %vm3473, %v3426, %v4053
    %v4055 = vsel %vm3475, %v3737, %v4054
    %v4056 = vsel %vm3477, %v3884, %v4055
    %v4057 = vsel %vm3479, %v4031, %v4056
    %v4058 = vsel %vm3467, %v3431, %v3430
    %v4059 = vsel %vm3469, %v3432, %v4058
    %v4060 = vsel %vm3471, %v3433, %v4059
    %v4061 = vsel %vm3473, %v3434, %v4060
    %v4062 = vsel %vm3475, %v3738, %v4061
    %v4063 = vsel %vm3477, %v3885, %v4062
    %v4064 = vsel %vm3479, %v4032, %v4063
    %v4065 = vsel %vm3467, %v3439, %v3438
    %v4066 = vsel %vm3469, %v3440, %v4065
    %v4067 = vsel %vm3471, %v3441, %v4066
    %v4068 = vsel %vm3473, %v3442, %v4067
    %v4069 = vsel %vm3475, %v3739, %v4068
    %v4070 = vsel %vm3477, %v3886, %v4069
    %v4071 = vsel %vm3479, %v4033, %v4070
    %v4072 = vsel %vm3467, %v3447, %v3446
    %v4073 = vsel %vm3469, %v3448, %v4072
    %v4074 = vsel %vm3471, %v3449, %v4073
    %v4075 = vsel %vm3473, %v3450, %v4074
    %v4076 = vsel %vm3475, %v3740, %v4075
    %v4077 = vsel %vm3477, %v3887, %v4076
    %v4078 = vsel %vm3479, %v4034, %v4077
    %v4079 = vsel %vm3467, %v3455, %v3454
    %v4080 = vsel %vm3469, %v3456, %v4079
    %v4081 = vsel %vm3471, %v3457, %v4080
    %v4082 = vsel %vm3473, %v3458, %v4081
    %v4083 = vsel %vm3475, %v3741, %v4082
    %v4084 = vsel %vm3477, %v3888, %v4083
    %v4085 = vsel %vm3479, %v4035, %v4084
    %v4086 = vsel %vm3467, %v3463, %v3462
    %v4087 = vsel %vm3469, %v3464, %v4086
    %v4088 = vsel %vm3471, %v3465, %v4087
    %v4089 = vsel %vm3473, %v3466, %v4088
    %v4090 = vsel %vm3475, %v3742, %v4089
    %v4091 = vsel %vm3477, %v3889, %v4090
    %v4092 = vsel %vm3479, %v4036, %v4091
    %v4093 = vsel %vm3530, %v4043, 0
    %v4095 = vsel %vm3530, %v4050, 0
    %v4097 = vsel %vm3530, %v4057, 0
    %v4099 = vsel %vm3530, %v4064, 0
    %v4101 = vsel %vm3530, %v4071, 0
    %v4103 = vsel %vm3530, %v4078, 0
    %v4105 = vsel %vm3530, %v4085, 0
    %v4107 = vsel %vm3530, %v4092, 0
    %4109 = vmatpush.msra.mxu0 0.0
    %4110 = vmatpush.msra.mxu0 0.0
    %4111 = vmatpush.msra.mxu0 0.0
    %4112 = vmatpush.msra.mxu0 0.0
    %4113 = vmatpush.msra.mxu0 0.0
    %4114 = vmatpush.msra.mxu0 0.0
    %4115 = vmatpush.msra.mxu0 0.0
    %4116 = vmatpush.msra.mxu0 %v4020
    %4117 = vmatpush.msra.mxu0 %v4019
    %4118 = vmatpush.msra.mxu0 %v4018
    %4119 = vmatpush.msra.mxu0 %v4017
    %4120 = vmatpush.msra.mxu0 %v4016
    %4121 = vmatpush.msra.mxu0 %v4015
    %4122 = vmatpush.msra.mxu0 %v4014
    %4123 = vmatpush.msra.mxu0 %v4013
    %4124 = vmatpush.msra.mxu0 %v4012
    %4125 = vmatmul.f32.gmra.mxu0 %v4093
    %v4126 = vpop.f32.mrf.mxu0
    %v4127 = vadd.f32 0.0, %v4126
    %4128 = vmatmul.f32.gmra.mxu0 %v4095
    %v4129 = vpop.f32.mrf.mxu0
    %v4130 = vadd.f32 0.0, %v4129
    %4131 = vmatmul.f32.gmra.mxu0 %v4097
    %v4132 = vpop.f32.mrf.mxu0
    %v4133 = vadd.f32 0.0, %v4132
    %4134 = vmatmul.f32.gmra.mxu0 %v4099
    %v4135 = vpop.f32.mrf.mxu0
    %v4136 = vadd.f32 0.0, %v4135
    %4137 = vmatmul.f32.gmra.mxu0 %v4101
    %v4138 = vpop.f32.mrf.mxu0
    %v4139 = vadd.f32 0.0, %v4138
    %4140 = vmatmul.f32.gmra.mxu0 %v4103
    %v4141 = vpop.f32.mrf.mxu0
    %v4142 = vadd.f32 0.0, %v4141
    %4143 = vmatmul.f32.gmra.mxu0 %v4105
    %v4144 = vpop.f32.mrf.mxu0
    %v4145 = vadd.f32 0.0, %v4144
    %4146 = vmatmul.f32.gmra.mxu0 %v4107
    %v4147 = vpop.f32.mrf.mxu0
    %v4148 = vadd.f32 0.0, %v4147
    %4149 = vdwg.mxu0
    %v4150 = vadd.f32 %v4003, %v4127
    %v4151 = vadd.f32 %v4004, %v4130
    %v4152 = vadd.f32 %v4005, %v4133
    %v4153 = vadd.f32 %v4006, %v4136
    %v4154 = vadd.f32 %v4007, %v4139
    %v4155 = vadd.f32 %v4008, %v4142
    %v4156 = vadd.f32 %v4009, %v4145
    %v4157 = vadd.f32 %v4010, %v4148
    %v4166 = vrot.slane %v4150, 2
    %v4167 = vrot.slane %v4150, 4
    %v4168 = vrot.slane %v4150, 6
    %v4169 = vrot.slane %v4151, 2
    %v4170 = vrot.slane %v4151, 4
    %v4171 = vrot.slane %v4151, 6
    %v4172 = vrot.slane %v4152, 2
    %v4173 = vrot.slane %v4152, 4
    %v4174 = vrot.slane %v4152, 6
    %v4175 = vrot.slane %v4153, 2
    %v4176 = vrot.slane %v4153, 4
    %v4177 = vrot.slane %v4153, 6
    %v4178 = vrot.slane %v4154, 2
    %v4179 = vrot.slane %v4154, 4
    %v4180 = vrot.slane %v4154, 6
    %v4181 = vrot.slane %v4155, 2
    %v4182 = vrot.slane %v4155, 4
    %v4183 = vrot.slane %v4155, 6
    %v4184 = vrot.slane %v4156, 2
    %v4185 = vrot.slane %v4156, 4
    %v4186 = vrot.slane %v4156, 6
    %v4187 = vrot.slane %v4157, 2
    %v4188 = vrot.slane %v4157, 4
    %v4189 = vrot.slane %v4157, 6
    %v4214 = vrot.slane %v4150, 7
    %v4215 = vrot.slane %v4214, 2
    %v4216 = vrot.slane %v4166, 7
    %v4217 = vrot.slane %v4216, 2
    %v4218 = vrot.slane %v4167, 7
    %v4219 = vrot.slane %v4218, 2
    %v4220 = vrot.slane %v4168, 7
    %v4221 = vrot.slane %v4220, 2
    %v4222 = vrot.slane %v4151, 7
    %v4223 = vrot.slane %v4222, 2
    %v4224 = vrot.slane %v4169, 7
    %v4225 = vrot.slane %v4224, 2
    %v4226 = vrot.slane %v4170, 7
    %v4227 = vrot.slane %v4226, 2
    %v4228 = vrot.slane %v4171, 7
    %v4229 = vrot.slane %v4228, 2
    %v4230 = vrot.slane %v4152, 7
    %v4231 = vrot.slane %v4230, 2
    %v4232 = vrot.slane %v4172, 7
    %v4233 = vrot.slane %v4232, 2
    %v4234 = vrot.slane %v4173, 7
    %v4235 = vrot.slane %v4234, 2
    %v4236 = vrot.slane %v4174, 7
    %v4237 = vrot.slane %v4236, 2
    %v4238 = vrot.slane %v4153, 7
    %v4239 = vrot.slane %v4238, 2
    %v4240 = vrot.slane %v4175, 7
    %v4241 = vrot.slane %v4240, 2
    %v4242 = vrot.slane %v4176, 7
    %v4243 = vrot.slane %v4242, 2
    %v4244 = vrot.slane %v4177, 7
    %v4245 = vrot.slane %v4244, 2
    %v4246 = vrot.slane %v4154, 7
    %v4247 = vrot.slane %v4246, 2
    %v4248 = vrot.slane %v4178, 7
    %v4249 = vrot.slane %v4248, 2
    %v4250 = vrot.slane %v4179, 7
    %v4251 = vrot.slane %v4250, 2
    %v4252 = vrot.slane %v4180, 7
    %v4253 = vrot.slane %v4252, 2
    %v4254 = vrot.slane %v4155, 7
    %v4255 = vrot.slane %v4254, 2
    %v4256 = vrot.slane %v4181, 7
    %v4257 = vrot.slane %v4256, 2
    %v4258 = vrot.slane %v4182, 7
    %v4259 = vrot.slane %v4258, 2
    %v4260 = vrot.slane %v4183, 7
    %v4261 = vrot.slane %v4260, 2
    %v4262 = vrot.slane %v4156, 7
    %v4263 = vrot.slane %v4262, 2
    %v4264 = vrot.slane %v4184, 7
    %v4265 = vrot.slane %v4264, 2
    %v4266 = vrot.slane %v4185, 7
    %v4267 = vrot.slane %v4266, 2
    %v4268 = vrot.slane %v4186, 7
    %v4269 = vrot.slane %v4268, 2
    %v4270 = vrot.slane %v4157, 7
    %v4271 = vrot.slane %v4270, 2
    %v4272 = vrot.slane %v4187, 7
    %v4273 = vrot.slane %v4272, 2
    %v4274 = vrot.slane %v4188, 7
    %v4275 = vrot.slane %v4274, 2
    %v4276 = vrot.slane %v4189, 7
    %v4277 = vrot.slane %v4276, 2
    %v4310 = vmax.f32 %v4150, %v4215
    %v4311 = vmax.f32 %v4166, %v4217
    %v4312 = vmax.f32 %v4167, %v4219
    %v4313 = vmax.f32 %v4168, %v4221
    %v4314 = vmax.f32 %v4151, %v4223
    %v4315 = vmax.f32 %v4169, %v4225
    %v4316 = vmax.f32 %v4170, %v4227
    %v4317 = vmax.f32 %v4171, %v4229
    %v4318 = vmax.f32 %v4152, %v4231
    %v4319 = vmax.f32 %v4172, %v4233
    %v4320 = vmax.f32 %v4173, %v4235
    %v4321 = vmax.f32 %v4174, %v4237
    %v4322 = vmax.f32 %v4153, %v4239
    %v4323 = vmax.f32 %v4175, %v4241
    %v4324 = vmax.f32 %v4176, %v4243
    %v4325 = vmax.f32 %v4177, %v4245
    %v4326 = vmax.f32 %v4154, %v4247
    %v4327 = vmax.f32 %v4178, %v4249
    %v4328 = vmax.f32 %v4179, %v4251
    %v4329 = vmax.f32 %v4180, %v4253
    %v4330 = vmax.f32 %v4155, %v4255
    %v4331 = vmax.f32 %v4181, %v4257
    %v4332 = vmax.f32 %v4182, %v4259
    %v4333 = vmax.f32 %v4183, %v4261
    %v4334 = vmax.f32 %v4156, %v4263
    %v4335 = vmax.f32 %v4184, %v4265
    %v4336 = vmax.f32 %v4185, %v4267
    %v4337 = vmax.f32 %v4186, %v4269
    %v4338 = vmax.f32 %v4157, %v4271
    %v4339 = vmax.f32 %v4187, %v4273
    %v4340 = vmax.f32 %v4188, %v4275
    %v4341 = vmax.f32 %v4189, %v4277
    %4374 = vrot.lane.b32.xlu0 %v4310, 64
    %v4375 = vpop.permute.xlu0 %4374
    %4376 = vrot.lane.b32.xlu0 %v4311, 64
    %v4377 = vpop.permute.xlu0 %4376
    %4378 = vrot.lane.b32.xlu0 %v4312, 64
    %v4379 = vpop.permute.xlu0 %4378
    %4380 = vrot.lane.b32.xlu0 %v4313, 64
    %v4381 = vpop.permute.xlu0 %4380
    %4382 = vrot.lane.b32.xlu0 %v4314, 64
    %v4383 = vpop.permute.xlu0 %4382
    %4384 = vrot.lane.b32.xlu0 %v4315, 64
    %v4385 = vpop.permute.xlu0 %4384
    %4386 = vrot.lane.b32.xlu0 %v4316, 64
    %v4387 = vpop.permute.xlu0 %4386
    %4388 = vrot.lane.b32.xlu0 %v4317, 64
    %v4389 = vpop.permute.xlu0 %4388
    %4390 = vrot.lane.b32.xlu0 %v4318, 64
    %v4391 = vpop.permute.xlu0 %4390
    %4392 = vrot.lane.b32.xlu0 %v4319, 64
    %v4393 = vpop.permute.xlu0 %4392
    %4394 = vrot.lane.b32.xlu0 %v4320, 64
    %v4395 = vpop.permute.xlu0 %4394
    %4396 = vrot.lane.b32.xlu0 %v4321, 64
    %v4397 = vpop.permute.xlu0 %4396
    %4398 = vrot.lane.b32.xlu0 %v4322, 64
    %v4399 = vpop.permute.xlu0 %4398
    %4400 = vrot.lane.b32.xlu0 %v4323, 64
    %v4401 = vpop.permute.xlu0 %4400
    %4402 = vrot.lane.b32.xlu0 %v4324, 64
    %v4403 = vpop.permute.xlu0 %4402
    %4404 = vrot.lane.b32.xlu0 %v4325, 64
    %v4405 = vpop.permute.xlu0 %4404
    %4406 = vrot.lane.b32.xlu0 %v4326, 64
    %v4407 = vpop.permute.xlu0 %4406
    %4408 = vrot.lane.b32.xlu0 %v4327, 64
    %v4409 = vpop.permute.xlu0 %4408
    %4410 = vrot.lane.b32.xlu0 %v4328, 64
    %v4411 = vpop.permute.xlu0 %4410
    %4412 = vrot.lane.b32.xlu0 %v4329, 64
    %v4413 = vpop.permute.xlu0 %4412
    %4414 = vrot.lane.b32.xlu0 %v4330, 64
    %v4415 = vpop.permute.xlu0 %4414
    %4416 = vrot.lane.b32.xlu0 %v4331, 64
    %v4417 = vpop.permute.xlu0 %4416
    %4418 = vrot.lane.b32.xlu0 %v4332, 64
    %v4419 = vpop.permute.xlu0 %4418
    %4420 = vrot.lane.b32.xlu0 %v4333, 64
    %v4421 = vpop.permute.xlu0 %4420
    %4422 = vrot.lane.b32.xlu0 %v4334, 64
    %v4423 = vpop.permute.xlu0 %4422
    %4424 = vrot.lane.b32.xlu0 %v4335, 64
    %v4425 = vpop.permute.xlu0 %4424
    %4426 = vrot.lane.b32.xlu0 %v4336, 64
    %v4427 = vpop.permute.xlu0 %4426
    %4428 = vrot.lane.b32.xlu0 %v4337, 64
    %v4429 = vpop.permute.xlu0 %4428
    %4430 = vrot.lane.b32.xlu0 %v4338, 64
    %v4431 = vpop.permute.xlu0 %4430
    %4432 = vrot.lane.b32.xlu0 %v4339, 64
    %v4433 = vpop.permute.xlu0 %4432
    %4434 = vrot.lane.b32.xlu0 %v4340, 64
    %v4435 = vpop.permute.xlu0 %4434
    %4436 = vrot.lane.b32.xlu0 %v4341, 64
    %v4437 = vpop.permute.xlu0 %4436
    %v4470 = vmax.f32 %v4310, %v4375
    %v4471 = vmax.f32 %v4311, %v4377
    %v4472 = vmax.f32 %v4312, %v4379
    %v4473 = vmax.f32 %v4313, %v4381
    %v4474 = vmax.f32 %v4314, %v4383
    %v4475 = vmax.f32 %v4315, %v4385
    %v4476 = vmax.f32 %v4316, %v4387
    %v4477 = vmax.f32 %v4317, %v4389
    %v4478 = vmax.f32 %v4318, %v4391
    %v4479 = vmax.f32 %v4319, %v4393
    %v4480 = vmax.f32 %v4320, %v4395
    %v4481 = vmax.f32 %v4321, %v4397
    %v4482 = vmax.f32 %v4322, %v4399
    %v4483 = vmax.f32 %v4323, %v4401
    %v4484 = vmax.f32 %v4324, %v4403
    %v4485 = vmax.f32 %v4325, %v4405
    %v4486 = vmax.f32 %v4326, %v4407
    %v4487 = vmax.f32 %v4327, %v4409
    %v4488 = vmax.f32 %v4328, %v4411
    %v4489 = vmax.f32 %v4329, %v4413
    %v4490 = vmax.f32 %v4330, %v4415
    %v4491 = vmax.f32 %v4331, %v4417
    %v4492 = vmax.f32 %v4332, %v4419
    %v4493 = vmax.f32 %v4333, %v4421
    %v4494 = vmax.f32 %v4334, %v4423
    %v4495 = vmax.f32 %v4335, %v4425
    %v4496 = vmax.f32 %v4336, %v4427
    %v4497 = vmax.f32 %v4337, %v4429
    %v4498 = vmax.f32 %v4338, %v4431
    %v4499 = vmax.f32 %v4339, %v4433
    %v4500 = vmax.f32 %v4340, %v4435
    %v4501 = vmax.f32 %v4341, %v4437
    %v4502 = vld [vmem:[%s6 + $0x1] sm:$0x1]
    %v4503 = vperm.slane %v4502, 0
    %v4505 = vrot.slane %v4503, 2
    %v4506 = vrot.slane %v4503, 4
    %v4507 = vrot.slane %v4503, 6
    %v4508 = vrot.slane %v4503, 1
    %v4509 = vrot.slane %v4505, 1
    %v4510 = vrot.slane %v4506, 1
    %v4511 = vrot.slane %v4507, 1
    %v4520 = vadd.f32 %v4470, %v4503
    %v4521 = vadd.f32 %v4471, %v4508
    %v4522 = vadd.f32 %v4472, %v4505
    %v4523 = vadd.f32 %v4473, %v4509
    %v4524 = vadd.f32 %v4474, %v4506
    %v4525 = vadd.f32 %v4475, %v4510
    %v4526 = vadd.f32 %v4476, %v4507
    %v4527 = vadd.f32 %v4477, %v4511
    %v4528 = vadd.f32 %v4478, %v4503
    %v4529 = vadd.f32 %v4479, %v4508
    %v4530 = vadd.f32 %v4480, %v4505
    %v4531 = vadd.f32 %v4481, %v4509
    %v4532 = vadd.f32 %v4482, %v4506
    %v4533 = vadd.f32 %v4483, %v4510
    %v4534 = vadd.f32 %v4484, %v4507
    %v4535 = vadd.f32 %v4485, %v4511
    %v4536 = vadd.f32 %v4486, %v4503
    %v4537 = vadd.f32 %v4487, %v4508
    %v4538 = vadd.f32 %v4488, %v4505
    %v4539 = vadd.f32 %v4489, %v4509
    %v4540 = vadd.f32 %v4490, %v4506
    %v4541 = vadd.f32 %v4491, %v4510
    %v4542 = vadd.f32 %v4492, %v4507
    %v4543 = vadd.f32 %v4493, %v4511
    %v4544 = vadd.f32 %v4494, %v4503
    %v4545 = vadd.f32 %v4495, %v4508
    %v4546 = vadd.f32 %v4496, %v4505
    %v4547 = vadd.f32 %v4497, %v4509
    %v4548 = vadd.f32 %v4498, %v4506
    %v4549 = vadd.f32 %v4499, %v4510
    %v4550 = vadd.f32 %v4500, %v4507
    %v4551 = vadd.f32 %v4501, %v4511
    %v4552 = vmax.f32 %v4520, 0.0
    %v4553 = vmax.f32 %v4521, 0.0
    %v4554 = vmax.f32 %v4522, 0.0
    %v4555 = vmax.f32 %v4523, 0.0
    %v4556 = vmax.f32 %v4524, 0.0
    %v4557 = vmax.f32 %v4525, 0.0
    %v4558 = vmax.f32 %v4526, 0.0
    %v4559 = vmax.f32 %v4527, 0.0
    %v4560 = vmax.f32 %v4528, 0.0
    %v4561 = vmax.f32 %v4529, 0.0
    %v4562 = vmax.f32 %v4530, 0.0
    %v4563 = vmax.f32 %v4531, 0.0
    %v4564 = vmax.f32 %v4532, 0.0
    %v4565 = vmax.f32 %v4533, 0.0
    %v4566 = vmax.f32 %v4534, 0.0
    %v4567 = vmax.f32 %v4535, 0.0
    %v4568 = vmax.f32 %v4536, 0.0
    %v4569 = vmax.f32 %v4537, 0.0
    %v4570 = vmax.f32 %v4538, 0.0
    %v4571 = vmax.f32 %v4539, 0.0
    %v4572 = vmax.f32 %v4540, 0.0
    %v4573 = vmax.f32 %v4541, 0.0
    %v4574 = vmax.f32 %v4542, 0.0
    %v4575 = vmax.f32 %v4543, 0.0
    %v4576 = vmax.f32 %v4544, 0.0
    %v4577 = vmax.f32 %v4545, 0.0
    %v4578 = vmax.f32 %v4546, 0.0
    %v4579 = vmax.f32 %v4547, 0.0
    %v4580 = vmax.f32 %v4548, 0.0
    %v4581 = vmax.f32 %v4549, 0.0
    %v4582 = vmax.f32 %v4550, 0.0
    %v4583 = vmax.f32 %v4551, 0.0
    %v4584 = vld [vmem:[#allocation4] sm:$0xff]
    %v4585 = vld [vmem:[#allocation4 + $0x8] sm:$0xff]
    %v4586 = vld [vmem:[#allocation4 + $0x10] sm:$0xff]
    %v4587 = vld [vmem:[#allocation4 + $0x18] sm:$0xff]
    %v4588 = vld [vmem:[#allocation4 + $0x20] sm:$0xff]
    %v4589 = vld [vmem:[#allocation4 + $0x28] sm:$0xff]
    %v4590 = vld [vmem:[#allocation4 + $0x30] sm:$0xff]
    %v4591 = vld [vmem:[#allocation4 + $0x38] sm:$0xff]
    %v4592 = vld [vmem:[#allocation4 + $0x40] sm:$0xff]
    %v4593 = vld [vmem:[#allocation4 + $0x48] sm:$0xff]
    %v4594 = vld [vmem:[#allocation4 + $0x50] sm:$0xff]
    %v4595 = vld [vmem:[#allocation4 + $0x58] sm:$0xff]
    %v4596 = vld [vmem:[#allocation4 + $0x60] sm:$0xff]
    %v4597 = vld [vmem:[#allocation4 + $0x68] sm:$0xff]
    %v4598 = vld [vmem:[#allocation4 + $0x70] sm:$0xff]
    %v4599 = vld [vmem:[#allocation4 + $0x78] sm:$0xff]
    %v4608 = vperm.slane %v4553, 0
    %v4609 = vperm.slane %v4557, 0
    %v4610 = vperm.slane %v4561, 0
    %v4611 = vperm.slane %v4565, 0
    %v4612 = vperm.slane %v4569, 0
    %v4613 = vperm.slane %v4573, 0
    %v4614 = vperm.slane %v4577, 0
    %v4615 = vperm.slane %v4581, 0
    %v4616 = vsel %vm3467, %v4609, %v4608
    %v4617 = vsel %vm3469, %v4610, %v4616
    %v4618 = vsel %vm3471, %v4611, %v4617
    %v4619 = vsel %vm3473, %v4612, %v4618
    %v4620 = vsel %vm3475, %v4613, %v4619
    %v4621 = vsel %vm3477, %v4614, %v4620
    %v4622 = vsel %vm3479, %v4615, %v4621
    %vm4623 = vcmask 523264
    %v4624 = vsel %vm4623, %v4622, 0
    %4626 = vmatpush.msra.mxu0 0.0
    %4627 = vmatpush.msra.mxu0 0.0
    %4628 = vmatpush.msra.mxu0 0.0
    %4629 = vmatpush.msra.mxu0 0.0
    %4630 = vmatpush.msra.mxu0 0.0
    %4631 = vmatpush.msra.mxu0 0.0
    %4632 = vmatpush.msra.mxu0 0.0
    %4633 = vmatpush.msra.mxu0 0.0
    %4634 = vmatpush.msra.mxu0 %v4599
    %4635 = vmatpush.msra.mxu0 %v4598
    %4636 = vmatpush.msra.mxu0 %v4597
    %4637 = vmatpush.msra.mxu0 %v4596
    %4638 = vmatpush.msra.mxu0 %v4595
    %4639 = vmatpush.msra.mxu0 %v4594
    %4640 = vmatpush.msra.mxu0 %v4593
    %4641 = vmatpush.msra.mxu0 %v4592
    %4642 = vmatmul.f32.gmra.mxu0 %v4624
    %v4643 = vpop.f32.mrf.mxu0
    %v4644 = vadd.f32 0.0, %v4643
    %4645 = vdwg.mxu0
    %v4654 = vperm.slane %v4552, 0
    %v4655 = vperm.slane %v4556, 0
    %v4656 = vperm.slane %v4560, 0
    %v4657 = vperm.slane %v4564, 0
    %v4658 = vperm.slane %v4568, 0
    %v4659 = vperm.slane %v4572, 0
    %v4660 = vperm.slane %v4576, 0
    %v4661 = vperm.slane %v4580, 0
    %v4662 = vsel %vm3467, %v4655, %v4654
    %v4663 = vsel %vm3469, %v4656, %v4662
    %v4664 = vsel %vm3471, %v4657, %v4663
    %v4665 = vsel %vm3473, %v4658, %v4664
    %v4666 = vsel %vm3475, %v4659, %v4665
    %v4667 = vsel %vm3477, %v4660, %v4666
    %v4668 = vsel %vm3479, %v4661, %v4667
    %v4669 = vsel %vm4623, %v4668, 0
    %4671 = vmatpush.msra.mxu0 0.0
    %4672 = vmatpush.msra.mxu0 0.0
    %4673 = vmatpush.msra.mxu0 0.0
    %4674 = vmatpush.msra.mxu0 0.0
    %4675 = vmatpush.msra.mxu0 0.0
    %4676 = vmatpush.msra.mxu0 0.0
    %4677 = vmatpush.msra.mxu0 0.0
    %4678 = vmatpush.msra.mxu0 0.0
    %4679 = vmatpush.msra.mxu0 %v4591
    %4680 = vmatpush.msra.mxu0 %v4590
    %4681 = vmatpush.msra.mxu0 %v4589
    %4682 = vmatpush.msra.mxu0 %v4588
    %4683 = vmatpush.msra.mxu0 %v4587
    %4684 = vmatpush.msra.mxu0 %v4586
    %4685 = vmatpush.msra.mxu0 %v4585
    %4686 = vmatpush.msra.mxu0 %v4584
    %4687 = vmatmul.f32.gmra.mxu0 %v4669
    %v4688 = vpop.f32.mrf.mxu0
    %v4689 = vadd.f32 %v4644, %v4688
    %4690 = vdwg.mxu0
    %v4691 = vld [vmem:[#allocation4 + $0x80] sm:$0xff]
    %v4692 = vld [vmem:[#allocation4 + $0x88] sm:$0xff]
    %v4693 = vld [vmem:[#allocation4 + $0x90] sm:$0xff]
    %v4694 = vld [vmem:[#allocation4 + $0x98] sm:$0xff]
    %v4695 = vld [vmem:[#allocation4 + $0xa0] sm:$0xff]
    %v4696 = vld [vmem:[#allocation4 + $0xa8] sm:$0xff]
    %v4697 = vld [vmem:[#allocation4 + $0xb0] sm:$0xff]
    %v4698 = vld [vmem:[#allocation4 + $0xb8] sm:$0xff]
    %v4707 = vperm.slane %v4554, 0
    %v4708 = vperm.slane %v4558, 0
    %v4709 = vperm.slane %v4562, 0
    %v4710 = vperm.slane %v4566, 0
    %v4711 = vperm.slane %v4570, 0
    %v4712 = vperm.slane %v4574, 0
    %v4713 = vperm.slane %v4578, 0
    %v4714 = vperm.slane %v4582, 0
    %v4715 = vsel %vm3467, %v4708, %v4707
    %v4716 = vsel %vm3469, %v4709, %v4715
    %v4717 = vsel %vm3471, %v4710, %v4716
    %v4718 = vsel %vm3473, %v4711, %v4717
    %v4719 = vsel %vm3475, %v4712, %v4718
    %v4720 = vsel %vm3477, %v4713, %v4719
    %v4721 = vsel %vm3479, %v4714, %v4720
    %v4722 = vsel %vm4623, %v4721, 0
    %4724 = vmatpush.msra.mxu0 0.0
    %4725 = vmatpush.msra.mxu0 0.0
    %4726 = vmatpush.msra.mxu0 0.0
    %4727 = vmatpush.msra.mxu0 0.0
    %4728 = vmatpush.msra.mxu0 0.0
    %4729 = vmatpush.msra.mxu0 0.0
    %4730 = vmatpush.msra.mxu0 0.0
    %4731 = vmatpush.msra.mxu0 0.0
    %4732 = vmatpush.msra.mxu0 %v4698
    %4733 = vmatpush.msra.mxu0 %v4697
    %4734 = vmatpush.msra.mxu0 %v4696
    %4735 = vmatpush.msra.mxu0 %v4695
    %4736 = vmatpush.msra.mxu0 %v4694
    %4737 = vmatpush.msra.mxu0 %v4693
    %4738 = vmatpush.msra.mxu0 %v4692
    %4739 = vmatpush.msra.mxu0 %v4691
    %4740 = vmatmul.f32.gmra.mxu0 %v4722
    %v4741 = vpop.f32.mrf.mxu0
    %v4742 = vadd.f32 0.0, %v4741
    %4743 = vdwg.mxu0
    %v4744 = vadd.f32 %v4689, %v4742
    %v4745 = vld [vmem:[#allocation4 + $0xc0] sm:$0xff]
    %v4746 = vld [vmem:[#allocation4 + $0xc8] sm:$0xff]
    %v4747 = vld [vmem:[#allocation4 + $0xd0] sm:$0xff]
    %v4748 = vld [vmem:[#allocation4 + $0xd8] sm:$0xff]
    %v4749 = vld [vmem:[#allocation4 + $0xe0] sm:$0xff]
    %v4750 = vld [vmem:[#allocation4 + $0xe8] sm:$0xff]
    %v4751 = vld [vmem:[#allocation4 + $0xf0] sm:$0xff]
    %v4752 = vld [vmem:[#allocation4 + $0xf8] sm:$0xff]
    %v4761 = vperm.slane %v4555, 0
    %v4762 = vperm.slane %v4559, 0
    %v4763 = vperm.slane %v4563, 0
    %v4764 = vperm.slane %v4567, 0
    %v4765 = vperm.slane %v4571, 0
    %v4766 = vperm.slane %v4575, 0
    %v4767 = vperm.slane %v4579, 0
    %v4768 = vperm.slane %v4583, 0
    %v4769 = vsel %vm3467, %v4762, %v4761
    %v4770 = vsel %vm3469, %v4763, %v4769
    %v4771 = vsel %vm3471, %v4764, %v4770
    %v4772 = vsel %vm3473, %v4765, %v4771
    %v4773 = vsel %vm3475, %v4766, %v4772
    %v4774 = vsel %vm3477, %v4767, %v4773
    %v4775 = vsel %vm3479, %v4768, %v4774
    %v4776 = vsel %vm4623, %v4775, 0
    %4778 = vmatpush.msra.mxu0 0.0
    %4779 = vmatpush.msra.mxu0 0.0
    %4780 = vmatpush.msra.mxu0 0.0
    %4781 = vmatpush.msra.mxu0 0.0
    %4782 = vmatpush.msra.mxu0 0.0
    %4783 = vmatpush.msra.mxu0 0.0
    %4784 = vmatpush.msra.mxu0 0.0
    %4785 = vmatpush.msra.mxu0 0.0
    %4786 = vmatpush.msra.mxu0 %v4752
    %4787 = vmatpush.msra.mxu0 %v4751
    %4788 = vmatpush.msra.mxu0 %v4750
    %4789 = vmatpush.msra.mxu0 %v4749
    %4790 = vmatpush.msra.mxu0 %v4748
    %4791 = vmatpush.msra.mxu0 %v4747
    %4792 = vmatpush.msra.mxu0 %v4746
    %4793 = vmatpush.msra.mxu0 %v4745
    %4794 = vmatmul.f32.gmra.mxu0 %v4776
    %v4795 = vpop.f32.mrf.mxu0
    %v4796 = vadd.f32 0.0, %v4795
    %4797 = vdwg.mxu0
    %v4798 = vadd.f32 %v4744, %v4796
    %v4799 = vld [vmem:[%s6 + $0x2] sm:$0x1]
    %v4800 = vperm.slane %v4799, 0
    %v4801 = vadd.f32 %v4798, %v4800
    %v4802 = vmax.f32 %v4801, 0.0
    %v4803 = vld [vmem:[%s4] sm:$0xff]
    %v4804 = vld [vmem:[%s4 + $0x8] sm:$0xff]
    %v4805 = vld [vmem:[%s4 + $0x10] sm:$0xff]
    %v4806 = vld [vmem:[%s4 + $0x18] sm:$0xff]
    %v4807 = vld [vmem:[%s4 + $0x20] sm:$0xff]
    %v4808 = vld [vmem:[%s4 + $0x28] sm:$0xff]
    %v4809 = vld [vmem:[%s4 + $0x30] sm:$0xff]
    %v4810 = vld [vmem:[%s4 + $0x38] sm:$0xff]
    %v4811 = vld [vmem:[%s4 + $0x40] sm:$0xff]
    %v4812 = vld [vmem:[%s4 + $0x48] sm:$0xff]
    %v4813 = vld [vmem:[%s4 + $0x50] sm:$0xff]
    %v4814 = vld [vmem:[%s4 + $0x58] sm:$0xff]
    %v4815 = vld [vmem:[%s4 + $0x60] sm:$0xff]
    %v4816 = vld [vmem:[%s4 + $0x68] sm:$0xff]
    %v4817 = vld [vmem:[%s4 + $0x70] sm:$0xff]
    %v4818 = vld [vmem:[%s4 + $0x78] sm:$0xff]
    %v4819 = vld [vmem:[%s6 + $0x3] sm:$0x1]
    %v4820 = vperm.slane %v4819, 0
    %4821 = vmatpush.msra.mxu0 %v4818
    %4822 = vmatpush.msra.mxu0 %v4817
    %4823 = vmatpush.msra.mxu0 %v4816
    %4824 = vmatpush.msra.mxu0 %v4815
    %4825 = vmatpush.msra.mxu0 %v4814
    %4826 = vmatpush.msra.mxu0 %v4813
    %4827 = vmatpush.msra.mxu0 %v4812
    %4828 = vmatpush.msra.mxu0 %v4811
    %4829 = vmatpush.msra.mxu0 %v4810
    %4830 = vmatpush.msra.mxu0 %v4809
    %4831 = vmatpush.msra.mxu0 %v4808
    %4832 = vmatpush.msra.mxu0 %v4807
    %4833 = vmatpush.msra.mxu0 %v4806
    %4834 = vmatpush.msra.mxu0 %v4805
    %4835 = vmatpush.msra.mxu0 %v4804
    %4836 = vmatpush.msra.mxu0 %v4803
    %4837 = vmatmul.f32.gmra.mxu0 %v4802
    %v4838 = vpop.f32.mrf.mxu0
    %v4839 = vadd.f32 %v4820, %v4838
    %4840 = vdwg.mxu0
    %v4841 = vmax.f32 %v4839, 0.0
    %v4842 = vld [vmem:[#allocation6] sm:$0xff]
    %v4843 = vld [vmem:[#allocation6 + $0x8] sm:$0xff]
    %v4844 = vld [vmem:[#allocation6 + $0x10] sm:$0xff]
    %v4845 = vld [vmem:[#allocation6 + $0x18] sm:$0xff]
    %v4846 = vld [vmem:[#allocation6 + $0x20] sm:$0xff]
    %v4847 = vld [vmem:[#allocation6 + $0x28] sm:$0xff]
    %v4848 = vld [vmem:[#allocation6 + $0x30] sm:$0xff]
    %v4849 = vld [vmem:[#allocation6 + $0x38] sm:$0xff]
    %v4850 = vld [vmem:[#allocation6 + $0x40] sm:$0xff]
    %v4851 = vld [vmem:[#allocation6 + $0x48] sm:$0xff]
    %v4852 = vld [vmem:[#allocation6 + $0x50] sm:$0xff]
    %v4853 = vld [vmem:[#allocation6 + $0x58] sm:$0xff]
    %v4854 = vld [vmem:[#allocation6 + $0x60] sm:$0xff]
    %v4855 = vld [vmem:[#allocation6 + $0x68] sm:$0xff]
    %v4856 = vld [vmem:[#allocation6 + $0x70] sm:$0xff]
    %v4857 = vld [vmem:[#allocation6 + $0x78] sm:$0xff]
    %v4858 = vld [vmem:[%s6 + $0x4] sm:$0x1]
    %v4859 = vperm.slane %v4858, 0
    %4860 = vmatpush.msra.mxu0 %v4857
    %4861 = vmatpush.msra.mxu0 %v4856
    %4862 = vmatpush.msra.mxu0 %v4855
    %4863 = vmatpush.msra.mxu0 %v4854
    %4864 = vmatpush.msra.mxu0 %v4853
    %4865 = vmatpush.msra.mxu0 %v4852
    %4866 = vmatpush.msra.mxu0 %v4851
    %4867 = vmatpush.msra.mxu0 %v4850
    %4868 = vmatpush.msra.mxu0 %v4849
    %4869 = vmatpush.msra.mxu0 %v4848
    %4870 = vmatpush.msra.mxu0 %v4847
    %4871 = vmatpush.msra.mxu0 %v4846
    %4872 = vmatpush.msra.mxu0 %v4845
    %4873 = vmatpush.msra.mxu0 %v4844
    %4874 = vmatpush.msra.mxu0 %v4843
    %4875 = vmatpush.msra.mxu0 %v4842
    %4876 = vmatmul.f32.gmra.mxu0 %v4841
    %v4877 = vpop.f32.mrf.mxu0
    %v4878 = vadd.f32 %v4859, %v4877
    %4879 = vdwg.mxu0
    %4880 = vmax.xlane.f32.xlu0 %v4878
    %v4881 = vpop.xlane.xlu0 %4880
    %v4882 = vsub.f32 %v4878, %v4881
    %v4883 = vmul.f32 %v4882, 1.442695
    %v4884 = vpow.pop %v4883
    %4885 = vadd.xlane.f32.xlu0 %v4884
    %v4886 = vpop.xlane.xlu0 %4885
    %v4887 = vrcp.pop %v4886
    %v4888 = vmul.f32 %v4884, %v4887
    %4889 = vst [vmem:[%s7] sm:$0xff] %v4888
    // Predicated region
    $region42: #{lenet_apply.1} parent=1 // pred_check
      _
    $region43: #{lenet_apply.1} parent=1 // pred_check_branch
      %4891 = sbr.rel (0) target = $region45
    $region44: #{lenet_apply.1} parent=1 // pred_region
      _
    $region45: #{lenet_apply.1} parent=1 // pred_fallthru
      _
    // Predicated region
    $region46: #{lenet_apply.1} parent=1 // pred_check
      _
    $region47: #{lenet_apply.1} parent=1 // pred_check_branch
      %4893 = sbr.rel (0) target = $region49
    $region48: #{lenet_apply.1} parent=1 // pred_region
      _
    $region49: #{lenet_apply.1} parent=1 // pred_fallthru
      _
    %4894 = vsyncpa [#allocation3], 1
    %4895 = vsyncpa [#allocation5], 1

</llo_original>
